<compile_context>
chip_gen: v5e
topology: v5e:2x2
jax: 0.10.0
libtpu: 0.0.40
codegen_flags: <defaults>
</compile_context>

<pallas_src>
import functools

import jax
import jax.numpy as jnp
from jax.experimental import pallas as pl
from jax.experimental.pallas import tpu as pltpu


def _round_up(v, m):
    return (v + m - 1) // m * m


def _pick_row_tile(Ho, Wo):
    """Output rows per grid step: a divisor of Ho giving >= ~256 output pixels
    per tile (fills the MXU M dim) with a sublane-aligned tile size."""
    target = -(-256 // Wo)
    for d in range(1, Ho + 1):
        if Ho % d == 0 and d >= target and (d * Wo) % 8 == 0:
            return d
    return Ho


# ----------------------------------------------------------------------------
# Fused BasicBlock kernel (one grid step == one (image, row-tile))
# ----------------------------------------------------------------------------
def _basic_block_kernel(x_ref, w1_ref, b1_ref, w2_ref, b2_ref, o_ref,
                        p_ref, im1_ref, im2_ref, *,
                        stride, Tr, Wo, Hs, cin_p, fpad):
    rt = pl.program_id(1)
    n_rt = pl.num_programs(1)
    rows_h = Tr + 2                       # out1 rows incl. 1-row halo each side
    Mh = rows_h * Wo
    Mt = Tr * Wo
    row0 = rt * Tr

    # ---- conv1 im2col: 9 direct ref window slices -> (Mh, 9*cin_p) operand --
    for t in range(9):
        dh, dw = t // 3, t % 3
        ph = (dh % stride) * stride + (dw % stride)      # stride-phase plane
        r0 = ph * Hs + dh // stride                      # static part of row start
        c0 = dw // stride
        src = x_ref[pl.ds(row0 + r0, rows_h), c0:c0 + Wo, :]
        im1_ref[:, t * cin_p:(t + 1) * cin_p] = src.reshape(Mh, cin_p)

    # ---- conv1 + bn1 + relu: ONE MXU matmul, K = 9*cin_p --------------------
    a1 = jnp.dot(im1_ref[...], w1_ref[...], preferred_element_type=jnp.float32)
    out1 = jnp.maximum(a1 + b1_ref[...], 0.0).astype(jnp.bfloat16)

    # ---- re-pad out1 in VMEM: interior store + cheap halo zeroing -----------
    p_ref[:, 1:Wo + 1, :] = out1.reshape(rows_h, Wo, fpad)
    zcol = jnp.zeros((rows_h, fpad), jnp.bfloat16)
    p_ref[:, 0, :] = zcol
    p_ref[:, Wo + 1, :] = zcol

    @pl.when(rt == 0)                     # top image boundary: halo row is padding
    def _():
        p_ref[0, :, :] = jnp.zeros((Wo + 2, fpad), jnp.bfloat16)

    @pl.when(rt == n_rt - 1)              # bottom image boundary
    def _():
        p_ref[rows_h - 1, :, :] = jnp.zeros((Wo + 2, fpad), jnp.bfloat16)

    # ---- conv2 im2col (+ shortcut operand appended along K) -----------------
    for t in range(9):
        dh, dw = t // 3, t % 3
        im2_ref[:, t * fpad:(t + 1) * fpad] = (
            p_ref[dh:dh + Tr, dw:dw + Wo, :].reshape(Mt, fpad))
    # center tap of conv1's operand == the input of the 1x1 stride-s shortcut
    im2_ref[:, 9 * fpad:9 * fpad + cin_p] = (
        im1_ref[Wo:(Tr + 1) * Wo, 4 * cin_p:5 * cin_p])

    # ---- conv2 + bn2 + shortcut + relu: ONE MXU matmul, K = 9*fpad + cin_p --
    y = jnp.dot(im2_ref[...], w2_ref[...], preferred_element_type=jnp.float32)
    o_ref[...] = jnp.maximum(y + b2_ref[...], 0.0)


# ----------------------------------------------------------------------------
# Wrapper: layout prep (phase decomposition, BN folding, channel padding)
# ----------------------------------------------------------------------------
def basic_block_forward(x_nchw, params, stride):
    """BasicBlock forward. x_nchw: (N, Cin, H, W) f32 -> (N, planes, Ho, Wo) f32."""
    x = jnp.transpose(x_nchw, (0, 2, 3, 1)).astype(jnp.float32)   # NHWC
    N, H, W, Cin = x.shape
    planes = params["w1"].shape[0]
    has_proj = "w_sc" in params

    Ho = (H - 1) // stride + 1
    Wo = (W - 1) // stride + 1
    fpad = _round_up(planes, 128)            # lane-dense output channels
    cin_p = _round_up(Cin, 8)                # input channels: sublane pad only
    Tr = _pick_row_tile(Ho, Wo)
    n_rt = Ho // Tr
    rows_h = Tr + 2
    Mh, Mt = rows_h * Wo, Tr * Wo

    # -- stride-phase decomposition of the zero-padded input (single HBM copy),
    #    zero-extended by one out1-halo row so every tile window is in-bounds:
    #    xph[n, p*Hs + qr, qc, c] = xpad[(qr-1)*s + pr, qc*s + pc, c]  (p = pr*s+pc)
    d_max = 2 // stride
    Hs, Ws = Ho + d_max + 2, Wo + d_max
    xpad = jnp.pad(x, ((0, 0), (1, 1), (1, 1), (0, cin_p - Cin)))
    xext = jnp.pad(xpad, ((0, 0),
                          (stride, Hs * stride - stride - (H + 2)),
                          (0, Ws * stride - (W + 2)),
                          (0, 0)))
    xph = xext.reshape(N, Hs, stride, Ws, stride, cin_p).transpose(0, 2, 4, 1, 3, 5)
    xph = xph.reshape(N, stride * stride * Hs, Ws, cin_p).astype(jnp.bfloat16)

    # -- weights: BN scale folded, taps concatenated along K, channel-padded --
    def prep3x3(w, scale, ci_pad):
        co, ci = w.shape[0], w.shape[1]
        wm = jnp.transpose(w, (2, 3, 1, 0)).reshape(9, ci, co) * scale[None, None, :]
        wm = jnp.pad(wm, ((0, 0), (0, ci_pad - ci), (0, fpad - co)))
        return wm.reshape(9 * ci_pad, fpad)

    w1cat = prep3x3(params["w1"], params["scale1"], cin_p)
    w2cat = prep3x3(params["w2"], params["scale2"], fpad)

    # shortcut folded into conv2's matmul as extra K rows (projection or identity)
    if has_proj:
        wsc = params["w_sc"].reshape(planes, Cin).T * params["scale_sc"][None, :]
        bias2 = params["bias2"] + params["bias_sc"]
    else:
        wsc = jnp.eye(Cin, dtype=jnp.float32)
        bias2 = params["bias2"]
    wsc = jnp.pad(wsc, ((0, cin_p - Cin), (0, fpad - wsc.shape[1])))
    w2cat = jnp.concatenate([w2cat, wsc], axis=0)      # (9*fpad + cin_p, fpad)
    K2 = 9 * fpad + cin_p

    w1cat = w1cat.astype(jnp.bfloat16)
    w2cat = w2cat.astype(jnp.bfloat16)
    b1 = jnp.pad(params["bias1"], (0, fpad - planes)).reshape(1, fpad).astype(jnp.float32)
    b2 = jnp.pad(bias2, (0, fpad - planes)).reshape(1, fpad).astype(jnp.float32)

    kernel = functools.partial(_basic_block_kernel, stride=stride, Tr=Tr,
                               Wo=Wo, Hs=Hs, cin_p=cin_p, fpad=fpad)

    flops = 2 * N * n_rt * (Mh * 9 * cin_p * fpad + Mt * K2 * fpad)
    bytes_accessed = int(xph.size * 2 + w1cat.size * 2 + w2cat.size * 2
                         + (b1.size + b2.size) * 4 + N * Ho * Wo * fpad * 4)

    out = pl.pallas_call(
        kernel,
        out_shape=jax.ShapeDtypeStruct((N, Ho * Wo, fpad), jnp.float32),
        grid=(N, n_rt),
        in_specs=[
            pl.BlockSpec((None, stride * stride * Hs, Ws, cin_p),
                         lambda n, r: (n, 0, 0, 0)),
            pl.BlockSpec((9 * cin_p, fpad), lambda n, r: (0, 0)),
            pl.BlockSpec((1, fpad), lambda n, r: (0, 0)),
            pl.BlockSpec((K2, fpad), lambda n, r: (0, 0)),
            pl.BlockSpec((1, fpad), lambda n, r: (0, 0)),
        ],
        out_specs=pl.BlockSpec((None, Mt, fpad), lambda n, r: (n, r, 0)),
        scratch_shapes=[
            pltpu.VMEM((rows_h, Wo + 2, fpad), jnp.bfloat16),   # padded out1 tile
            pltpu.VMEM((Mh, 9 * cin_p), jnp.bfloat16),          # conv1 im2col
            pltpu.VMEM((Mt, K2), jnp.bfloat16),                 # conv2 im2col + residual
        ],
        compiler_params=pltpu.CompilerParams(
            dimension_semantics=("parallel", "parallel"),
            vmem_limit_bytes=48 * 1024 * 1024),
        cost_estimate=pl.CostEstimate(flops=flops, transcendentals=0,
                                      bytes_accessed=bytes_accessed),
    )(xph, w1cat, b1, w2cat, b2)

    out = out.reshape(N, Ho, Wo, fpad)[:, :, :, :planes]
    return jnp.transpose(out, (0, 3, 1, 2))  # back to NCHW


# ----------------------------------------------------------------------------
# Pure-JAX reference (correctness check)
# ----------------------------------------------------------------------------
def ref_forward(x, params, stride):
    def conv(x, w, s, pad):
        return jax.lax.conv_general_dilated(
            x, w, (s, s), [(pad, pad), (pad, pad)],
            dimension_numbers=("NCHW", "OIHW", "NCHW"))

    def bn(x, scale, bias):
        return x * scale.reshape(1, -1, 1, 1) + bias.reshape(1, -1, 1, 1)

    out = jax.nn.relu(bn(conv(x, params["w1"], stride, 1), params["scale1"], params["bias1"]))
    out = bn(conv(out, params["w2"], 1, 1), params["scale2"], params["bias2"])
    if "w_sc" in params:
        sc = bn(conv(x, params["w_sc"], stride, 0), params["scale_sc"], params["bias_sc"])
    else:
        sc = x
    return jax.nn.relu(out + sc)


# ----------------------------------------------------------------------------
# Deterministic parameter init (eval-mode BN folded to affine) + run
# ----------------------------------------------------------------------------
def fold_bn(gamma, beta, mean, var, eps=1e-5):
    scale = gamma / jnp.sqrt(var + eps)
    bias = beta - mean * scale
    return scale, bias


def init_params(key, in_planes, planes, stride):
    ks = jax.random.split(key, 9)
    eps = 1e-5
    params = {}
    params["w1"] = 0.2 * jax.random.normal(ks[0], (planes, in_planes, 3, 3), jnp.float32)
    params["w2"] = 0.2 * jax.random.normal(ks[1], (planes, planes, 3, 3), jnp.float32)
    g1 = 1.0 + 0.1 * jax.random.normal(ks[2], (planes,), jnp.float32)
    b1 = 0.1 * jax.random.normal(ks[3], (planes,), jnp.float32)
    g2 = 1.0 + 0.1 * jax.random.normal(ks[4], (planes,), jnp.float32)
    b2 = 0.1 * jax.random.normal(ks[5], (planes,), jnp.float32)
    zeros = jnp.zeros((planes,), jnp.float32)
    ones = jnp.ones((planes,), jnp.float32)
    params["scale1"], params["bias1"] = fold_bn(g1, b1, zeros, ones, eps)
    params["scale2"], params["bias2"] = fold_bn(g2, b2, zeros, ones, eps)
    if stride != 1 or in_planes != planes:
        params["w_sc"] = 0.2 * jax.random.normal(ks[6], (planes, in_planes, 1, 1), jnp.float32)
        gsc = 1.0 + 0.1 * jax.random.normal(ks[7], (planes,), jnp.float32)
        bsc = 0.1 * jax.random.normal(ks[8], (planes,), jnp.float32)
        params["scale_sc"], params["bias_sc"] = fold_bn(gsc, bsc, zeros, ones, eps)
    return params


if __name__ == "__main__":
    key = jax.random.PRNGKey(0)

    configs = [
        # projection shortcut (stride 2, channel change), single row tile
        dict(N=2, in_planes=4, planes=8, H=16, W=16, stride=2),
        # identity shortcut, single row tile
        dict(N=2, in_planes=8, planes=8, H=8, W=8, stride=1),
        # identity shortcut, several row tiles (exercises the halo recompute)
        dict(N=1, in_planes=8, planes=8, H=32, W=32, stride=1),
        # projection shortcut, stride 2, several row tiles
        dict(N=1, in_planes=4, planes=8, H=64, W=64, stride=2),
    ]
    for i, cfg in enumerate(configs):
        kx, kp, key = jax.random.split(key, 3)
        x = jax.random.normal(kx, (cfg["N"], cfg["in_planes"], cfg["H"], cfg["W"]),
                              jnp.float32)
        params = init_params(kp, cfg["in_planes"], cfg["planes"], cfg["stride"])

        out = jax.block_until_ready(basic_block_forward(x, params, cfg["stride"]))
        ref = jax.block_until_ready(ref_forward(x, params, cfg["stride"]))

        Ho = (cfg["H"] - 1) // cfg["stride"] + 1
        Wo = (cfg["W"] - 1) // cfg["stride"] + 1
        assert out.shape == ref.shape == (cfg["N"], cfg["planes"], Ho, Wo), out.shape
        max_err = float(jnp.max(jnp.abs(out - ref)))
        # bf16 MXU operands / bf16 residual -> allow a few ulps of bf16 error.
        assert max_err < 1e-1, f"config {i}: mismatch vs reference, max_err={max_err}"

    print("KERNEL_OK")
</pallas_src>

<mosaic_0001>
module attributes {stable_mosaic.version = 11 : i64} {
  func.func @_basic_block_kernel(%arg0: i32, %arg1: i32, %arg2: memref<1x44x9x8xbf16, #tpu.memory_space<vmem>>, %arg3: memref<72x128xbf16, #tpu.memory_space<vmem>>, %arg4: memref<1x128xf32, #tpu.memory_space<vmem>>, %arg5: memref<1160x128xbf16, #tpu.memory_space<vmem>>, %arg6: memref<1x128xf32, #tpu.memory_space<vmem>>, %arg7: memref<1x64x128xf32, #tpu.memory_space<vmem>>, %arg8: memref<10x10x128xbf16, #tpu.memory_space<vmem>>, %arg9: memref<80x72xbf16, #tpu.memory_space<vmem>>, %arg10: memref<64x1160xbf16, #tpu.memory_space<vmem>>) attributes {dimension_semantics = [#tpu.dimension_semantics<parallel>, #tpu.dimension_semantics<parallel>], iteration_bounds = array<i64: 2, 1>, scalar_prefetch = 0 : i64, scratch_operands = 3 : i64, tpu.core_type = #tpu.core_type<tc>, window_params = [{transform_indices = @transform_0, window_bounds = array<i64: 1, 44, 9, 8>}, {pipeline_mode = #tpu.pipeline_mode<synchronous>, transform_indices = @transform_1, window_bounds = array<i64: 72, 128>}, {pipeline_mode = #tpu.pipeline_mode<synchronous>, transform_indices = @transform_2, window_bounds = array<i64: 1, 128>}, {pipeline_mode = #tpu.pipeline_mode<synchronous>, transform_indices = @transform_3, window_bounds = array<i64: 1160, 128>}, {pipeline_mode = #tpu.pipeline_mode<synchronous>, transform_indices = @transform_4, window_bounds = array<i64: 1, 128>}, {transform_indices = @transform_5, window_bounds = array<i64: 1, 64, 128>}]} {
    %c8_i32 = arith.constant 8 : i32
    %0 = arith.muli %arg1, %c8_i32 : i32
    %c0_i32 = arith.constant 0 : i32
    %1 = arith.addi %0, %c0_i32 : i32
    %c0 = arith.constant 0 : index
    %2 = arith.index_cast %1 : i32 to index
    %c0_0 = arith.constant 0 : index
    %c0_1 = arith.constant 0 : index
    %3 = vector.load %arg2[%c0, %2, %c0_0, %c0_1] : memref<1x44x9x8xbf16, #tpu.memory_space<vmem>>, vector<1x10x8x8xbf16>
    %4 = vector.shape_cast %3 : vector<1x10x8x8xbf16> to vector<10x8x8xbf16>
    %5 = vector.shape_cast %4 : vector<10x8x8xbf16> to vector<80x8xbf16>
    %c0_2 = arith.constant 0 : index
    %c0_3 = arith.constant 0 : index
    %6 = vector.load %arg9[%c0_2, %c0_3] : memref<80x72xbf16, #tpu.memory_space<vmem>>, vector<80x8xbf16>
    tpu.vector_store %arg9[%c0_2, %c0_3], %5 {strides = array<i32>} : memref<80x72xbf16, #tpu.memory_space<vmem>>, vector<80x8xbf16>,
    %c11_i32 = arith.constant 11 : i32
    %7 = arith.addi %0, %c11_i32 : i32
    %c0_4 = arith.constant 0 : index
    %8 = arith.index_cast %7 : i32 to index
    %c0_5 = arith.constant 0 : index
    %c0_6 = arith.constant 0 : index
    %9 = vector.load %arg2[%c0_4, %8, %c0_5, %c0_6] : memref<1x44x9x8xbf16, #tpu.memory_space<vmem>>, vector<1x10x8x8xbf16>
    %10 = vector.shape_cast %9 : vector<1x10x8x8xbf16> to vector<10x8x8xbf16>
    %11 = vector.shape_cast %10 : vector<10x8x8xbf16> to vector<80x8xbf16>
    %c0_7 = arith.constant 0 : index
    %c8 = arith.constant 8 : index
    %12 = vector.load %arg9[%c0_7, %c8] : memref<80x72xbf16, #tpu.memory_space<vmem>>, vector<80x8xbf16>
    tpu.vector_store %arg9[%c0_7, %c8], %11 {strides = array<i32>} : memref<80x72xbf16, #tpu.memory_space<vmem>>, vector<80x8xbf16>,
    %c0_i32_8 = arith.constant 0 : i32
    %13 = arith.addi %0, %c0_i32_8 : i32
    %c0_9 = arith.constant 0 : index
    %14 = arith.index_cast %13 : i32 to index
    %c1 = arith.constant 1 : index
    %c0_10 = arith.constant 0 : index
    %15 = vector.load %arg2[%c0_9, %14, %c1, %c0_10] : memref<1x44x9x8xbf16, #tpu.memory_space<vmem>>, vector<1x10x8x8xbf16>
    %16 = vector.shape_cast %15 : vector<1x10x8x8xbf16> to vector<10x8x8xbf16>
    %17 = vector.shape_cast %16 : vector<10x8x8xbf16> to vector<80x8xbf16>
    %c0_11 = arith.constant 0 : index
    %c16 = arith.constant 16 : index
    %18 = vector.load %arg9[%c0_11, %c16] : memref<80x72xbf16, #tpu.memory_space<vmem>>, vector<80x8xbf16>
    tpu.vector_store %arg9[%c0_11, %c16], %17 {strides = array<i32>} : memref<80x72xbf16, #tpu.memory_space<vmem>>, vector<80x8xbf16>,
    %c22_i32 = arith.constant 22 : i32
    %19 = arith.addi %0, %c22_i32 : i32
    %c0_12 = arith.constant 0 : index
    %20 = arith.index_cast %19 : i32 to index
    %c0_13 = arith.constant 0 : index
    %c0_14 = arith.constant 0 : index
    %21 = vector.load %arg2[%c0_12, %20, %c0_13, %c0_14] : memref<1x44x9x8xbf16, #tpu.memory_space<vmem>>, vector<1x10x8x8xbf16>
    %22 = vector.shape_cast %21 : vector<1x10x8x8xbf16> to vector<10x8x8xbf16>
    %23 = vector.shape_cast %22 : vector<10x8x8xbf16> to vector<80x8xbf16>
    %c0_15 = arith.constant 0 : index
    %c24 = arith.constant 24 : index
    %24 = vector.load %arg9[%c0_15, %c24] : memref<80x72xbf16, #tpu.memory_space<vmem>>, vector<80x8xbf16>
    tpu.vector_store %arg9[%c0_15, %c24], %23 {strides = array<i32>} : memref<80x72xbf16, #tpu.memory_space<vmem>>, vector<80x8xbf16>,
    %c33_i32 = arith.constant 33 : i32
    %25 = arith.addi %0, %c33_i32 : i32
    %c0_16 = arith.constant 0 : index
    %26 = arith.index_cast %25 : i32 to index
    %c0_17 = arith.constant 0 : index
    %c0_18 = arith.constant 0 : index
    %27 = vector.load %arg2[%c0_16, %26, %c0_17, %c0_18] : memref<1x44x9x8xbf16, #tpu.memory_space<vmem>>, vector<1x10x8x8xbf16>
    %28 = vector.shape_cast %27 : vector<1x10x8x8xbf16> to vector<10x8x8xbf16>
    %29 = vector.shape_cast %28 : vector<10x8x8xbf16> to vector<80x8xbf16>
    %c0_19 = arith.constant 0 : index
    %c32 = arith.constant 32 : index
    %30 = vector.load %arg9[%c0_19, %c32] : memref<80x72xbf16, #tpu.memory_space<vmem>>, vector<80x8xbf16>
    tpu.vector_store %arg9[%c0_19, %c32], %29 {strides = array<i32>} : memref<80x72xbf16, #tpu.memory_space<vmem>>, vector<80x8xbf16>,
    %c22_i32_20 = arith.constant 22 : i32
    %31 = arith.addi %0, %c22_i32_20 : i32
    %c0_21 = arith.constant 0 : index
    %32 = arith.index_cast %31 : i32 to index
    %c1_22 = arith.constant 1 : index
    %c0_23 = arith.constant 0 : index
    %33 = vector.load %arg2[%c0_21, %32, %c1_22, %c0_23] : memref<1x44x9x8xbf16, #tpu.memory_space<vmem>>, vector<1x10x8x8xbf16>
    %34 = vector.shape_cast %33 : vector<1x10x8x8xbf16> to vector<10x8x8xbf16>
    %35 = vector.shape_cast %34 : vector<10x8x8xbf16> to vector<80x8xbf16>
    %c0_24 = arith.constant 0 : index
    %c40 = arith.constant 40 : index
    %36 = vector.load %arg9[%c0_24, %c40] : memref<80x72xbf16, #tpu.memory_space<vmem>>, vector<80x8xbf16>
    tpu.vector_store %arg9[%c0_24, %c40], %35 {strides = array<i32>} : memref<80x72xbf16, #tpu.memory_space<vmem>>, vector<80x8xbf16>,
    %c1_i32 = arith.constant 1 : i32
    %37 = arith.addi %0, %c1_i32 : i32
    %c0_25 = arith.constant 0 : index
    %38 = arith.index_cast %37 : i32 to index
    %c0_26 = arith.constant 0 : index
    %c0_27 = arith.constant 0 : index
    %39 = vector.load %arg2[%c0_25, %38, %c0_26, %c0_27] : memref<1x44x9x8xbf16, #tpu.memory_space<vmem>>, vector<1x10x8x8xbf16>
    %40 = vector.shape_cast %39 : vector<1x10x8x8xbf16> to vector<10x8x8xbf16>
    %41 = vector.shape_cast %40 : vector<10x8x8xbf16> to vector<80x8xbf16>
    %c0_28 = arith.constant 0 : index
    %c48 = arith.constant 48 : index
    %42 = vector.load %arg9[%c0_28, %c48] : memref<80x72xbf16, #tpu.memory_space<vmem>>, vector<80x8xbf16>
    tpu.vector_store %arg9[%c0_28, %c48], %41 {strides = array<i32>} : memref<80x72xbf16, #tpu.memory_space<vmem>>, vector<80x8xbf16>,
    %c12_i32 = arith.constant 12 : i32
    %43 = arith.addi %0, %c12_i32 : i32
    %c0_29 = arith.constant 0 : index
    %44 = arith.index_cast %43 : i32 to index
    %c0_30 = arith.constant 0 : index
    %c0_31 = arith.constant 0 : index
    %45 = vector.load %arg2[%c0_29, %44, %c0_30, %c0_31] : memref<1x44x9x8xbf16, #tpu.memory_space<vmem>>, vector<1x10x8x8xbf16>
    %46 = vector.shape_cast %45 : vector<1x10x8x8xbf16> to vector<10x8x8xbf16>
    %47 = vector.shape_cast %46 : vector<10x8x8xbf16> to vector<80x8xbf16>
    %c0_32 = arith.constant 0 : index
    %c56 = arith.constant 56 : index
    %48 = vector.load %arg9[%c0_32, %c56] : memref<80x72xbf16, #tpu.memory_space<vmem>>, vector<80x8xbf16>
    tpu.vector_store %arg9[%c0_32, %c56], %47 {strides = array<i32>} : memref<80x72xbf16, #tpu.memory_space<vmem>>, vector<80x8xbf16>,
    %c1_i32_33 = arith.constant 1 : i32
    %49 = arith.addi %0, %c1_i32_33 : i32
    %c0_34 = arith.constant 0 : index
    %50 = arith.index_cast %49 : i32 to index
    %c1_35 = arith.constant 1 : index
    %c0_36 = arith.constant 0 : index
    %51 = vector.load %arg2[%c0_34, %50, %c1_35, %c0_36] : memref<1x44x9x8xbf16, #tpu.memory_space<vmem>>, vector<1x10x8x8xbf16>
    %52 = vector.shape_cast %51 : vector<1x10x8x8xbf16> to vector<10x8x8xbf16>
    %53 = vector.shape_cast %52 : vector<10x8x8xbf16> to vector<80x8xbf16>
    %c0_37 = arith.constant 0 : index
    %c64 = arith.constant 64 : index
    %54 = vector.load %arg9[%c0_37, %c64] : memref<80x72xbf16, #tpu.memory_space<vmem>>, vector<80x8xbf16>
    tpu.vector_store %arg9[%c0_37, %c64], %53 {strides = array<i32>} : memref<80x72xbf16, #tpu.memory_space<vmem>>, vector<80x8xbf16>,
    %c0_38 = arith.constant 0 : index
    %c0_39 = arith.constant 0 : index
    %55 = vector.load %arg9[%c0_38, %c0_39] : memref<80x72xbf16, #tpu.memory_space<vmem>>, vector<80x72xbf16>
    %c0_40 = arith.constant 0 : index
    %c0_41 = arith.constant 0 : index
    %56 = vector.load %arg3[%c0_40, %c0_41] : memref<72x128xbf16, #tpu.memory_space<vmem>>, vector<72x128xbf16>
    %cst = arith.constant dense<0.000000e+00> : vector<80x128xf32>
    %57 = tpu.matmul %55, %56, %cst {dimension_numbers = #tpu.dot_dimension_numbers<[1], [0], [0], [1], [0, 0, 1, 1], [], []>} : vector<80x72xbf16>, vector<72x128xbf16>, vector<80x128xf32> -> vector<80x128xf32>
    %c0_42 = arith.constant 0 : index
    %c0_43 = arith.constant 0 : index
    %58 = vector.load %arg4[%c0_42, %c0_43] : memref<1x128xf32, #tpu.memory_space<vmem>>, vector<1x128xf32>
    %59 = vector.broadcast %58 : vector<1x128xf32> to vector<80x128xf32>
    %60 = arith.addf %57, %59 : vector<80x128xf32>
    %cst_44 = arith.constant 0.000000e+00 : f32
    %61 = vector.broadcast %cst_44 : f32 to vector<80x128xf32>
    %62 = arith.maximumf %60, %61 : vector<80x128xf32>
    %63 = arith.truncf %62 : vector<80x128xf32> to vector<80x128xbf16>
    %64 = vector.shape_cast %63 : vector<80x128xbf16> to vector<10x8x128xbf16>
    %c0_45 = arith.constant 0 : index
    %c1_46 = arith.constant 1 : index
    %c0_47 = arith.constant 0 : index
    %65 = vector.load %arg8[%c0_45, %c1_46, %c0_47] : memref<10x10x128xbf16, #tpu.memory_space<vmem>>, vector<10x8x128xbf16>
    tpu.vector_store %arg8[%c0_45, %c1_46, %c0_47], %64 {strides = array<i32>} : memref<10x10x128xbf16, #tpu.memory_space<vmem>>, vector<10x8x128xbf16>,
    %cst_48 = arith.constant 0.000000e+00 : bf16
    %66 = vector.broadcast %cst_48 : bf16 to vector<10x128xbf16>
    %c0_49 = arith.constant 0 : index
    %c0_50 = arith.constant 0 : index
    %c0_51 = arith.constant 0 : index
    %67 = vector.load %arg8[%c0_49, %c0_50, %c0_51] : memref<10x10x128xbf16, #tpu.memory_space<vmem>>, vector<10x1x128xbf16>
    %68 = vector.shape_cast %67 : vector<10x1x128xbf16> to vector<10x128xbf16>
    %69 = vector.shape_cast %66 : vector<10x128xbf16> to vector<10x1x128xbf16>
    tpu.vector_store %arg8[%c0_49, %c0_50, %c0_51], %69 {strides = array<i32>} : memref<10x10x128xbf16, #tpu.memory_space<vmem>>, vector<10x1x128xbf16>,
    %c0_52 = arith.constant 0 : index
    %c9 = arith.constant 9 : index
    %c0_53 = arith.constant 0 : index
    %70 = vector.load %arg8[%c0_52, %c9, %c0_53] : memref<10x10x128xbf16, #tpu.memory_space<vmem>>, vector<10x1x128xbf16>
    %71 = vector.shape_cast %70 : vector<10x1x128xbf16> to vector<10x128xbf16>
    %72 = vector.shape_cast %66 : vector<10x128xbf16> to vector<10x1x128xbf16>
    tpu.vector_store %arg8[%c0_52, %c9, %c0_53], %72 {strides = array<i32>} : memref<10x10x128xbf16, #tpu.memory_space<vmem>>, vector<10x1x128xbf16>,
    %c0_i32_54 = arith.constant 0 : i32
    %73 = arith.cmpi eq, %arg1, %c0_i32_54 : i32
    %74 = arith.extui %73 : i1 to i32
    %c0_i32_55 = arith.constant 0 : i32
    %75 = arith.cmpi ne, %74, %c0_i32_55 : i32
    scf.if %75 {
      %cst_108 = arith.constant 0.000000e+00 : bf16
      %119 = vector.broadcast %cst_108 : bf16 to vector<10x128xbf16>
      %c0_109 = arith.constant 0 : index
      %c0_110 = arith.constant 0 : index
      %c0_111 = arith.constant 0 : index
      %120 = vector.load %arg8[%c0_109, %c0_110, %c0_111] : memref<10x10x128xbf16, #tpu.memory_space<vmem>>, vector<1x10x128xbf16>
      %121 = vector.shape_cast %120 : vector<1x10x128xbf16> to vector<10x128xbf16>
      %122 = vector.shape_cast %119 : vector<10x128xbf16> to vector<1x10x128xbf16>
      tpu.vector_store %arg8[%c0_109, %c0_110, %c0_111], %122 {strides = array<i32>} : memref<10x10x128xbf16, #tpu.memory_space<vmem>>, vector<1x10x128xbf16>,
    } else {
    }
    %c0_i32_56 = arith.constant 0 : i32
    %76 = arith.cmpi eq, %arg1, %c0_i32_56 : i32
    %77 = arith.extui %76 : i1 to i32
    %c0_i32_57 = arith.constant 0 : i32
    %78 = arith.cmpi ne, %77, %c0_i32_57 : i32
    scf.if %78 {
      %cst_108 = arith.constant 0.000000e+00 : bf16
      %119 = vector.broadcast %cst_108 : bf16 to vector<10x128xbf16>
      %c9_109 = arith.constant 9 : index
      %c0_110 = arith.constant 0 : index
      %c0_111 = arith.constant 0 : index
      %120 = vector.load %arg8[%c9_109, %c0_110, %c0_111] : memref<10x10x128xbf16, #tpu.memory_space<vmem>>, vector<1x10x128xbf16>
      %121 = vector.shape_cast %120 : vector<1x10x128xbf16> to vector<10x128xbf16>
      %122 = vector.shape_cast %119 : vector<10x128xbf16> to vector<1x10x128xbf16>
      tpu.vector_store %arg8[%c9_109, %c0_110, %c0_111], %122 {strides = array<i32>} : memref<10x10x128xbf16, #tpu.memory_space<vmem>>, vector<1x10x128xbf16>,
    } else {
    }
    %c0_58 = arith.constant 0 : index
    %c0_59 = arith.constant 0 : index
    %c0_60 = arith.constant 0 : index
    %79 = vector.load %arg8[%c0_58, %c0_59, %c0_60] : memref<10x10x128xbf16, #tpu.memory_space<vmem>>, vector<8x8x128xbf16>
    %80 = vector.shape_cast %79 : vector<8x8x128xbf16> to vector<64x128xbf16>
    %c0_61 = arith.constant 0 : index
    %c0_62 = arith.constant 0 : index
    %81 = vector.load %arg10[%c0_61, %c0_62] : memref<64x1160xbf16, #tpu.memory_space<vmem>>, vector<64x128xbf16>
    tpu.vector_store %arg10[%c0_61, %c0_62], %80 {strides = array<i32>} : memref<64x1160xbf16, #tpu.memory_space<vmem>>, vector<64x128xbf16>,
    %c0_63 = arith.constant 0 : index
    %c1_64 = arith.constant 1 : index
    %c0_65 = arith.constant 0 : index
    %82 = vector.load %arg8[%c0_63, %c1_64, %c0_65] : memref<10x10x128xbf16, #tpu.memory_space<vmem>>, vector<8x8x128xbf16>
    %83 = vector.shape_cast %82 : vector<8x8x128xbf16> to vector<64x128xbf16>
    %c0_66 = arith.constant 0 : index
    %c128 = arith.constant 128 : index
    %84 = vector.load %arg10[%c0_66, %c128] : memref<64x1160xbf16, #tpu.memory_space<vmem>>, vector<64x128xbf16>
    tpu.vector_store %arg10[%c0_66, %c128], %83 {strides = array<i32>} : memref<64x1160xbf16, #tpu.memory_space<vmem>>, vector<64x128xbf16>,
    %c0_67 = arith.constant 0 : index
    %c2 = arith.constant 2 : index
    %c0_68 = arith.constant 0 : index
    %85 = vector.load %arg8[%c0_67, %c2, %c0_68] : memref<10x10x128xbf16, #tpu.memory_space<vmem>>, vector<8x8x128xbf16>
    %86 = vector.shape_cast %85 : vector<8x8x128xbf16> to vector<64x128xbf16>
    %c0_69 = arith.constant 0 : index
    %c256 = arith.constant 256 : index
    %87 = vector.load %arg10[%c0_69, %c256] : memref<64x1160xbf16, #tpu.memory_space<vmem>>, vector<64x128xbf16>
    tpu.vector_store %arg10[%c0_69, %c256], %86 {strides = array<i32>} : memref<64x1160xbf16, #tpu.memory_space<vmem>>, vector<64x128xbf16>,
    %c1_70 = arith.constant 1 : index
    %c0_71 = arith.constant 0 : index
    %c0_72 = arith.constant 0 : index
    %88 = vector.load %arg8[%c1_70, %c0_71, %c0_72] : memref<10x10x128xbf16, #tpu.memory_space<vmem>>, vector<8x8x128xbf16>
    %89 = vector.shape_cast %88 : vector<8x8x128xbf16> to vector<64x128xbf16>
    %c0_73 = arith.constant 0 : index
    %c384 = arith.constant 384 : index
    %90 = vector.load %arg10[%c0_73, %c384] : memref<64x1160xbf16, #tpu.memory_space<vmem>>, vector<64x128xbf16>
    tpu.vector_store %arg10[%c0_73, %c384], %89 {strides = array<i32>} : memref<64x1160xbf16, #tpu.memory_space<vmem>>, vector<64x128xbf16>,
    %c1_74 = arith.constant 1 : index
    %c1_75 = arith.constant 1 : index
    %c0_76 = arith.constant 0 : index
    %91 = vector.load %arg8[%c1_74, %c1_75, %c0_76] : memref<10x10x128xbf16, #tpu.memory_space<vmem>>, vector<8x8x128xbf16>
    %92 = vector.shape_cast %91 : vector<8x8x128xbf16> to vector<64x128xbf16>
    %c0_77 = arith.constant 0 : index
    %c512 = arith.constant 512 : index
    %93 = vector.load %arg10[%c0_77, %c512] : memref<64x1160xbf16, #tpu.memory_space<vmem>>, vector<64x128xbf16>
    tpu.vector_store %arg10[%c0_77, %c512], %92 {strides = array<i32>} : memref<64x1160xbf16, #tpu.memory_space<vmem>>, vector<64x128xbf16>,
    %c1_78 = arith.constant 1 : index
    %c2_79 = arith.constant 2 : index
    %c0_80 = arith.constant 0 : index
    %94 = vector.load %arg8[%c1_78, %c2_79, %c0_80] : memref<10x10x128xbf16, #tpu.memory_space<vmem>>, vector<8x8x128xbf16>
    %95 = vector.shape_cast %94 : vector<8x8x128xbf16> to vector<64x128xbf16>
    %c0_81 = arith.constant 0 : index
    %c640 = arith.constant 640 : index
    %96 = vector.load %arg10[%c0_81, %c640] : memref<64x1160xbf16, #tpu.memory_space<vmem>>, vector<64x128xbf16>
    tpu.vector_store %arg10[%c0_81, %c640], %95 {strides = array<i32>} : memref<64x1160xbf16, #tpu.memory_space<vmem>>, vector<64x128xbf16>,
    %c2_82 = arith.constant 2 : index
    %c0_83 = arith.constant 0 : index
    %c0_84 = arith.constant 0 : index
    %97 = vector.load %arg8[%c2_82, %c0_83, %c0_84] : memref<10x10x128xbf16, #tpu.memory_space<vmem>>, vector<8x8x128xbf16>
    %98 = vector.shape_cast %97 : vector<8x8x128xbf16> to vector<64x128xbf16>
    %c0_85 = arith.constant 0 : index
    %c768 = arith.constant 768 : index
    %99 = vector.load %arg10[%c0_85, %c768] : memref<64x1160xbf16, #tpu.memory_space<vmem>>, vector<64x128xbf16>
    tpu.vector_store %arg10[%c0_85, %c768], %98 {strides = array<i32>} : memref<64x1160xbf16, #tpu.memory_space<vmem>>, vector<64x128xbf16>,
    %c2_86 = arith.constant 2 : index
    %c1_87 = arith.constant 1 : index
    %c0_88 = arith.constant 0 : index
    %100 = vector.load %arg8[%c2_86, %c1_87, %c0_88] : memref<10x10x128xbf16, #tpu.memory_space<vmem>>, vector<8x8x128xbf16>
    %101 = vector.shape_cast %100 : vector<8x8x128xbf16> to vector<64x128xbf16>
    %c0_89 = arith.constant 0 : index
    %c896 = arith.constant 896 : index
    %102 = vector.load %arg10[%c0_89, %c896] : memref<64x1160xbf16, #tpu.memory_space<vmem>>, vector<64x128xbf16>
    tpu.vector_store %arg10[%c0_89, %c896], %101 {strides = array<i32>} : memref<64x1160xbf16, #tpu.memory_space<vmem>>, vector<64x128xbf16>,
    %c2_90 = arith.constant 2 : index
    %c2_91 = arith.constant 2 : index
    %c0_92 = arith.constant 0 : index
    %103 = vector.load %arg8[%c2_90, %c2_91, %c0_92] : memref<10x10x128xbf16, #tpu.memory_space<vmem>>, vector<8x8x128xbf16>
    %104 = vector.shape_cast %103 : vector<8x8x128xbf16> to vector<64x128xbf16>
    %c0_93 = arith.constant 0 : index
    %c1024 = arith.constant 1024 : index
    %105 = vector.load %arg10[%c0_93, %c1024] : memref<64x1160xbf16, #tpu.memory_space<vmem>>, vector<64x128xbf16>
    tpu.vector_store %arg10[%c0_93, %c1024], %104 {strides = array<i32>} : memref<64x1160xbf16, #tpu.memory_space<vmem>>, vector<64x128xbf16>,
    %c8_94 = arith.constant 8 : index
    %c32_95 = arith.constant 32 : index
    %106 = vector.load %arg9[%c8_94, %c32_95] : memref<80x72xbf16, #tpu.memory_space<vmem>>, vector<64x8xbf16>
    %c0_96 = arith.constant 0 : index
    %c1152 = arith.constant 1152 : index
    %107 = vector.load %arg10[%c0_96, %c1152] : memref<64x1160xbf16, #tpu.memory_space<vmem>>, vector<64x8xbf16>
    tpu.vector_store %arg10[%c0_96, %c1152], %106 {strides = array<i32>} : memref<64x1160xbf16, #tpu.memory_space<vmem>>, vector<64x8xbf16>,
    %c0_97 = arith.constant 0 : index
    %c0_98 = arith.constant 0 : index
    %108 = vector.load %arg10[%c0_97, %c0_98] : memref<64x1160xbf16, #tpu.memory_space<vmem>>, vector<64x1160xbf16>
    %c0_99 = arith.constant 0 : index
    %c0_100 = arith.constant 0 : index
    %109 = vector.load %arg5[%c0_99, %c0_100] : memref<1160x128xbf16, #tpu.memory_space<vmem>>, vector<1160x128xbf16>
    %cst_101 = arith.constant dense<0.000000e+00> : vector<64x128xf32>
    %110 = tpu.matmul %108, %109, %cst_101 {dimension_numbers = #tpu.dot_dimension_numbers<[1], [0], [0], [1], [0, 0, 1, 1], [], []>} : vector<64x1160xbf16>, vector<1160x128xbf16>, vector<64x128xf32> -> vector<64x128xf32>
    %c0_102 = arith.constant 0 : index
    %c0_103 = arith.constant 0 : index
    %111 = vector.load %arg6[%c0_102, %c0_103] : memref<1x128xf32, #tpu.memory_space<vmem>>, vector<1x128xf32>
    %112 = vector.broadcast %111 : vector<1x128xf32> to vector<64x128xf32>
    %113 = arith.addf %110, %112 : vector<64x128xf32>
    %cst_104 = arith.constant 0.000000e+00 : f32
    %114 = vector.broadcast %cst_104 : f32 to vector<64x128xf32>
    %115 = arith.maximumf %113, %114 : vector<64x128xf32>
    %c0_105 = arith.constant 0 : index
    %c0_106 = arith.constant 0 : index
    %c0_107 = arith.constant 0 : index
    %116 = vector.load %arg7[%c0_105, %c0_106, %c0_107] : memref<1x64x128xf32, #tpu.memory_space<vmem>>, vector<1x64x128xf32>
    %117 = vector.shape_cast %116 : vector<1x64x128xf32> to vector<64x128xf32>
    %118 = vector.shape_cast %115 : vector<64x128xf32> to vector<1x64x128xf32>
    tpu.vector_store %arg7[%c0_105, %c0_106, %c0_107], %118 {strides = array<i32>} : memref<1x64x128xf32, #tpu.memory_space<vmem>>, vector<1x64x128xf32>,
    return
  }
  func.func @transform_0(%arg0: i32, %arg1: i32) -> (i32, i32, i32, i32) {
    %c0_i32 = arith.constant 0 : i32
    %c0_i32_0 = arith.constant 0 : i32
    %c0_i32_1 = arith.constant 0 : i32
    %c0_i32_2 = arith.constant 0 : i32
    return %arg0, %c0_i32, %c0_i32_0, %c0_i32_1 : i32, i32, i32, i32
  }
  func.func @transform_1(%arg0: i32, %arg1: i32) -> (i32, i32) {
    %c0_i32 = arith.constant 0 : i32
    %c0_i32_0 = arith.constant 0 : i32
    %c0_i32_1 = arith.constant 0 : i32
    return %c0_i32, %c0_i32_0 : i32, i32
  }
  func.func @transform_2(%arg0: i32, %arg1: i32) -> (i32, i32) {
    %c0_i32 = arith.constant 0 : i32
    %c0_i32_0 = arith.constant 0 : i32
    %c0_i32_1 = arith.constant 0 : i32
    return %c0_i32, %c0_i32_0 : i32, i32
  }
  func.func @transform_3(%arg0: i32, %arg1: i32) -> (i32, i32) {
    %c0_i32 = arith.constant 0 : i32
    %c0_i32_0 = arith.constant 0 : i32
    %c0_i32_1 = arith.constant 0 : i32
    return %c0_i32, %c0_i32_0 : i32, i32
  }
  func.func @transform_4(%arg0: i32, %arg1: i32) -> (i32, i32) {
    %c0_i32 = arith.constant 0 : i32
    %c0_i32_0 = arith.constant 0 : i32
    %c0_i32_1 = arith.constant 0 : i32
    return %c0_i32, %c0_i32_0 : i32, i32
  }
  func.func @transform_5(%arg0: i32, %arg1: i32) -> (i32, i32, i32) {
    %c0_i32 = arith.constant 0 : i32
    %c0_i32_0 = arith.constant 0 : i32
    return %arg0, %arg1, %c0_i32 : i32, i32, i32
  }
}

</mosaic_0001>

<llo_original>
// kernel: tpu_custom_call.1
$region0: #{tpu_custom_call.1}
  #allocation0 [shape = 'u32[]', space=smem, size = 0x4, offset = 0x4, fixed_abs, tag = 'smem constant byte address 0x4 - core index']
  #allocation1 [shape = 'u32[72,128]{1,0:T(1,128)}', space=vmem, size = 0x9000, scoped, tag = 'internal scratch']
  #allocation2 [shape = 'bf16[10,10,128]{2,1,0:T(8,128)(2,1)}', space=vmem, size = 0xa000, scoped, tag = 'scratch operand']
  #allocation3 [shape = 'bf16[80,72]{1,0:T(8,128)(2,1)}', space=vmem, size = 0x5000, scoped, tag = 'scratch operand']
  #allocation4 [shape = 'bf16[64,1160]{1,0:T(8,128)(2,1)}', space=vmem, size = 0x28000, scoped, tag = 'scratch operand']
  %s0 = inlined_call_operand.vmem [shape: bf16[2,44,9,8], index: 0, kind: input, shape index: {}]
  %s1 = inlined_call_operand.vmem [shape: bf16[72,128], index: 1, kind: input, shape index: {}]
  %s2 = inlined_call_operand.vmem [shape: f32[1,128], index: 2, kind: input, shape index: {}]
  %s3 = inlined_call_operand.vmem [shape: bf16[1160,128], index: 3, kind: input, shape index: {}]
  %s4 = inlined_call_operand.vmem [shape: f32[1,128], index: 4, kind: input, shape index: {}]
  %s5 = inlined_call_operand.hbm [shape: f32[2,64,128], index: 5, kind: output, shape index: {}]
  %s6 = sld [smem:[#allocation0]]
  $region57: #{tpu_custom_call.1} parent=0
    _
  %s8 = ssub.s32 1, %s6
  %s9 = scalar_select 0, %s8, %s6
  $region1: #{tpu_custom_call.1} parent=0
    #allocation5 [shape = 'u8[65536]{0}', space=vmem, size = 0x10000, scoped, tag = 'output window, operand 0']
    #allocation6 [shape = 's32[2]{0}', space=sflag, size = 0x8, scoped, tag = 'scoped memory for tpu_custom_call.1']
    %10 = vsyncpa [#allocation6], 0
    %s11 = scalar_lea.sflag [#allocation6], 1
    %12 = vsyncpa %s11, 0
    loop: start=0, step=1, limit=4
    $region2: #{tpu_custom_call.1} parent=1 // loop_pre_header
      _
    $region3: #{tpu_custom_call.1} parent=1 // loop_header
      %s14 = sphi 0, %s18
      %p15 = scmp.ge.s32.totalorder %s14, 4
      %s21 = sphi 0, %s33
      %s22 = sphi 0, %s29
      %s23 = sphi 0, %s21
      %s24 = sphi 0, %s22
      %s25 = sphi 0, %s23
      %s26 = sphi 0, %s24
      %s36 = sphi 0, %s38
      %s39 = sphi 0, %s36
      %s40 = sphi 0, %s39
      %s56 = sphi 0, %s40
      %s60 = sphi 0, %s60
      %s62 = sphi 0, %s60
      %s63 = sphi 0, %s62
      %s77 = sphi 0, %s63
      %s81 = sphi 0, %s81
      %s83 = sphi 0, %s81
      %s84 = sphi 0, %s83
      %s98 = sphi 0, %s84
      %s102 = sphi 0, %s102
      %s104 = sphi 0, %s102
      %s105 = sphi 0, %s104
      %s119 = sphi 0, %s105
      %s123 = sphi 0, %s123
      %s125 = sphi 0, %s123
      %s126 = sphi 0, %s125
      %s140 = sphi 0, %s126
      %s148 = sphi 0, %s150
      %s151 = sphi 0, %s148
      %s152 = sphi 0, %s151
      %s168 = sphi 0, %s152
    $region4: #{tpu_custom_call.1} parent=1 // loop_header_branch
      %17 = sbr.rel (%p15) target = $region8
    $region5: #{tpu_custom_call.1} parent=1 // loop_body
      %s19 = ssub.s32 %s14, 1
      %s20 = ssub.s32 %s14, 2
      %s27 = sadd.s32 1, %s22
      %p28 = scmp.ge.s32.totalorder %s27, 1
      %s29 = scalar_select %p28, 0, %s27
      %s30 = sadd.s32 1, %s21
      %s31 = scalar_select %p28, %s30, %s21
      %p32 = scmp.ge.s32.totalorder %s31, 2
      %s33 = scalar_select %p32, 0, %s31
      %s34 = ssub.s32 %s21, %s33
      %p35 = scmp.eq.s32.totalorder %s34, 0
      %s37 = sadd.s32 %s36, 1
      %s38 = scalar_select %p35, %s36, %s37
      %p41 = pneg %p35
      %p42 = scmp.eq.s32.totalorder %s14, 1
      %p43 = por %p41, %p42
      %p44 = scmp.ne.s32.totalorder %s36, %s39
      %p45 = scmp.eq.s32.totalorder %s14, 0
      %p46 = por %p44, %p45
      %p47 = scmp.ne.s32.totalorder %s36, %s39
      %p48 = scmp.eq.s32.totalorder %s19, 1
      %p49 = por %p47, %p48
      %p50 = scmp.ne.s32.totalorder %s39, %s40
      %p51 = scmp.eq.s32.totalorder %s19, 0
      %p52 = por %p50, %p51
      %p53 = scmp.ne.s32.totalorder %s39, %s40
      %p54 = scmp.eq.s32.totalorder %s20, 1
      %p55 = por %p53, %p54
      %p57 = scmp.ne.s32.totalorder %s40, %s56
      %p58 = scmp.eq.s32.totalorder %s20, 0
      %p59 = por %p57, %p58
      %s61 = sadd.s32 %s60, 1
      %p64 = scmp.eq.s32.totalorder %s14, 1
      %p65 = scmp.ne.s32.totalorder %s60, %s62
      %p66 = scmp.eq.s32.totalorder %s14, 0
      %p67 = por %p65, %p66
      %p68 = scmp.ne.s32.totalorder %s60, %s62
      %p69 = scmp.eq.s32.totalorder %s19, 1
      %p70 = por %p68, %p69
      %p71 = scmp.ne.s32.totalorder %s62, %s63
      %p72 = scmp.eq.s32.totalorder %s19, 0
      %p73 = por %p71, %p72
      %p74 = scmp.ne.s32.totalorder %s62, %s63
      %p75 = scmp.eq.s32.totalorder %s20, 1
      %p76 = por %p74, %p75
      %p78 = scmp.ne.s32.totalorder %s63, %s77
      %p79 = scmp.eq.s32.totalorder %s20, 0
      %p80 = por %p78, %p79
      %s82 = sadd.s32 %s81, 1
      %p85 = scmp.eq.s32.totalorder %s14, 1
      %p86 = scmp.ne.s32.totalorder %s81, %s83
      %p87 = scmp.eq.s32.totalorder %s14, 0
      %p88 = por %p86, %p87
      %p89 = scmp.ne.s32.totalorder %s81, %s83
      %p90 = scmp.eq.s32.totalorder %s19, 1
      %p91 = por %p89, %p90
      %p92 = scmp.ne.s32.totalorder %s83, %s84
      %p93 = scmp.eq.s32.totalorder %s19, 0
      %p94 = por %p92, %p93
      %p95 = scmp.ne.s32.totalorder %s83, %s84
      %p96 = scmp.eq.s32.totalorder %s20, 1
      %p97 = por %p95, %p96
      %p99 = scmp.ne.s32.totalorder %s84, %s98
      %p100 = scmp.eq.s32.totalorder %s20, 0
      %p101 = por %p99, %p100
      %s103 = sadd.s32 %s102, 1
      %p106 = scmp.eq.s32.totalorder %s14, 1
      %p107 = scmp.ne.s32.totalorder %s102, %s104
      %p108 = scmp.eq.s32.totalorder %s14, 0
      %p109 = por %p107, %p108
      %p110 = scmp.ne.s32.totalorder %s102, %s104
      %p111 = scmp.eq.s32.totalorder %s19, 1
      %p112 = por %p110, %p111
      %p113 = scmp.ne.s32.totalorder %s104, %s105
      %p114 = scmp.eq.s32.totalorder %s19, 0
      %p115 = por %p113, %p114
      %p116 = scmp.ne.s32.totalorder %s104, %s105
      %p117 = scmp.eq.s32.totalorder %s20, 1
      %p118 = por %p116, %p117
      %p120 = scmp.ne.s32.totalorder %s105, %s119
      %p121 = scmp.eq.s32.totalorder %s20, 0
      %p122 = por %p120, %p121
      %s124 = sadd.s32 %s123, 1
      %p127 = scmp.eq.s32.totalorder %s14, 1
      %p128 = scmp.ne.s32.totalorder %s123, %s125
      %p129 = scmp.eq.s32.totalorder %s14, 0
      %p130 = por %p128, %p129
      %p131 = scmp.ne.s32.totalorder %s123, %s125
      %p132 = scmp.eq.s32.totalorder %s19, 1
      %p133 = por %p131, %p132
      %p134 = scmp.ne.s32.totalorder %s125, %s126
      %p135 = scmp.eq.s32.totalorder %s19, 0
      %p136 = por %p134, %p135
      %p137 = scmp.ne.s32.totalorder %s125, %s126
      %p138 = scmp.eq.s32.totalorder %s20, 1
      %p139 = por %p137, %p138
      %p141 = scmp.ne.s32.totalorder %s126, %s140
      %p142 = scmp.eq.s32.totalorder %s20, 0
      %p143 = por %p141, %p142
      %s144 = ssub.s32 %s21, %s33
      %s145 = ssub.s32 %s22, %s29
      %s146 = sor.u32 %s144, %s145
      %p147 = scmp.eq.s32.totalorder %s146, 0
      %s149 = sadd.s32 %s148, 1
      %s150 = scalar_select %p147, %s148, %s149
      %p153 = pneg %p147
      %p154 = scmp.eq.s32.totalorder %s14, 1
      %p155 = por %p153, %p154
      %p156 = scmp.ne.s32.totalorder %s148, %s151
      %p157 = scmp.eq.s32.totalorder %s14, 0
      %p158 = por %p156, %p157
      %p159 = scmp.ne.s32.totalorder %s148, %s151
      %p160 = scmp.eq.s32.totalorder %s19, 1
      %p161 = por %p159, %p160
      %p162 = scmp.ne.s32.totalorder %s151, %s152
      %p163 = scmp.eq.s32.totalorder %s19, 0
      %p164 = por %p162, %p163
      %p165 = scmp.ne.s32.totalorder %s151, %s152
      %p166 = scmp.eq.s32.totalorder %s20, 1
      %p167 = por %p165, %p166
      %p169 = scmp.ne.s32.totalorder %s152, %s168
      %p170 = scmp.eq.s32.totalorder %s20, 0
      %p171 = por %p169, %p170
      %p172 = scmp.le.s32.totalorder 1, %s14
      %p173 = scmp.lt.s32.totalorder %s14, 3
      %p174 = pnand %p172, %p173
      %p175 = pneg %p174
      // Predicated region
      $region9: #{tpu_custom_call.1} parent=5 // pred_check
        _
      $region10: #{tpu_custom_call.1} parent=5 // pred_check_branch
        %177 = sbr.rel (%p174) target = $region12
      $region11: #{tpu_custom_call.1} parent=5 // pred_region
        %s178 = ssub.s32 %s14, 1
        // Predicated region
        $region13: #{tpu_custom_call.1} parent=11 // pred_check
          %p179 = pneg %p73
        $region14: #{tpu_custom_call.1} parent=11 // pred_check_branch
          %181 = sbr.rel (%p179) target = $region16
        $region15: #{tpu_custom_call.1} parent=11 // pred_region
          _
        $region16: #{tpu_custom_call.1} parent=11 // pred_fallthru
          _
        // Predicated region
        $region17: #{tpu_custom_call.1} parent=11 // pred_check
          %p182 = pneg %p94
        $region18: #{tpu_custom_call.1} parent=11 // pred_check_branch
          %184 = sbr.rel (%p182) target = $region20
        $region19: #{tpu_custom_call.1} parent=11 // pred_region
          _
        $region20: #{tpu_custom_call.1} parent=11 // pred_fallthru
          _
        // Predicated region
        $region21: #{tpu_custom_call.1} parent=11 // pred_check
          %p185 = pneg %p115
        $region22: #{tpu_custom_call.1} parent=11 // pred_check_branch
          %187 = sbr.rel (%p185) target = $region24
        $region23: #{tpu_custom_call.1} parent=11 // pred_region
          _
        $region24: #{tpu_custom_call.1} parent=11 // pred_fallthru
          _
        // Predicated region
        $region25: #{tpu_custom_call.1} parent=11 // pred_check
          %p188 = pneg %p136
        $region26: #{tpu_custom_call.1} parent=11 // pred_check_branch
          %190 = sbr.rel (%p188) target = $region28
        $region27: #{tpu_custom_call.1} parent=11 // pred_region
          _
        $region28: #{tpu_custom_call.1} parent=11 // pred_fallthru
          _
      $region12: #{tpu_custom_call.1} parent=5 // pred_fallthru
        _
      %p191 = scmp.lt.s32.totalorder %s14, 2
      // Predicated region
      $region29: #{tpu_custom_call.1} parent=5 // pred_check
        %p192 = pneg %p191
      $region30: #{tpu_custom_call.1} parent=5 // pred_check_branch
        %194 = sbr.rel (%p192) target = $region32
      $region31: #{tpu_custom_call.1} parent=5 // pred_region
        // Predicated region
        $region33: #{tpu_custom_call.1} parent=31 // pred_check
          %p195 = pneg %p46
        $region34: #{tpu_custom_call.1} parent=31 // pred_check_branch
          %197 = sbr.rel (%p195) target = $region36
        $region35: #{tpu_custom_call.1} parent=31 // pred_region
          %p198 = scmp.lt.s32.totalorder %s21, 1
          %s199 = scalar_select %p198, %s21, 1
          %s200 = smul.addr %s199, 88
          %s201 = smul.addr %s200, 4
          %s202 = scalar_lea.vmem %s0, %s201
        $region36: #{tpu_custom_call.1} parent=31 // pred_fallthru
          _
      $region32: #{tpu_custom_call.1} parent=5 // pred_fallthru
        _
      %p203 = scmp.le.s32.totalorder 1, %s14
      %p204 = scmp.lt.s32.totalorder %s14, 3
      %p205 = pnand %p203, %p204
      %p206 = pneg %p205
      // Predicated region
      $region37: #{tpu_custom_call.1} parent=5 // pred_check
        _
      $region38: #{tpu_custom_call.1} parent=5 // pred_check_branch
        %208 = sbr.rel (%p205) target = $region40
      $region39: #{tpu_custom_call.1} parent=5 // pred_region
        %s209 = ssub.s32 %s14, 1
        %p210 = scmp.lt.s32.totalorder %s23, 1
        %s211 = scalar_select %p210, %s23, 1
        %s212 = smul.addr %s211, 88
        %s213 = smul.addr %s212, 4
        %s214 = scalar_lea.vmem %s0, %s213
        %p215 = pneg %p52
        %p216 = pneg %p49
        %p217 = pneg %p73
        %p218 = pneg %p70
        %p219 = pneg %p94
        %p220 = pneg %p91
        %p221 = pneg %p115
        %p222 = pneg %p112
        %p223 = pneg %p136
        %p224 = pneg %p133
        %p225 = pneg %p164
        %p226 = pneg %p161
        %s227 = sand.u32 %s151, 1
        %s228 = scalar_lea.sflag [#allocation6], %s227
        %s229 = sand.u32 %s151, 1
        %s230 = smul.addr %s229, 64
        %s231 = scalar_lea.vmem [#allocation5], %s230
        %p232 = scmp.lt.s32.totalorder %s23, 1
        %s233 = scalar_select %p232, %s23, 1
        %s234 = smul.addr %s233, 88
        %s235 = smul.addr %s234, 4
        %s236 = scalar_lea.vmem %s0, %s235
        %s237 = smul.u32 8, %s24
        %s239 = smul.u32 %s24, 8
        %s240 = smul.u32 %s239, 2
        %s241 = smul.addr %s240, 4
        %s242 = scalar_lea.vmem %s236, %s241
        %v243 = vld [vmem:[%s242] sm:$0xf]
        %v244 = vld [vmem:[%s242 + $0x8] sm:$0xf]
        %v245 = vld [vmem:[%s242 + $0x10] sm:$0xf]
        %v246 = vld [vmem:[%s242 + $0x18] sm:$0xf]
        %v247 = vld [vmem:[%s242 + $0x20] sm:$0xf]
        %v248 = vld [vmem:[%s242 + $0x28] sm:$0xf]
        %v249 = vld [vmem:[%s242 + $0x30] sm:$0xf]
        %v250 = vld [vmem:[%s242 + $0x38] sm:$0xf]
        %v251 = vld [vmem:[%s242 + $0x40] sm:$0xf]
        %v252 = vld [vmem:[%s242 + $0x48] sm:$0xf]
        %vm253 = vcmask 60416
        %254 = vst.msk [vmem:[#allocation3] sm:$0xf] %vm253, %v243
        %255 = vst.msk [vmem:[#allocation3 + $0x4] sm:$0xf] %vm253, %v244
        %256 = vst.msk [vmem:[#allocation3 + $0x8] sm:$0xf] %vm253, %v245
        %257 = vst.msk [vmem:[#allocation3 + $0xc] sm:$0xf] %vm253, %v246
        %258 = vst.msk [vmem:[#allocation3 + $0x10] sm:$0xf] %vm253, %v247
        %259 = vst.msk [vmem:[#allocation3 + $0x14] sm:$0xf] %vm253, %v248
        %260 = vst.msk [vmem:[#allocation3 + $0x18] sm:$0xf] %vm253, %v249
        %261 = vst.msk [vmem:[#allocation3 + $0x1c] sm:$0xf] %vm253, %v250
        %262 = vst.msk [vmem:[#allocation3 + $0x20] sm:$0xf] %vm253, %v251
        %263 = vst.msk [vmem:[#allocation3 + $0x24] sm:$0xf] %vm253, %v252
        %s264 = sadd.s32 %s239, 11
        %s265 = smul.u32 %s264, 2
        %s266 = smul.addr %s265, 4
        %s267 = scalar_lea.vmem %s236, %s266
        %v268 = vld [vmem:[%s267] sm:$0xf]
        %v269 = vld [vmem:[%s267 + $0x8] sm:$0xf]
        %v270 = vld [vmem:[%s267 + $0x10] sm:$0xf]
        %v271 = vld [vmem:[%s267 + $0x18] sm:$0xf]
        %v272 = vld [vmem:[%s267 + $0x20] sm:$0xf]
        %v273 = vld [vmem:[%s267 + $0x28] sm:$0xf]
        %v274 = vld [vmem:[%s267 + $0x30] sm:$0xf]
        %v275 = vld [vmem:[%s267 + $0x38] sm:$0xf]
        %v276 = vld [vmem:[%s267 + $0x40] sm:$0xf]
        %v277 = vld [vmem:[%s267 + $0x48] sm:$0xf]
        %288 = vrot.lane.b32.xlu0 %v268, 8
        %v289 = vpop.permute.xlu0 %288
        %290 = vrot.lane.b32.xlu0 %v269, 8
        %v291 = vpop.permute.xlu0 %290
        %292 = vrot.lane.b32.xlu0 %v270, 8
        %v293 = vpop.permute.xlu0 %292
        %294 = vrot.lane.b32.xlu0 %v271, 8
        %v295 = vpop.permute.xlu0 %294
        %296 = vrot.lane.b32.xlu0 %v272, 8
        %v297 = vpop.permute.xlu0 %296
        %298 = vrot.lane.b32.xlu0 %v273, 8
        %v299 = vpop.permute.xlu0 %298
        %300 = vrot.lane.b32.xlu0 %v274, 8
        %v301 = vpop.permute.xlu0 %300
        %302 = vrot.lane.b32.xlu0 %v275, 8
        %v303 = vpop.permute.xlu0 %302
        %304 = vrot.lane.b32.xlu0 %v276, 8
        %v305 = vpop.permute.xlu0 %304
        %306 = vrot.lane.b32.xlu0 %v277, 8
        %v307 = vpop.permute.xlu0 %306
        %vm318 = vcmask 126016
        %319 = vst.msk [vmem:[#allocation3] sm:$0xf] %vm318, %v289
        %320 = vst.msk [vmem:[#allocation3 + $0x4] sm:$0xf] %vm318, %v291
        %321 = vst.msk [vmem:[#allocation3 + $0x8] sm:$0xf] %vm318, %v293
        %322 = vst.msk [vmem:[#allocation3 + $0xc] sm:$0xf] %vm318, %v295
        %323 = vst.msk [vmem:[#allocation3 + $0x10] sm:$0xf] %vm318, %v297
        %324 = vst.msk [vmem:[#allocation3 + $0x14] sm:$0xf] %vm318, %v299
        %325 = vst.msk [vmem:[#allocation3 + $0x18] sm:$0xf] %vm318, %v301
        %326 = vst.msk [vmem:[#allocation3 + $0x1c] sm:$0xf] %vm318, %v303
        %327 = vst.msk [vmem:[#allocation3 + $0x20] sm:$0xf] %vm318, %v305
        %328 = vst.msk [vmem:[#allocation3 + $0x24] sm:$0xf] %vm318, %v307
        %v329 = vld [vmem:[%s242] sm:$0xf]
        %v330 = vld [vmem:[%s242 + $0x4] sm:$0x1]
        %v331 = vld [vmem:[%s242 + $0x8] sm:$0xf]
        %v332 = vld [vmem:[%s242 + $0xc] sm:$0x1]
        %v333 = vld [vmem:[%s242 + $0x10] sm:$0xf]
        %v334 = vld [vmem:[%s242 + $0x14] sm:$0x1]
        %v335 = vld [vmem:[%s242 + $0x18] sm:$0xf]
        %v336 = vld [vmem:[%s242 + $0x1c] sm:$0x1]
        %v337 = vld [vmem:[%s242 + $0x20] sm:$0xf]
        %v338 = vld [vmem:[%s242 + $0x24] sm:$0x1]
        %v339 = vld [vmem:[%s242 + $0x28] sm:$0xf]
        %v340 = vld [vmem:[%s242 + $0x2c] sm:$0x1]
        %v341 = vld [vmem:[%s242 + $0x30] sm:$0xf]
        %v342 = vld [vmem:[%s242 + $0x34] sm:$0x1]
        %v343 = vld [vmem:[%s242 + $0x38] sm:$0xf]
        %v344 = vld [vmem:[%s242 + $0x3c] sm:$0x1]
        %v345 = vld [vmem:[%s242 + $0x40] sm:$0xf]
        %v346 = vld [vmem:[%s242 + $0x44] sm:$0x1]
        %v347 = vld [vmem:[%s242 + $0x48] sm:$0xf]
        %v348 = vld [vmem:[%s242 + $0x4c] sm:$0x1]
        %vm349 = vsmask.f32 3328
        %vm350 = vsmask.f32 7440
        %vm351 = vmor %vm349, %vm350
        %v353 = vshrl.u32 %v329, 16
        %v355 = vrot.slane %v353, 4
        %v356 = vshll.u32 %v329, 16
        %v358 = vrot.slane %v356, 5
        %v359 = vor.u32 %v355, %v358
        %v360 = vrot.slane %v359, 4
        %v362 = vshll.u32 %v330, 16
        %v364 = vrot.slane %v362, 5
        %v365 = vsel %vm351, %v360, %v364
        %v367 = vshrl.u32 %v331, 16
        %v369 = vrot.slane %v367, 4
        %v370 = vshll.u32 %v331, 16
        %v372 = vrot.slane %v370, 5
        %v373 = vor.u32 %v369, %v372
        %v374 = vrot.slane %v373, 4
        %v376 = vshll.u32 %v332, 16
        %v378 = vrot.slane %v376, 5
        %v379 = vsel %vm351, %v374, %v378
        %v381 = vshrl.u32 %v333, 16
        %v383 = vrot.slane %v381, 4
        %v384 = vshll.u32 %v333, 16
        %v386 = vrot.slane %v384, 5
        %v387 = vor.u32 %v383, %v386
        %v388 = vrot.slane %v387, 4
        %v390 = vshll.u32 %v334, 16
        %v392 = vrot.slane %v390, 5
        %v393 = vsel %vm351, %v388, %v392
        %v395 = vshrl.u32 %v335, 16
        %v397 = vrot.slane %v395, 4
        %v398 = vshll.u32 %v335, 16
        %v400 = vrot.slane %v398, 5
        %v401 = vor.u32 %v397, %v400
        %v402 = vrot.slane %v401, 4
        %v404 = vshll.u32 %v336, 16
        %v406 = vrot.slane %v404, 5
        %v407 = vsel %vm351, %v402, %v406
        %v409 = vshrl.u32 %v337, 16
        %v411 = vrot.slane %v409, 4
        %v412 = vshll.u32 %v337, 16
        %v414 = vrot.slane %v412, 5
        %v415 = vor.u32 %v411, %v414
        %v416 = vrot.slane %v415, 4
        %v418 = vshll.u32 %v338, 16
        %v420 = vrot.slane %v418, 5
        %v421 = vsel %vm351, %v416, %v420
        %v423 = vshrl.u32 %v339, 16
        %v425 = vrot.slane %v423, 4
        %v426 = vshll.u32 %v339, 16
        %v428 = vrot.slane %v426, 5
        %v429 = vor.u32 %v425, %v428
        %v430 = vrot.slane %v429, 4
        %v432 = vshll.u32 %v340, 16
        %v434 = vrot.slane %v432, 5
        %v435 = vsel %vm351, %v430, %v434
        %v437 = vshrl.u32 %v341, 16
        %v439 = vrot.slane %v437, 4
        %v440 = vshll.u32 %v341, 16
        %v442 = vrot.slane %v440, 5
        %v443 = vor.u32 %v439, %v442
        %v444 = vrot.slane %v443, 4
        %v446 = vshll.u32 %v342, 16
        %v448 = vrot.slane %v446, 5
        %v449 = vsel %vm351, %v444, %v448
        %v451 = vshrl.u32 %v343, 16
        %v453 = vrot.slane %v451, 4
        %v454 = vshll.u32 %v343, 16
        %v456 = vrot.slane %v454, 5
        %v457 = vor.u32 %v453, %v456
        %v458 = vrot.slane %v457, 4
        %v460 = vshll.u32 %v344, 16
        %v462 = vrot.slane %v460, 5
        %v463 = vsel %vm351, %v458, %v462
        %v465 = vshrl.u32 %v345, 16
        %v467 = vrot.slane %v465, 4
        %v468 = vshll.u32 %v345, 16
        %v470 = vrot.slane %v468, 5
        %v471 = vor.u32 %v467, %v470
        %v472 = vrot.slane %v471, 4
        %v474 = vshll.u32 %v346, 16
        %v476 = vrot.slane %v474, 5
        %v477 = vsel %vm351, %v472, %v476
        %v479 = vshrl.u32 %v347, 16
        %v481 = vrot.slane %v479, 4
        %v482 = vshll.u32 %v347, 16
        %v484 = vrot.slane %v482, 5
        %v485 = vor.u32 %v481, %v484
        %v486 = vrot.slane %v485, 4
        %v488 = vshll.u32 %v348, 16
        %v490 = vrot.slane %v488, 5
        %v491 = vsel %vm351, %v486, %v490
        %492 = vrot.lane.b32.xlu0 %v365, 16
        %v493 = vpop.permute.xlu0 %492
        %494 = vrot.lane.b32.xlu0 %v379, 16
        %v495 = vpop.permute.xlu0 %494
        %496 = vrot.lane.b32.xlu0 %v393, 16
        %v497 = vpop.permute.xlu0 %496
        %498 = vrot.lane.b32.xlu0 %v407, 16
        %v499 = vpop.permute.xlu0 %498
        %500 = vrot.lane.b32.xlu0 %v421, 16
        %v501 = vpop.permute.xlu0 %500
        %502 = vrot.lane.b32.xlu0 %v435, 16
        %v503 = vpop.permute.xlu0 %502
        %504 = vrot.lane.b32.xlu0 %v449, 16
        %v505 = vpop.permute.xlu0 %504
        %506 = vrot.lane.b32.xlu0 %v463, 16
        %v507 = vpop.permute.xlu0 %506
        %508 = vrot.lane.b32.xlu0 %v477, 16
        %v509 = vpop.permute.xlu0 %508
        %510 = vrot.lane.b32.xlu0 %v491, 16
        %v511 = vpop.permute.xlu0 %510
        %vm522 = vcmask 191616
        %523 = vst.msk [vmem:[#allocation3] sm:$0xf] %vm522, %v493
        %524 = vst.msk [vmem:[#allocation3 + $0x4] sm:$0xf] %vm522, %v495
        %525 = vst.msk [vmem:[#allocation3 + $0x8] sm:$0xf] %vm522, %v497
        %526 = vst.msk [vmem:[#allocation3 + $0xc] sm:$0xf] %vm522, %v499
        %527 = vst.msk [vmem:[#allocation3 + $0x10] sm:$0xf] %vm522, %v501
        %528 = vst.msk [vmem:[#allocation3 + $0x14] sm:$0xf] %vm522, %v503
        %529 = vst.msk [vmem:[#allocation3 + $0x18] sm:$0xf] %vm522, %v505
        %530 = vst.msk [vmem:[#allocation3 + $0x1c] sm:$0xf] %vm522, %v507
        %531 = vst.msk [vmem:[#allocation3 + $0x20] sm:$0xf] %vm522, %v509
        %532 = vst.msk [vmem:[#allocation3 + $0x24] sm:$0xf] %vm522, %v511
        %s533 = sadd.s32 %s239, 22
        %s534 = smul.u32 %s533, 2
        %s535 = smul.addr %s534, 4
        %s536 = scalar_lea.vmem %s236, %s535
        %v537 = vld [vmem:[%s536] sm:$0xf]
        %v538 = vld [vmem:[%s536 + $0x8] sm:$0xf]
        %v539 = vld [vmem:[%s536 + $0x10] sm:$0xf]
        %v540 = vld [vmem:[%s536 + $0x18] sm:$0xf]
        %v541 = vld [vmem:[%s536 + $0x20] sm:$0xf]
        %v542 = vld [vmem:[%s536 + $0x28] sm:$0xf]
        %v543 = vld [vmem:[%s536 + $0x30] sm:$0xf]
        %v544 = vld [vmem:[%s536 + $0x38] sm:$0xf]
        %v545 = vld [vmem:[%s536 + $0x40] sm:$0xf]
        %v546 = vld [vmem:[%s536 + $0x48] sm:$0xf]
        %557 = vrot.lane.b32.xlu0 %v537, 24
        %v558 = vpop.permute.xlu0 %557
        %559 = vrot.lane.b32.xlu0 %v538, 24
        %v560 = vpop.permute.xlu0 %559
        %561 = vrot.lane.b32.xlu0 %v539, 24
        %v562 = vpop.permute.xlu0 %561
        %563 = vrot.lane.b32.xlu0 %v540, 24
        %v564 = vpop.permute.xlu0 %563
        %565 = vrot.lane.b32.xlu0 %v541, 24
        %v566 = vpop.permute.xlu0 %565
        %567 = vrot.lane.b32.xlu0 %v542, 24
        %v568 = vpop.permute.xlu0 %567
        %569 = vrot.lane.b32.xlu0 %v543, 24
        %v570 = vpop.permute.xlu0 %569
        %571 = vrot.lane.b32.xlu0 %v544, 24
        %v572 = vpop.permute.xlu0 %571
        %573 = vrot.lane.b32.xlu0 %v545, 24
        %v574 = vpop.permute.xlu0 %573
        %575 = vrot.lane.b32.xlu0 %v546, 24
        %v576 = vpop.permute.xlu0 %575
        %vm587 = vcmask 257216
        %588 = vst.msk [vmem:[#allocation3] sm:$0xf] %vm587, %v558
        %589 = vst.msk [vmem:[#allocation3 + $0x4] sm:$0xf] %vm587, %v560
        %590 = vst.msk [vmem:[#allocation3 + $0x8] sm:$0xf] %vm587, %v562
        %591 = vst.msk [vmem:[#allocation3 + $0xc] sm:$0xf] %vm587, %v564
        %592 = vst.msk [vmem:[#allocation3 + $0x10] sm:$0xf] %vm587, %v566
        %593 = vst.msk [vmem:[#allocation3 + $0x14] sm:$0xf] %vm587, %v568
        %594 = vst.msk [vmem:[#allocation3 + $0x18] sm:$0xf] %vm587, %v570
        %595 = vst.msk [vmem:[#allocation3 + $0x1c] sm:$0xf] %vm587, %v572
        %596 = vst.msk [vmem:[#allocation3 + $0x20] sm:$0xf] %vm587, %v574
        %597 = vst.msk [vmem:[#allocation3 + $0x24] sm:$0xf] %vm587, %v576
        %s598 = sadd.s32 %s239, 33
        %s599 = smul.u32 %s598, 2
        %s600 = smul.addr %s599, 4
        %s601 = scalar_lea.vmem %s236, %s600
        %v602 = vld [vmem:[%s601] sm:$0xf]
        %v603 = vld [vmem:[%s601 + $0x8] sm:$0xf]
        %v604 = vld [vmem:[%s601 + $0x10] sm:$0xf]
        %v605 = vld [vmem:[%s601 + $0x18] sm:$0xf]
        %v606 = vld [vmem:[%s601 + $0x20] sm:$0xf]
        %v607 = vld [vmem:[%s601 + $0x28] sm:$0xf]
        %v608 = vld [vmem:[%s601 + $0x30] sm:$0xf]
        %v609 = vld [vmem:[%s601 + $0x38] sm:$0xf]
        %v610 = vld [vmem:[%s601 + $0x40] sm:$0xf]
        %v611 = vld [vmem:[%s601 + $0x48] sm:$0xf]
        %622 = vrot.lane.b32.xlu0 %v602, 32
        %v623 = vpop.permute.xlu0 %622
        %624 = vrot.lane.b32.xlu0 %v603, 32
        %v625 = vpop.permute.xlu0 %624
        %626 = vrot.lane.b32.xlu0 %v604, 32
        %v627 = vpop.permute.xlu0 %626
        %628 = vrot.lane.b32.xlu0 %v605, 32
        %v629 = vpop.permute.xlu0 %628
        %630 = vrot.lane.b32.xlu0 %v606, 32
        %v631 = vpop.permute.xlu0 %630
        %632 = vrot.lane.b32.xlu0 %v607, 32
        %v633 = vpop.permute.xlu0 %632
        %634 = vrot.lane.b32.xlu0 %v608, 32
        %v635 = vpop.permute.xlu0 %634
        %636 = vrot.lane.b32.xlu0 %v609, 32
        %v637 = vpop.permute.xlu0 %636
        %638 = vrot.lane.b32.xlu0 %v610, 32
        %v639 = vpop.permute.xlu0 %638
        %640 = vrot.lane.b32.xlu0 %v611, 32
        %v641 = vpop.permute.xlu0 %640
        %vm652 = vcmask 322816
        %653 = vst.msk [vmem:[#allocation3] sm:$0xf] %vm652, %v623
        %654 = vst.msk [vmem:[#allocation3 + $0x4] sm:$0xf] %vm652, %v625
        %655 = vst.msk [vmem:[#allocation3 + $0x8] sm:$0xf] %vm652, %v627
        %656 = vst.msk [vmem:[#allocation3 + $0xc] sm:$0xf] %vm652, %v629
        %657 = vst.msk [vmem:[#allocation3 + $0x10] sm:$0xf] %vm652, %v631
        %658 = vst.msk [vmem:[#allocation3 + $0x14] sm:$0xf] %vm652, %v633
        %659 = vst.msk [vmem:[#allocation3 + $0x18] sm:$0xf] %vm652, %v635
        %660 = vst.msk [vmem:[#allocation3 + $0x1c] sm:$0xf] %vm652, %v637
        %661 = vst.msk [vmem:[#allocation3 + $0x20] sm:$0xf] %vm652, %v639
        %662 = vst.msk [vmem:[#allocation3 + $0x24] sm:$0xf] %vm652, %v641
        %v663 = vld [vmem:[%s536] sm:$0xf]
        %v664 = vld [vmem:[%s536 + $0x4] sm:$0x1]
        %v665 = vld [vmem:[%s536 + $0x8] sm:$0xf]
        %v666 = vld [vmem:[%s536 + $0xc] sm:$0x1]
        %v667 = vld [vmem:[%s536 + $0x10] sm:$0xf]
        %v668 = vld [vmem:[%s536 + $0x14] sm:$0x1]
        %v669 = vld [vmem:[%s536 + $0x18] sm:$0xf]
        %v670 = vld [vmem:[%s536 + $0x1c] sm:$0x1]
        %v671 = vld [vmem:[%s536 + $0x20] sm:$0xf]
        %v672 = vld [vmem:[%s536 + $0x24] sm:$0x1]
        %v673 = vld [vmem:[%s536 + $0x28] sm:$0xf]
        %v674 = vld [vmem:[%s536 + $0x2c] sm:$0x1]
        %v675 = vld [vmem:[%s536 + $0x30] sm:$0xf]
        %v676 = vld [vmem:[%s536 + $0x34] sm:$0x1]
        %v677 = vld [vmem:[%s536 + $0x38] sm:$0xf]
        %v678 = vld [vmem:[%s536 + $0x3c] sm:$0x1]
        %v679 = vld [vmem:[%s536 + $0x40] sm:$0xf]
        %v680 = vld [vmem:[%s536 + $0x44] sm:$0x1]
        %v681 = vld [vmem:[%s536 + $0x48] sm:$0xf]
        %v682 = vld [vmem:[%s536 + $0x4c] sm:$0x1]
        %v684 = vshrl.u32 %v663, 16
        %v686 = vrot.slane %v684, 4
        %v687 = vshll.u32 %v663, 16
        %v689 = vrot.slane %v687, 5
        %v690 = vor.u32 %v686, %v689
        %v691 = vrot.slane %v690, 4
        %v693 = vshll.u32 %v664, 16
        %v695 = vrot.slane %v693, 5
        %v696 = vsel %vm351, %v691, %v695
        %v698 = vshrl.u32 %v665, 16
        %v700 = vrot.slane %v698, 4
        %v701 = vshll.u32 %v665, 16
        %v703 = vrot.slane %v701, 5
        %v704 = vor.u32 %v700, %v703
        %v705 = vrot.slane %v704, 4
        %v707 = vshll.u32 %v666, 16
        %v709 = vrot.slane %v707, 5
        %v710 = vsel %vm351, %v705, %v709
        %v712 = vshrl.u32 %v667, 16
        %v714 = vrot.slane %v712, 4
        %v715 = vshll.u32 %v667, 16
        %v717 = vrot.slane %v715, 5
        %v718 = vor.u32 %v714, %v717
        %v719 = vrot.slane %v718, 4
        %v721 = vshll.u32 %v668, 16
        %v723 = vrot.slane %v721, 5
        %v724 = vsel %vm351, %v719, %v723
        %v726 = vshrl.u32 %v669, 16
        %v728 = vrot.slane %v726, 4
        %v729 = vshll.u32 %v669, 16
        %v731 = vrot.slane %v729, 5
        %v732 = vor.u32 %v728, %v731
        %v733 = vrot.slane %v732, 4
        %v735 = vshll.u32 %v670, 16
        %v737 = vrot.slane %v735, 5
        %v738 = vsel %vm351, %v733, %v737
        %v740 = vshrl.u32 %v671, 16
        %v742 = vrot.slane %v740, 4
        %v743 = vshll.u32 %v671, 16
        %v745 = vrot.slane %v743, 5
        %v746 = vor.u32 %v742, %v745
        %v747 = vrot.slane %v746, 4
        %v749 = vshll.u32 %v672, 16
        %v751 = vrot.slane %v749, 5
        %v752 = vsel %vm351, %v747, %v751
        %v754 = vshrl.u32 %v673, 16
        %v756 = vrot.slane %v754, 4
        %v757 = vshll.u32 %v673, 16
        %v759 = vrot.slane %v757, 5
        %v760 = vor.u32 %v756, %v759
        %v761 = vrot.slane %v760, 4
        %v763 = vshll.u32 %v674, 16
        %v765 = vrot.slane %v763, 5
        %v766 = vsel %vm351, %v761, %v765
        %v768 = vshrl.u32 %v675, 16
        %v770 = vrot.slane %v768, 4
        %v771 = vshll.u32 %v675, 16
        %v773 = vrot.slane %v771, 5
        %v774 = vor.u32 %v770, %v773
        %v775 = vrot.slane %v774, 4
        %v777 = vshll.u32 %v676, 16
        %v779 = vrot.slane %v777, 5
        %v780 = vsel %vm351, %v775, %v779
        %v782 = vshrl.u32 %v677, 16
        %v784 = vrot.slane %v782, 4
        %v785 = vshll.u32 %v677, 16
        %v787 = vrot.slane %v785, 5
        %v788 = vor.u32 %v784, %v787
        %v789 = vrot.slane %v788, 4
        %v791 = vshll.u32 %v678, 16
        %v793 = vrot.slane %v791, 5
        %v794 = vsel %vm351, %v789, %v793
        %v796 = vshrl.u32 %v679, 16
        %v798 = vrot.slane %v796, 4
        %v799 = vshll.u32 %v679, 16
        %v801 = vrot.slane %v799, 5
        %v802 = vor.u32 %v798, %v801
        %v803 = vrot.slane %v802, 4
        %v805 = vshll.u32 %v680, 16
        %v807 = vrot.slane %v805, 5
        %v808 = vsel %vm351, %v803, %v807
        %v810 = vshrl.u32 %v681, 16
        %v812 = vrot.slane %v810, 4
        %v813 = vshll.u32 %v681, 16
        %v815 = vrot.slane %v813, 5
        %v816 = vor.u32 %v812, %v815
        %v817 = vrot.slane %v816, 4
        %v819 = vshll.u32 %v682, 16
        %v821 = vrot.slane %v819, 5
        %v822 = vsel %vm351, %v817, %v821
        %823 = vrot.lane.b32.xlu0 %v696, 40
        %v824 = vpop.permute.xlu0 %823
        %825 = vrot.lane.b32.xlu0 %v710, 40
        %v826 = vpop.permute.xlu0 %825
        %827 = vrot.lane.b32.xlu0 %v724, 40
        %v828 = vpop.permute.xlu0 %827
        %829 = vrot.lane.b32.xlu0 %v738, 40
        %v830 = vpop.permute.xlu0 %829
        %831 = vrot.lane.b32.xlu0 %v752, 40
        %v832 = vpop.permute.xlu0 %831
        %833 = vrot.lane.b32.xlu0 %v766, 40
        %v834 = vpop.permute.xlu0 %833
        %835 = vrot.lane.b32.xlu0 %v780, 40
        %v836 = vpop.permute.xlu0 %835
        %837 = vrot.lane.b32.xlu0 %v794, 40
        %v838 = vpop.permute.xlu0 %837
        %839 = vrot.lane.b32.xlu0 %v808, 40
        %v840 = vpop.permute.xlu0 %839
        %841 = vrot.lane.b32.xlu0 %v822, 40
        %v842 = vpop.permute.xlu0 %841
        %vm853 = vcmask 388416
        %854 = vst.msk [vmem:[#allocation3] sm:$0xf] %vm853, %v824
        %855 = vst.msk [vmem:[#allocation3 + $0x4] sm:$0xf] %vm853, %v826
        %856 = vst.msk [vmem:[#allocation3 + $0x8] sm:$0xf] %vm853, %v828
        %857 = vst.msk [vmem:[#allocation3 + $0xc] sm:$0xf] %vm853, %v830
        %858 = vst.msk [vmem:[#allocation3 + $0x10] sm:$0xf] %vm853, %v832
        %859 = vst.msk [vmem:[#allocation3 + $0x14] sm:$0xf] %vm853, %v834
        %860 = vst.msk [vmem:[#allocation3 + $0x18] sm:$0xf] %vm853, %v836
        %861 = vst.msk [vmem:[#allocation3 + $0x1c] sm:$0xf] %vm853, %v838
        %862 = vst.msk [vmem:[#allocation3 + $0x20] sm:$0xf] %vm853, %v840
        %863 = vst.msk [vmem:[#allocation3 + $0x24] sm:$0xf] %vm853, %v842
        %s864 = sadd.s32 %s239, 1
        %s865 = smul.u32 %s864, 2
        %s866 = smul.addr %s865, 4
        %s867 = scalar_lea.vmem %s236, %s866
        %v868 = vld [vmem:[%s867] sm:$0xf]
        %v869 = vld [vmem:[%s867 + $0x8] sm:$0xf]
        %v870 = vld [vmem:[%s867 + $0x10] sm:$0xf]
        %v871 = vld [vmem:[%s867 + $0x18] sm:$0xf]
        %v872 = vld [vmem:[%s867 + $0x20] sm:$0xf]
        %v873 = vld [vmem:[%s867 + $0x28] sm:$0xf]
        %v874 = vld [vmem:[%s867 + $0x30] sm:$0xf]
        %v875 = vld [vmem:[%s867 + $0x38] sm:$0xf]
        %v876 = vld [vmem:[%s867 + $0x40] sm:$0xf]
        %v877 = vld [vmem:[%s867 + $0x48] sm:$0xf]
        %888 = vrot.lane.b32.xlu0 %v868, 48
        %v889 = vpop.permute.xlu0 %888
        %890 = vrot.lane.b32.xlu0 %v869, 48
        %v891 = vpop.permute.xlu0 %890
        %892 = vrot.lane.b32.xlu0 %v870, 48
        %v893 = vpop.permute.xlu0 %892
        %894 = vrot.lane.b32.xlu0 %v871, 48
        %v895 = vpop.permute.xlu0 %894
        %896 = vrot.lane.b32.xlu0 %v872, 48
        %v897 = vpop.permute.xlu0 %896
        %898 = vrot.lane.b32.xlu0 %v873, 48
        %v899 = vpop.permute.xlu0 %898
        %900 = vrot.lane.b32.xlu0 %v874, 48
        %v901 = vpop.permute.xlu0 %900
        %902 = vrot.lane.b32.xlu0 %v875, 48
        %v903 = vpop.permute.xlu0 %902
        %904 = vrot.lane.b32.xlu0 %v876, 48
        %v905 = vpop.permute.xlu0 %904
        %906 = vrot.lane.b32.xlu0 %v877, 48
        %v907 = vpop.permute.xlu0 %906
        %vm918 = vcmask 454016
        %919 = vst.msk [vmem:[#allocation3] sm:$0xf] %vm918, %v889
        %920 = vst.msk [vmem:[#allocation3 + $0x4] sm:$0xf] %vm918, %v891
        %921 = vst.msk [vmem:[#allocation3 + $0x8] sm:$0xf] %vm918, %v893
        %922 = vst.msk [vmem:[#allocation3 + $0xc] sm:$0xf] %vm918, %v895
        %923 = vst.msk [vmem:[#allocation3 + $0x10] sm:$0xf] %vm918, %v897
        %924 = vst.msk [vmem:[#allocation3 + $0x14] sm:$0xf] %vm918, %v899
        %925 = vst.msk [vmem:[#allocation3 + $0x18] sm:$0xf] %vm918, %v901
        %926 = vst.msk [vmem:[#allocation3 + $0x1c] sm:$0xf] %vm918, %v903
        %927 = vst.msk [vmem:[#allocation3 + $0x20] sm:$0xf] %vm918, %v905
        %928 = vst.msk [vmem:[#allocation3 + $0x24] sm:$0xf] %vm918, %v907
        %s929 = sadd.s32 %s239, 12
        %s930 = smul.u32 %s929, 2
        %s931 = smul.addr %s930, 4
        %s932 = scalar_lea.vmem %s236, %s931
        %v933 = vld [vmem:[%s932] sm:$0xf]
        %v934 = vld [vmem:[%s932 + $0x8] sm:$0xf]
        %v935 = vld [vmem:[%s932 + $0x10] sm:$0xf]
        %v936 = vld [vmem:[%s932 + $0x18] sm:$0xf]
        %v937 = vld [vmem:[%s932 + $0x20] sm:$0xf]
        %v938 = vld [vmem:[%s932 + $0x28] sm:$0xf]
        %v939 = vld [vmem:[%s932 + $0x30] sm:$0xf]
        %v940 = vld [vmem:[%s932 + $0x38] sm:$0xf]
        %v941 = vld [vmem:[%s932 + $0x40] sm:$0xf]
        %v942 = vld [vmem:[%s932 + $0x48] sm:$0xf]
        %953 = vrot.lane.b32.xlu0 %v933, 56
        %v954 = vpop.permute.xlu0 %953
        %955 = vrot.lane.b32.xlu0 %v934, 56
        %v956 = vpop.permute.xlu0 %955
        %957 = vrot.lane.b32.xlu0 %v935, 56
        %v958 = vpop.permute.xlu0 %957
        %959 = vrot.lane.b32.xlu0 %v936, 56
        %v960 = vpop.permute.xlu0 %959
        %961 = vrot.lane.b32.xlu0 %v937, 56
        %v962 = vpop.permute.xlu0 %961
        %963 = vrot.lane.b32.xlu0 %v938, 56
        %v964 = vpop.permute.xlu0 %963
        %965 = vrot.lane.b32.xlu0 %v939, 56
        %v966 = vpop.permute.xlu0 %965
        %967 = vrot.lane.b32.xlu0 %v940, 56
        %v968 = vpop.permute.xlu0 %967
        %969 = vrot.lane.b32.xlu0 %v941, 56
        %v970 = vpop.permute.xlu0 %969
        %971 = vrot.lane.b32.xlu0 %v942, 56
        %v972 = vpop.permute.xlu0 %971
        %vm983 = vcmask 519616
        %984 = vst.msk [vmem:[#allocation3] sm:$0xf] %vm983, %v954
        %985 = vst.msk [vmem:[#allocation3 + $0x4] sm:$0xf] %vm983, %v956
        %986 = vst.msk [vmem:[#allocation3 + $0x8] sm:$0xf] %vm983, %v958
        %987 = vst.msk [vmem:[#allocation3 + $0xc] sm:$0xf] %vm983, %v960
        %988 = vst.msk [vmem:[#allocation3 + $0x10] sm:$0xf] %vm983, %v962
        %989 = vst.msk [vmem:[#allocation3 + $0x14] sm:$0xf] %vm983, %v964
        %990 = vst.msk [vmem:[#allocation3 + $0x18] sm:$0xf] %vm983, %v966
        %991 = vst.msk [vmem:[#allocation3 + $0x1c] sm:$0xf] %vm983, %v968
        %992 = vst.msk [vmem:[#allocation3 + $0x20] sm:$0xf] %vm983, %v970
        %993 = vst.msk [vmem:[#allocation3 + $0x24] sm:$0xf] %vm983, %v972
        %v994 = vld [vmem:[%s867] sm:$0xf]
        %v995 = vld [vmem:[%s867 + $0x4] sm:$0x1]
        %v996 = vld [vmem:[%s867 + $0x8] sm:$0xf]
        %v997 = vld [vmem:[%s867 + $0xc] sm:$0x1]
        %v998 = vld [vmem:[%s867 + $0x10] sm:$0xf]
        %v999 = vld [vmem:[%s867 + $0x14] sm:$0x1]
        %v1000 = vld [vmem:[%s867 + $0x18] sm:$0xf]
        %v1001 = vld [vmem:[%s867 + $0x1c] sm:$0x1]
        %v1002 = vld [vmem:[%s867 + $0x20] sm:$0xf]
        %v1003 = vld [vmem:[%s867 + $0x24] sm:$0x1]
        %v1004 = vld [vmem:[%s867 + $0x28] sm:$0xf]
        %v1005 = vld [vmem:[%s867 + $0x2c] sm:$0x1]
        %v1006 = vld [vmem:[%s867 + $0x30] sm:$0xf]
        %v1007 = vld [vmem:[%s867 + $0x34] sm:$0x1]
        %v1008 = vld [vmem:[%s867 + $0x38] sm:$0xf]
        %v1009 = vld [vmem:[%s867 + $0x3c] sm:$0x1]
        %v1010 = vld [vmem:[%s867 + $0x40] sm:$0xf]
        %v1011 = vld [vmem:[%s867 + $0x44] sm:$0x1]
        %v1012 = vld [vmem:[%s867 + $0x48] sm:$0xf]
        %v1013 = vld [vmem:[%s867 + $0x4c] sm:$0x1]
        %v1015 = vshrl.u32 %v994, 16
        %v1017 = vrot.slane %v1015, 4
        %v1018 = vshll.u32 %v994, 16
        %v1020 = vrot.slane %v1018, 5
        %v1021 = vor.u32 %v1017, %v1020
        %v1022 = vrot.slane %v1021, 4
        %v1024 = vshll.u32 %v995, 16
        %v1026 = vrot.slane %v1024, 5
        %v1027 = vsel %vm351, %v1022, %v1026
        %v1029 = vshrl.u32 %v996, 16
        %v1031 = vrot.slane %v1029, 4
        %v1032 = vshll.u32 %v996, 16
        %v1034 = vrot.slane %v1032, 5
        %v1035 = vor.u32 %v1031, %v1034
        %v1036 = vrot.slane %v1035, 4
        %v1038 = vshll.u32 %v997, 16
        %v1040 = vrot.slane %v1038, 5
        %v1041 = vsel %vm351, %v1036, %v1040
        %v1043 = vshrl.u32 %v998, 16
        %v1045 = vrot.slane %v1043, 4
        %v1046 = vshll.u32 %v998, 16
        %v1048 = vrot.slane %v1046, 5
        %v1049 = vor.u32 %v1045, %v1048
        %v1050 = vrot.slane %v1049, 4
        %v1052 = vshll.u32 %v999, 16
        %v1054 = vrot.slane %v1052, 5
        %v1055 = vsel %vm351, %v1050, %v1054
        %v1057 = vshrl.u32 %v1000, 16
        %v1059 = vrot.slane %v1057, 4
        %v1060 = vshll.u32 %v1000, 16
        %v1062 = vrot.slane %v1060, 5
        %v1063 = vor.u32 %v1059, %v1062
        %v1064 = vrot.slane %v1063, 4
        %v1066 = vshll.u32 %v1001, 16
        %v1068 = vrot.slane %v1066, 5
        %v1069 = vsel %vm351, %v1064, %v1068
        %v1071 = vshrl.u32 %v1002, 16
        %v1073 = vrot.slane %v1071, 4
        %v1074 = vshll.u32 %v1002, 16
        %v1076 = vrot.slane %v1074, 5
        %v1077 = vor.u32 %v1073, %v1076
        %v1078 = vrot.slane %v1077, 4
        %v1080 = vshll.u32 %v1003, 16
        %v1082 = vrot.slane %v1080, 5
        %v1083 = vsel %vm351, %v1078, %v1082
        %v1085 = vshrl.u32 %v1004, 16
        %v1087 = vrot.slane %v1085, 4
        %v1088 = vshll.u32 %v1004, 16
        %v1090 = vrot.slane %v1088, 5
        %v1091 = vor.u32 %v1087, %v1090
        %v1092 = vrot.slane %v1091, 4
        %v1094 = vshll.u32 %v1005, 16
        %v1096 = vrot.slane %v1094, 5
        %v1097 = vsel %vm351, %v1092, %v1096
        %v1099 = vshrl.u32 %v1006, 16
        %v1101 = vrot.slane %v1099, 4
        %v1102 = vshll.u32 %v1006, 16
        %v1104 = vrot.slane %v1102, 5
        %v1105 = vor.u32 %v1101, %v1104
        %v1106 = vrot.slane %v1105, 4
        %v1108 = vshll.u32 %v1007, 16
        %v1110 = vrot.slane %v1108, 5
        %v1111 = vsel %vm351, %v1106, %v1110
        %v1113 = vshrl.u32 %v1008, 16
        %v1115 = vrot.slane %v1113, 4
        %v1116 = vshll.u32 %v1008, 16
        %v1118 = vrot.slane %v1116, 5
        %v1119 = vor.u32 %v1115, %v1118
        %v1120 = vrot.slane %v1119, 4
        %v1122 = vshll.u32 %v1009, 16
        %v1124 = vrot.slane %v1122, 5
        %v1125 = vsel %vm351, %v1120, %v1124
        %v1127 = vshrl.u32 %v1010, 16
        %v1129 = vrot.slane %v1127, 4
        %v1130 = vshll.u32 %v1010, 16
        %v1132 = vrot.slane %v1130, 5
        %v1133 = vor.u32 %v1129, %v1132
        %v1134 = vrot.slane %v1133, 4
        %v1136 = vshll.u32 %v1011, 16
        %v1138 = vrot.slane %v1136, 5
        %v1139 = vsel %vm351, %v1134, %v1138
        %v1141 = vshrl.u32 %v1012, 16
        %v1143 = vrot.slane %v1141, 4
        %v1144 = vshll.u32 %v1012, 16
        %v1146 = vrot.slane %v1144, 5
        %v1147 = vor.u32 %v1143, %v1146
        %v1148 = vrot.slane %v1147, 4
        %v1150 = vshll.u32 %v1013, 16
        %v1152 = vrot.slane %v1150, 5
        %v1153 = vsel %vm351, %v1148, %v1152
        %1154 = vrot.lane.b32.xlu0 %v1027, 64
        %v1155 = vpop.permute.xlu0 %1154
        %1156 = vrot.lane.b32.xlu0 %v1041, 64
        %v1157 = vpop.permute.xlu0 %1156
        %1158 = vrot.lane.b32.xlu0 %v1055, 64
        %v1159 = vpop.permute.xlu0 %1158
        %1160 = vrot.lane.b32.xlu0 %v1069, 64
        %v1161 = vpop.permute.xlu0 %1160
        %1162 = vrot.lane.b32.xlu0 %v1083, 64
        %v1163 = vpop.permute.xlu0 %1162
        %1164 = vrot.lane.b32.xlu0 %v1097, 64
        %v1165 = vpop.permute.xlu0 %1164
        %1166 = vrot.lane.b32.xlu0 %v1111, 64
        %v1167 = vpop.permute.xlu0 %1166
        %1168 = vrot.lane.b32.xlu0 %v1125, 64
        %v1169 = vpop.permute.xlu0 %1168
        %1170 = vrot.lane.b32.xlu0 %v1139, 64
        %v1171 = vpop.permute.xlu0 %1170
        %1172 = vrot.lane.b32.xlu0 %v1153, 64
        %v1173 = vpop.permute.xlu0 %1172
        %vm1184 = vcmask 585216
        %1185 = vst.msk [vmem:[#allocation3] sm:$0xf] %vm1184, %v1155
        %1186 = vst.msk [vmem:[#allocation3 + $0x4] sm:$0xf] %vm1184, %v1157
        %1187 = vst.msk [vmem:[#allocation3 + $0x8] sm:$0xf] %vm1184, %v1159
        %1188 = vst.msk [vmem:[#allocation3 + $0xc] sm:$0xf] %vm1184, %v1161
        %1189 = vst.msk [vmem:[#allocation3 + $0x10] sm:$0xf] %vm1184, %v1163
        %1190 = vst.msk [vmem:[#allocation3 + $0x14] sm:$0xf] %vm1184, %v1165
        %1191 = vst.msk [vmem:[#allocation3 + $0x18] sm:$0xf] %vm1184, %v1167
        %1192 = vst.msk [vmem:[#allocation3 + $0x1c] sm:$0xf] %vm1184, %v1169
        %1193 = vst.msk [vmem:[#allocation3 + $0x20] sm:$0xf] %vm1184, %v1171
        %1194 = vst.msk [vmem:[#allocation3 + $0x24] sm:$0xf] %vm1184, %v1173
        %v1195 = vld [vmem:[#allocation3] sm:$0xf]
        %v1196 = vld [vmem:[#allocation3 + $0x4] sm:$0xf]
        %v1197 = vld [vmem:[#allocation3 + $0x8] sm:$0xf]
        %v1198 = vld [vmem:[#allocation3 + $0xc] sm:$0xf]
        %v1199 = vld [vmem:[#allocation3 + $0x10] sm:$0xf]
        %v1200 = vld [vmem:[#allocation3 + $0x14] sm:$0xf]
        %v1201 = vld [vmem:[#allocation3 + $0x18] sm:$0xf]
        %v1202 = vld [vmem:[#allocation3 + $0x1c] sm:$0xf]
        %v1203 = vld [vmem:[#allocation3 + $0x20] sm:$0xf]
        %v1204 = vld [vmem:[#allocation3 + $0x24] sm:$0xf]
        %v1205 = vld [vmem:[%s1] sm:$0xf]
        %v1206 = vld [vmem:[%s1 + $0x4] sm:$0xf]
        %v1207 = vld [vmem:[%s1 + $0x8] sm:$0xf]
        %v1208 = vld [vmem:[%s1 + $0xc] sm:$0xf]
        %v1209 = vld [vmem:[%s1 + $0x10] sm:$0xf]
        %v1210 = vld [vmem:[%s1 + $0x14] sm:$0xf]
        %v1211 = vld [vmem:[%s1 + $0x18] sm:$0xf]
        %v1212 = vld [vmem:[%s1 + $0x1c] sm:$0xf]
        %v1213 = vld [vmem:[%s1 + $0x20] sm:$0xf]
        %v1214 = vld [vmem:[%s2] sm:$0x1]
        %v1216 = vperm.slane %v1214, 0
        %v1228 = vunpack.c.l.b16 %v1195
        %v1229 = vunpack.c.l.b16 %v1196
        %v1230 = vunpack.c.l.b16 %v1197
        %v1231 = vunpack.c.l.b16 %v1198
        %v1232 = vunpack.c.l.b16 %v1199
        %v1233 = vunpack.c.l.b16 %v1200
        %v1234 = vunpack.c.l.b16 %v1201
        %v1235 = vunpack.c.l.b16 %v1202
        %v1236 = vunpack.c.l.b16 %v1203
        %v1237 = vunpack.c.l.b16 %v1204
        %v1238 = vpack.c.b16 %v1229, %v1228
        %v1239 = vpack.c.b16 %v1231, %v1230
        %v1240 = vpack.c.b16 %v1233, %v1232
        %v1241 = vpack.c.b16 %v1235, %v1234
        %v1242 = vpack.c.b16 %v1237, %v1236
        %v1252 = vunpack.c.l.b16 %v1205
        %v1253 = vunpack.c.l.b16 %v1206
        %v1254 = vunpack.c.l.b16 %v1207
        %v1255 = vunpack.c.l.b16 %v1208
        %v1256 = vunpack.c.l.b16 %v1209
        %v1257 = vunpack.c.l.b16 %v1210
        %v1258 = vunpack.c.l.b16 %v1211
        %v1259 = vunpack.c.l.b16 %v1212
        %v1260 = vunpack.c.l.b16 %v1213
        %v1261 = vpack.c.b16 %v1253, %v1252
        %v1262 = vpack.c.b16 %v1255, %v1254
        %v1263 = vpack.c.b16 %v1257, %v1256
        %v1264 = vpack.c.b16 %v1259, %v1258
        %v1265 = vpack.c.b16 %v1260, %v1260
        %vm1270 = vcmask 588800
        %v1272 = vsel %vm1270, %v1238, 0
        %v1275 = vsel %vm1270, %v1239, 0
        %v1278 = vsel %vm1270, %v1240, 0
        %v1281 = vsel %vm1270, %v1241, 0
        %v1284 = vsel %vm1270, %v1242, 0
        %vm1286 = vcmask 1043456
        %v1288 = vsel %vm1286, %v1265, 0
        %1290 = vmatpush.bf16.msra.mxu0 0
        %1291 = vmatpush.bf16.msra.mxu0 0
        %1292 = vmatpush.bf16.msra.mxu0 0
        %1293 = vmatpush.bf16.msra.mxu0 %v1288
        %1294 = vmatpush.bf16.msra.mxu0 %v1264
        %1295 = vmatpush.bf16.msra.mxu0 %v1263
        %1296 = vmatpush.bf16.msra.mxu0 %v1262
        %1297 = vmatpush.bf16.msra.mxu0 %v1261
        %1298 = vmatmul.bf16.gmra.mxu0 %v1272
        %v1299 = vpop.f32.mrf.mxu0
        %v1300 = vadd.f32 %v1216, %v1299
        %v1301 = vpop.f32.mrf.mxu0
        %v1302 = vadd.f32 %v1216, %v1301
        %1303 = vmatmul.bf16.gmra.mxu0 %v1275
        %v1304 = vpop.f32.mrf.mxu0
        %v1305 = vadd.f32 %v1216, %v1304
        %v1306 = vpop.f32.mrf.mxu0
        %v1307 = vadd.f32 %v1216, %v1306
        %1308 = vmatmul.bf16.gmra.mxu0 %v1278
        %v1309 = vpop.f32.mrf.mxu0
        %v1310 = vadd.f32 %v1216, %v1309
        %v1311 = vpop.f32.mrf.mxu0
        %v1312 = vadd.f32 %v1216, %v1311
        %1313 = vmatmul.bf16.gmra.mxu0 %v1281
        %v1314 = vpop.f32.mrf.mxu0
        %v1315 = vadd.f32 %v1216, %v1314
        %v1316 = vpop.f32.mrf.mxu0
        %v1317 = vadd.f32 %v1216, %v1316
        %1318 = vmatmul.bf16.gmra.mxu0 %v1284
        %v1319 = vpop.f32.mrf.mxu0
        %v1320 = vadd.f32 %v1216, %v1319
        %v1321 = vpop.f32.mrf.mxu0
        %v1322 = vadd.f32 %v1216, %v1321
        %1323 = vdwg.mxu0
        %v1324 = vmax.f32 %v1300, 0.0
        %v1325 = vmax.f32 %v1302, 0.0
        %v1326 = vmax.f32 %v1305, 0.0
        %v1327 = vmax.f32 %v1307, 0.0
        %v1328 = vmax.f32 %v1310, 0.0
        %v1329 = vmax.f32 %v1312, 0.0
        %v1330 = vmax.f32 %v1315, 0.0
        %v1331 = vmax.f32 %v1317, 0.0
        %v1332 = vmax.f32 %v1320, 0.0
        %v1333 = vmax.f32 %v1322, 0.0
        %v1334 = vpack.c.bf16 %v1324, %v1324
        %v1335 = vpack.c.bf16 %v1325, %v1325
        %v1336 = vpack.c.bf16 %v1326, %v1326
        %v1337 = vpack.c.bf16 %v1327, %v1327
        %v1338 = vpack.c.bf16 %v1328, %v1328
        %v1339 = vpack.c.bf16 %v1329, %v1329
        %v1340 = vpack.c.bf16 %v1330, %v1330
        %v1341 = vpack.c.bf16 %v1331, %v1331
        %v1342 = vpack.c.bf16 %v1332, %v1332
        %v1343 = vpack.c.bf16 %v1333, %v1333
        %v1345 = vshrl.u32 %v1334, 16
        %v1347 = vrot.slane %v1345, 7
        %v1348 = vshll.u32 %v1334, 16
        %v1350 = vor.u32 %v1347, %v1348
        %v1351 = vrot.slane %v1347, 4
        %v1353 = vshrl.u32 %v1335, 16
        %v1355 = vrot.slane %v1353, 7
        %v1356 = vshll.u32 %v1335, 16
        %v1358 = vor.u32 %v1355, %v1356
        %v1359 = vrot.slane %v1355, 4
        %v1361 = vshrl.u32 %v1336, 16
        %v1363 = vrot.slane %v1361, 7
        %v1364 = vshll.u32 %v1336, 16
        %v1366 = vor.u32 %v1363, %v1364
        %v1367 = vrot.slane %v1363, 4
        %v1369 = vshrl.u32 %v1337, 16
        %v1371 = vrot.slane %v1369, 7
        %v1372 = vshll.u32 %v1337, 16
        %v1374 = vor.u32 %v1371, %v1372
        %v1375 = vrot.slane %v1371, 4
        %v1377 = vshrl.u32 %v1338, 16
        %v1379 = vrot.slane %v1377, 7
        %v1380 = vshll.u32 %v1338, 16
        %v1382 = vor.u32 %v1379, %v1380
        %v1383 = vrot.slane %v1379, 4
        %v1385 = vshrl.u32 %v1339, 16
        %v1387 = vrot.slane %v1385, 7
        %v1388 = vshll.u32 %v1339, 16
        %v1390 = vor.u32 %v1387, %v1388
        %v1391 = vrot.slane %v1387, 4
        %v1393 = vshrl.u32 %v1340, 16
        %v1395 = vrot.slane %v1393, 7
        %v1396 = vshll.u32 %v1340, 16
        %v1398 = vor.u32 %v1395, %v1396
        %v1399 = vrot.slane %v1395, 4
        %v1401 = vshrl.u32 %v1341, 16
        %v1403 = vrot.slane %v1401, 7
        %v1404 = vshll.u32 %v1341, 16
        %v1406 = vor.u32 %v1403, %v1404
        %v1407 = vrot.slane %v1403, 4
        %v1409 = vshrl.u32 %v1342, 16
        %v1411 = vrot.slane %v1409, 7
        %v1412 = vshll.u32 %v1342, 16
        %v1414 = vor.u32 %v1411, %v1412
        %v1415 = vrot.slane %v1411, 4
        %v1417 = vshrl.u32 %v1343, 16
        %v1419 = vrot.slane %v1417, 7
        %v1420 = vshll.u32 %v1343, 16
        %v1422 = vor.u32 %v1419, %v1420
        %v1423 = vrot.slane %v1419, 4
        %vm1444 = vcmask 1043456
        %vm1445 = vsmask.f32 7938
        %vm1446 = vmand %vm1444, %vm1445
        %v1447 = vld [vmem:[#allocation2] sm:$0xf]
        %v1448 = vsel %vm1446, %v1350, %v1447
        %1449 = vst [vmem:[#allocation2] sm:$0xf] %v1448
        %vm1450 = vcmask 1040384
        %vm1451 = vsmask.f32 256
        %vm1452 = vmand %vm1450, %vm1451
        %v1453 = vld [vmem:[#allocation2 + $0x4] sm:$0x1]
        %v1454 = vsel %vm1452, %v1351, %v1453
        %1455 = vst [vmem:[#allocation2 + $0x4] sm:$0x1] %v1454
        %v1456 = vld [vmem:[#allocation2 + $0x8] sm:$0xf]
        %v1457 = vsel %vm1446, %v1358, %v1456
        %1458 = vst [vmem:[#allocation2 + $0x8] sm:$0xf] %v1457
        %v1459 = vld [vmem:[#allocation2 + $0xc] sm:$0x1]
        %v1460 = vsel %vm1452, %v1359, %v1459
        %1461 = vst [vmem:[#allocation2 + $0xc] sm:$0x1] %v1460
        %v1462 = vld [vmem:[#allocation2 + $0x10] sm:$0xf]
        %v1463 = vsel %vm1446, %v1366, %v1462
        %1464 = vst [vmem:[#allocation2 + $0x10] sm:$0xf] %v1463
        %v1465 = vld [vmem:[#allocation2 + $0x14] sm:$0x1]
        %v1466 = vsel %vm1452, %v1367, %v1465
        %1467 = vst [vmem:[#allocation2 + $0x14] sm:$0x1] %v1466
        %v1468 = vld [vmem:[#allocation2 + $0x18] sm:$0xf]
        %v1469 = vsel %vm1446, %v1374, %v1468
        %1470 = vst [vmem:[#allocation2 + $0x18] sm:$0xf] %v1469
        %v1471 = vld [vmem:[#allocation2 + $0x1c] sm:$0x1]
        %v1472 = vsel %vm1452, %v1375, %v1471
        %1473 = vst [vmem:[#allocation2 + $0x1c] sm:$0x1] %v1472
        %v1474 = vld [vmem:[#allocation2 + $0x20] sm:$0xf]
        %v1475 = vsel %vm1446, %v1382, %v1474
        %1476 = vst [vmem:[#allocation2 + $0x20] sm:$0xf] %v1475
        %v1477 = vld [vmem:[#allocation2 + $0x24] sm:$0x1]
        %v1478 = vsel %vm1452, %v1383, %v1477
        %1479 = vst [vmem:[#allocation2 + $0x24] sm:$0x1] %v1478
        %v1480 = vld [vmem:[#allocation2 + $0x28] sm:$0xf]
        %v1481 = vsel %vm1446, %v1390, %v1480
        %1482 = vst [vmem:[#allocation2 + $0x28] sm:$0xf] %v1481
        %v1483 = vld [vmem:[#allocation2 + $0x2c] sm:$0x1]
        %v1484 = vsel %vm1452, %v1391, %v1483
        %1485 = vst [vmem:[#allocation2 + $0x2c] sm:$0x1] %v1484
        %v1486 = vld [vmem:[#allocation2 + $0x30] sm:$0xf]
        %v1487 = vsel %vm1446, %v1398, %v1486
        %1488 = vst [vmem:[#allocation2 + $0x30] sm:$0xf] %v1487
        %v1489 = vld [vmem:[#allocation2 + $0x34] sm:$0x1]
        %v1490 = vsel %vm1452, %v1399, %v1489
        %1491 = vst [vmem:[#allocation2 + $0x34] sm:$0x1] %v1490
        %v1492 = vld [vmem:[#allocation2 + $0x38] sm:$0xf]
        %v1493 = vsel %vm1446, %v1406, %v1492
        %1494 = vst [vmem:[#allocation2 + $0x38] sm:$0xf] %v1493
        %v1495 = vld [vmem:[#allocation2 + $0x3c] sm:$0x1]
        %v1496 = vsel %vm1452, %v1407, %v1495
        %1497 = vst [vmem:[#allocation2 + $0x3c] sm:$0x1] %v1496
        %v1498 = vld [vmem:[#allocation2 + $0x40] sm:$0xf]
        %v1499 = vsel %vm1446, %v1414, %v1498
        %1500 = vst [vmem:[#allocation2 + $0x40] sm:$0xf] %v1499
        %v1501 = vld [vmem:[#allocation2 + $0x44] sm:$0x1]
        %v1502 = vsel %vm1452, %v1415, %v1501
        %1503 = vst [vmem:[#allocation2 + $0x44] sm:$0x1] %v1502
        %v1504 = vld [vmem:[#allocation2 + $0x48] sm:$0xf]
        %v1505 = vsel %vm1446, %v1422, %v1504
        %1506 = vst [vmem:[#allocation2 + $0x48] sm:$0xf] %v1505
        %v1507 = vld [vmem:[#allocation2 + $0x4c] sm:$0x1]
        %v1508 = vsel %vm1452, %v1423, %v1507
        %1509 = vst [vmem:[#allocation2 + $0x4c] sm:$0x1] %v1508
        %v1510 = vld [vmem:[#allocation2] sm:$0x1]
        %v1511 = vsel %vm1452, 0, %v1510
        %1512 = vst [vmem:[#allocation2] sm:$0x1] %v1511
        %v1513 = vld [vmem:[#allocation2 + $0x8] sm:$0x1]
        %v1514 = vsel %vm1452, 0, %v1513
        %1515 = vst [vmem:[#allocation2 + $0x8] sm:$0x1] %v1514
        %v1516 = vld [vmem:[#allocation2 + $0x10] sm:$0x1]
        %v1517 = vsel %vm1452, 0, %v1516
        %1518 = vst [vmem:[#allocation2 + $0x10] sm:$0x1] %v1517
        %v1519 = vld [vmem:[#allocation2 + $0x18] sm:$0x1]
        %v1520 = vsel %vm1452, 0, %v1519
        %1521 = vst [vmem:[#allocation2 + $0x18] sm:$0x1] %v1520
        %v1522 = vld [vmem:[#allocation2 + $0x20] sm:$0x1]
        %v1523 = vsel %vm1452, 0, %v1522
        %1524 = vst [vmem:[#allocation2 + $0x20] sm:$0x1] %v1523
        %v1525 = vld [vmem:[#allocation2 + $0x28] sm:$0x1]
        %v1526 = vsel %vm1452, 0, %v1525
        %1527 = vst [vmem:[#allocation2 + $0x28] sm:$0x1] %v1526
        %v1528 = vld [vmem:[#allocation2 + $0x30] sm:$0x1]
        %v1529 = vsel %vm1452, 0, %v1528
        %1530 = vst [vmem:[#allocation2 + $0x30] sm:$0x1] %v1529
        %v1531 = vld [vmem:[#allocation2 + $0x38] sm:$0x1]
        %v1532 = vsel %vm1452, 0, %v1531
        %1533 = vst [vmem:[#allocation2 + $0x38] sm:$0x1] %v1532
        %v1534 = vld [vmem:[#allocation2 + $0x40] sm:$0x1]
        %v1535 = vsel %vm1452, 0, %v1534
        %1536 = vst [vmem:[#allocation2 + $0x40] sm:$0x1] %v1535
        %v1537 = vld [vmem:[#allocation2 + $0x48] sm:$0x1]
        %v1538 = vsel %vm1452, 0, %v1537
        %1539 = vst [vmem:[#allocation2 + $0x48] sm:$0x1] %v1538
        %vm1540 = vmand %vm1450, %vm1445
        %v1541 = vld [vmem:[#allocation2 + $0x4] sm:$0x1]
        %v1542 = vsel %vm1540, 0, %v1541
        %1543 = vst [vmem:[#allocation2 + $0x4] sm:$0x1] %v1542
        %v1544 = vld [vmem:[#allocation2 + $0xc] sm:$0x1]
        %v1545 = vsel %vm1540, 0, %v1544
        %1546 = vst [vmem:[#allocation2 + $0xc] sm:$0x1] %v1545
        %v1547 = vld [vmem:[#allocation2 + $0x14] sm:$0x1]
        %v1548 = vsel %vm1540, 0, %v1547
        %1549 = vst [vmem:[#allocation2 + $0x14] sm:$0x1] %v1548
        %v1550 = vld [vmem:[#allocation2 + $0x1c] sm:$0x1]
        %v1551 = vsel %vm1540, 0, %v1550
        %1552 = vst [vmem:[#allocation2 + $0x1c] sm:$0x1] %v1551
        %v1553 = vld [vmem:[#allocation2 + $0x24] sm:$0x1]
        %v1554 = vsel %vm1540, 0, %v1553
        %1555 = vst [vmem:[#allocation2 + $0x24] sm:$0x1] %v1554
        %v1556 = vld [vmem:[#allocation2 + $0x2c] sm:$0x1]
        %v1557 = vsel %vm1540, 0, %v1556
        %1558 = vst [vmem:[#allocation2 + $0x2c] sm:$0x1] %v1557
        %v1559 = vld [vmem:[#allocation2 + $0x34] sm:$0x1]
        %v1560 = vsel %vm1540, 0, %v1559
        %1561 = vst [vmem:[#allocation2 + $0x34] sm:$0x1] %v1560
        %v1562 = vld [vmem:[#allocation2 + $0x3c] sm:$0x1]
        %v1563 = vsel %vm1540, 0, %v1562
        %1564 = vst [vmem:[#allocation2 + $0x3c] sm:$0x1] %v1563
        %v1565 = vld [vmem:[#allocation2 + $0x44] sm:$0x1]
        %v1566 = vsel %vm1540, 0, %v1565
        %1567 = vst [vmem:[#allocation2 + $0x44] sm:$0x1] %v1566
        %v1568 = vld [vmem:[#allocation2 + $0x4c] sm:$0x1]
        %v1569 = vsel %vm1540, 0, %v1568
        %1570 = vst [vmem:[#allocation2 + $0x4c] sm:$0x1] %v1569
        %p1571 = scmp.eq.s32.totalorder %s24, 0
        // Predicated region
        $region41: #{tpu_custom_call.1} parent=39 // pred_check
          %p1572 = pneg %p1571
        $region42: #{tpu_custom_call.1} parent=39 // pred_check_branch
          %1574 = sbr.rel (%p1572) target = $region44
        $region43: #{tpu_custom_call.1} parent=39 // pred_region
          %1575 = vst [vmem:[#allocation2] sm:$0xf] 0
          %1576 = vst [vmem:[#allocation2 + $0x4] sm:$0x1] 0
          %s1577 = scalar_lea.vmem [#allocation2], 72
          %1578 = vst [vmem:[%s1577] sm:$0xf] 0
          %1579 = vst [vmem:[%s1577 + $0x4] sm:$0x1] 0
        $region44: #{tpu_custom_call.1} parent=39 // pred_fallthru
          _
        %v1580 = vld [vmem:[#allocation2] sm:$0xf]
        %v1581 = vld [vmem:[#allocation2 + $0x8] sm:$0xf]
        %v1582 = vld [vmem:[#allocation2 + $0x10] sm:$0xf]
        %v1583 = vld [vmem:[#allocation2 + $0x18] sm:$0xf]
        %v1584 = vld [vmem:[#allocation2 + $0x20] sm:$0xf]
        %v1585 = vld [vmem:[#allocation2 + $0x28] sm:$0xf]
        %v1586 = vld [vmem:[#allocation2 + $0x30] sm:$0xf]
        %v1587 = vld [vmem:[#allocation2 + $0x38] sm:$0xf]
        %1588 = vst [vmem:[#allocation4] sm:$0xf] %v1580
        %1589 = vst [vmem:[#allocation4 + $0x28] sm:$0xf] %v1581
        %1590 = vst [vmem:[#allocation4 + $0x50] sm:$0xf] %v1582
        %1591 = vst [vmem:[#allocation4 + $0x78] sm:$0xf] %v1583
        %1592 = vst [vmem:[#allocation4 + $0xa0] sm:$0xf] %v1584
        %1593 = vst [vmem:[#allocation4 + $0xc8] sm:$0xf] %v1585
        %1594 = vst [vmem:[#allocation4 + $0xf0] sm:$0xf] %v1586
        %1595 = vst [vmem:[#allocation4 + $0x118] sm:$0xf] %v1587
        %v1596 = vld [vmem:[#allocation2] sm:$0xf]
        %v1597 = vld [vmem:[#allocation2 + $0x4] sm:$0x1]
        %v1598 = vld [vmem:[#allocation2 + $0x8] sm:$0xf]
        %v1599 = vld [vmem:[#allocation2 + $0xc] sm:$0x1]
        %v1600 = vld [vmem:[#allocation2 + $0x10] sm:$0xf]
        %v1601 = vld [vmem:[#allocation2 + $0x14] sm:$0x1]
        %v1602 = vld [vmem:[#allocation2 + $0x18] sm:$0xf]
        %v1603 = vld [vmem:[#allocation2 + $0x1c] sm:$0x1]
        %v1604 = vld [vmem:[#allocation2 + $0x20] sm:$0xf]
        %v1605 = vld [vmem:[#allocation2 + $0x24] sm:$0x1]
        %v1606 = vld [vmem:[#allocation2 + $0x28] sm:$0xf]
        %v1607 = vld [vmem:[#allocation2 + $0x2c] sm:$0x1]
        %v1608 = vld [vmem:[#allocation2 + $0x30] sm:$0xf]
        %v1609 = vld [vmem:[#allocation2 + $0x34] sm:$0x1]
        %v1610 = vld [vmem:[#allocation2 + $0x38] sm:$0xf]
        %v1611 = vld [vmem:[#allocation2 + $0x3c] sm:$0x1]
        %v1613 = vshrl.u32 %v1596, 16
        %v1615 = vrot.slane %v1613, 4
        %v1616 = vshll.u32 %v1596, 16
        %v1618 = vrot.slane %v1616, 5
        %v1619 = vor.u32 %v1615, %v1618
        %v1620 = vrot.slane %v1619, 4
        %v1622 = vshll.u32 %v1597, 16
        %v1624 = vrot.slane %v1622, 5
        %v1625 = vsel %vm351, %v1620, %v1624
        %v1627 = vshrl.u32 %v1598, 16
        %v1629 = vrot.slane %v1627, 4
        %v1630 = vshll.u32 %v1598, 16
        %v1632 = vrot.slane %v1630, 5
        %v1633 = vor.u32 %v1629, %v1632
        %v1634 = vrot.slane %v1633, 4
        %v1636 = vshll.u32 %v1599, 16
        %v1638 = vrot.slane %v1636, 5
        %v1639 = vsel %vm351, %v1634, %v1638
        %v1641 = vshrl.u32 %v1600, 16
        %v1643 = vrot.slane %v1641, 4
        %v1644 = vshll.u32 %v1600, 16
        %v1646 = vrot.slane %v1644, 5
        %v1647 = vor.u32 %v1643, %v1646
        %v1648 = vrot.slane %v1647, 4
        %v1650 = vshll.u32 %v1601, 16
        %v1652 = vrot.slane %v1650, 5
        %v1653 = vsel %vm351, %v1648, %v1652
        %v1655 = vshrl.u32 %v1602, 16
        %v1657 = vrot.slane %v1655, 4
        %v1658 = vshll.u32 %v1602, 16
        %v1660 = vrot.slane %v1658, 5
        %v1661 = vor.u32 %v1657, %v1660
        %v1662 = vrot.slane %v1661, 4
        %v1664 = vshll.u32 %v1603, 16
        %v1666 = vrot.slane %v1664, 5
        %v1667 = vsel %vm351, %v1662, %v1666
        %v1669 = vshrl.u32 %v1604, 16
        %v1671 = vrot.slane %v1669, 4
        %v1672 = vshll.u32 %v1604, 16
        %v1674 = vrot.slane %v1672, 5
        %v1675 = vor.u32 %v1671, %v1674
        %v1676 = vrot.slane %v1675, 4
        %v1678 = vshll.u32 %v1605, 16
        %v1680 = vrot.slane %v1678, 5
        %v1681 = vsel %vm351, %v1676, %v1680
        %v1683 = vshrl.u32 %v1606, 16
        %v1685 = vrot.slane %v1683, 4
        %v1686 = vshll.u32 %v1606, 16
        %v1688 = vrot.slane %v1686, 5
        %v1689 = vor.u32 %v1685, %v1688
        %v1690 = vrot.slane %v1689, 4
        %v1692 = vshll.u32 %v1607, 16
        %v1694 = vrot.slane %v1692, 5
        %v1695 = vsel %vm351, %v1690, %v1694
        %v1697 = vshrl.u32 %v1608, 16
        %v1699 = vrot.slane %v1697, 4
        %v1700 = vshll.u32 %v1608, 16
        %v1702 = vrot.slane %v1700, 5
        %v1703 = vor.u32 %v1699, %v1702
        %v1704 = vrot.slane %v1703, 4
        %v1706 = vshll.u32 %v1609, 16
        %v1708 = vrot.slane %v1706, 5
        %v1709 = vsel %vm351, %v1704, %v1708
        %v1711 = vshrl.u32 %v1610, 16
        %v1713 = vrot.slane %v1711, 4
        %v1714 = vshll.u32 %v1610, 16
        %v1716 = vrot.slane %v1714, 5
        %v1717 = vor.u32 %v1713, %v1716
        %v1718 = vrot.slane %v1717, 4
        %v1720 = vshll.u32 %v1611, 16
        %v1722 = vrot.slane %v1720, 5
        %v1723 = vsel %vm351, %v1718, %v1722
        %1732 = vst [vmem:[#allocation4 + $0x4] sm:$0xf] %v1625
        %1733 = vst [vmem:[#allocation4 + $0x2c] sm:$0xf] %v1639
        %1734 = vst [vmem:[#allocation4 + $0x54] sm:$0xf] %v1653
        %1735 = vst [vmem:[#allocation4 + $0x7c] sm:$0xf] %v1667
        %1736 = vst [vmem:[#allocation4 + $0xa4] sm:$0xf] %v1681
        %1737 = vst [vmem:[#allocation4 + $0xcc] sm:$0xf] %v1695
        %1738 = vst [vmem:[#allocation4 + $0xf4] sm:$0xf] %v1709
        %1739 = vst [vmem:[#allocation4 + $0x11c] sm:$0xf] %v1723
        %v1740 = vld [vmem:[#allocation2] sm:$0xe]
        %v1741 = vld [vmem:[#allocation2 + $0x4] sm:$0x1]
        %v1742 = vld [vmem:[#allocation2 + $0x8] sm:$0xe]
        %v1743 = vld [vmem:[#allocation2 + $0xc] sm:$0x1]
        %v1744 = vld [vmem:[#allocation2 + $0x10] sm:$0xe]
        %v1745 = vld [vmem:[#allocation2 + $0x14] sm:$0x1]
        %v1746 = vld [vmem:[#allocation2 + $0x18] sm:$0xe]
        %v1747 = vld [vmem:[#allocation2 + $0x1c] sm:$0x1]
        %v1748 = vld [vmem:[#allocation2 + $0x20] sm:$0xe]
        %v1749 = vld [vmem:[#allocation2 + $0x24] sm:$0x1]
        %v1750 = vld [vmem:[#allocation2 + $0x28] sm:$0xe]
        %v1751 = vld [vmem:[#allocation2 + $0x2c] sm:$0x1]
        %v1752 = vld [vmem:[#allocation2 + $0x30] sm:$0xe]
        %v1753 = vld [vmem:[#allocation2 + $0x34] sm:$0x1]
        %v1754 = vld [vmem:[#allocation2 + $0x38] sm:$0xe]
        %v1755 = vld [vmem:[#allocation2 + $0x3c] sm:$0x1]
        %vm1772 = vcmask 1042432
        %vm1773 = vcmask 1046532
        %vm1774 = vmor %vm1772, %vm1773
        %v1775 = vrot.slane %v1740, 5
        %v1776 = vrot.slane %v1775, 4
        %v1777 = vrot.slane %v1741, 5
        %v1778 = vsel %vm1774, %v1776, %v1777
        %v1779 = vrot.slane %v1742, 5
        %v1780 = vrot.slane %v1779, 4
        %v1781 = vrot.slane %v1743, 5
        %v1782 = vsel %vm1774, %v1780, %v1781
        %v1783 = vrot.slane %v1744, 5
        %v1784 = vrot.slane %v1783, 4
        %v1785 = vrot.slane %v1745, 5
        %v1786 = vsel %vm1774, %v1784, %v1785
        %v1787 = vrot.slane %v1746, 5
        %v1788 = vrot.slane %v1787, 4
        %v1789 = vrot.slane %v1747, 5
        %v1790 = vsel %vm1774, %v1788, %v1789
        %v1791 = vrot.slane %v1748, 5
        %v1792 = vrot.slane %v1791, 4
        %v1793 = vrot.slane %v1749, 5
        %v1794 = vsel %vm1774, %v1792, %v1793
        %v1795 = vrot.slane %v1750, 5
        %v1796 = vrot.slane %v1795, 4
        %v1797 = vrot.slane %v1751, 5
        %v1798 = vsel %vm1774, %v1796, %v1797
        %v1799 = vrot.slane %v1752, 5
        %v1800 = vrot.slane %v1799, 4
        %v1801 = vrot.slane %v1753, 5
        %v1802 = vsel %vm1774, %v1800, %v1801
        %v1803 = vrot.slane %v1754, 5
        %v1804 = vrot.slane %v1803, 4
        %v1805 = vrot.slane %v1755, 5
        %v1806 = vsel %vm1774, %v1804, %v1805
        %1815 = vst [vmem:[#allocation4 + $0x8] sm:$0xf] %v1778
        %1816 = vst [vmem:[#allocation4 + $0x30] sm:$0xf] %v1782
        %1817 = vst [vmem:[#allocation4 + $0x58] sm:$0xf] %v1786
        %1818 = vst [vmem:[#allocation4 + $0x80] sm:$0xf] %v1790
        %1819 = vst [vmem:[#allocation4 + $0xa8] sm:$0xf] %v1794
        %1820 = vst [vmem:[#allocation4 + $0xd0] sm:$0xf] %v1798
        %1821 = vst [vmem:[#allocation4 + $0xf8] sm:$0xf] %v1802
        %1822 = vst [vmem:[#allocation4 + $0x120] sm:$0xf] %v1806
        %s1823 = scalar_lea.vmem [#allocation2], 8
        %v1824 = vld [vmem:[%s1823] sm:$0xf]
        %v1825 = vld [vmem:[%s1823 + $0x8] sm:$0xf]
        %v1826 = vld [vmem:[%s1823 + $0x10] sm:$0xf]
        %v1827 = vld [vmem:[%s1823 + $0x18] sm:$0xf]
        %v1828 = vld [vmem:[%s1823 + $0x20] sm:$0xf]
        %v1829 = vld [vmem:[%s1823 + $0x28] sm:$0xf]
        %v1830 = vld [vmem:[%s1823 + $0x30] sm:$0xf]
        %v1831 = vld [vmem:[%s1823 + $0x38] sm:$0xf]
        %1832 = vst [vmem:[#allocation4 + $0xc] sm:$0xf] %v1824
        %1833 = vst [vmem:[#allocation4 + $0x34] sm:$0xf] %v1825
        %1834 = vst [vmem:[#allocation4 + $0x5c] sm:$0xf] %v1826
        %1835 = vst [vmem:[#allocation4 + $0x84] sm:$0xf] %v1827
        %1836 = vst [vmem:[#allocation4 + $0xac] sm:$0xf] %v1828
        %1837 = vst [vmem:[#allocation4 + $0xd4] sm:$0xf] %v1829
        %1838 = vst [vmem:[#allocation4 + $0xfc] sm:$0xf] %v1830
        %1839 = vst [vmem:[#allocation4 + $0x124] sm:$0xf] %v1831
        %v1840 = vld [vmem:[%s1823] sm:$0xf]
        %v1841 = vld [vmem:[%s1823 + $0x4] sm:$0x1]
        %v1842 = vld [vmem:[%s1823 + $0x8] sm:$0xf]
        %v1843 = vld [vmem:[%s1823 + $0xc] sm:$0x1]
        %v1844 = vld [vmem:[%s1823 + $0x10] sm:$0xf]
        %v1845 = vld [vmem:[%s1823 + $0x14] sm:$0x1]
        %v1846 = vld [vmem:[%s1823 + $0x18] sm:$0xf]
        %v1847 = vld [vmem:[%s1823 + $0x1c] sm:$0x1]
        %v1848 = vld [vmem:[%s1823 + $0x20] sm:$0xf]
        %v1849 = vld [vmem:[%s1823 + $0x24] sm:$0x1]
        %v1850 = vld [vmem:[%s1823 + $0x28] sm:$0xf]
        %v1851 = vld [vmem:[%s1823 + $0x2c] sm:$0x1]
        %v1852 = vld [vmem:[%s1823 + $0x30] sm:$0xf]
        %v1853 = vld [vmem:[%s1823 + $0x34] sm:$0x1]
        %v1854 = vld [vmem:[%s1823 + $0x38] sm:$0xf]
        %v1855 = vld [vmem:[%s1823 + $0x3c] sm:$0x1]
        %v1857 = vshrl.u32 %v1840, 16
        %v1859 = vrot.slane %v1857, 4
        %v1860 = vshll.u32 %v1840, 16
        %v1862 = vrot.slane %v1860, 5
        %v1863 = vor.u32 %v1859, %v1862
        %v1864 = vrot.slane %v1863, 4
        %v1866 = vshll.u32 %v1841, 16
        %v1868 = vrot.slane %v1866, 5
        %v1869 = vsel %vm351, %v1864, %v1868
        %v1871 = vshrl.u32 %v1842, 16
        %v1873 = vrot.slane %v1871, 4
        %v1874 = vshll.u32 %v1842, 16
        %v1876 = vrot.slane %v1874, 5
        %v1877 = vor.u32 %v1873, %v1876
        %v1878 = vrot.slane %v1877, 4
        %v1880 = vshll.u32 %v1843, 16
        %v1882 = vrot.slane %v1880, 5
        %v1883 = vsel %vm351, %v1878, %v1882
        %v1885 = vshrl.u32 %v1844, 16
        %v1887 = vrot.slane %v1885, 4
        %v1888 = vshll.u32 %v1844, 16
        %v1890 = vrot.slane %v1888, 5
        %v1891 = vor.u32 %v1887, %v1890
        %v1892 = vrot.slane %v1891, 4
        %v1894 = vshll.u32 %v1845, 16
        %v1896 = vrot.slane %v1894, 5
        %v1897 = vsel %vm351, %v1892, %v1896
        %v1899 = vshrl.u32 %v1846, 16
        %v1901 = vrot.slane %v1899, 4
        %v1902 = vshll.u32 %v1846, 16
        %v1904 = vrot.slane %v1902, 5
        %v1905 = vor.u32 %v1901, %v1904
        %v1906 = vrot.slane %v1905, 4
        %v1908 = vshll.u32 %v1847, 16
        %v1910 = vrot.slane %v1908, 5
        %v1911 = vsel %vm351, %v1906, %v1910
        %v1913 = vshrl.u32 %v1848, 16
        %v1915 = vrot.slane %v1913, 4
        %v1916 = vshll.u32 %v1848, 16
        %v1918 = vrot.slane %v1916, 5
        %v1919 = vor.u32 %v1915, %v1918
        %v1920 = vrot.slane %v1919, 4
        %v1922 = vshll.u32 %v1849, 16
        %v1924 = vrot.slane %v1922, 5
        %v1925 = vsel %vm351, %v1920, %v1924
        %v1927 = vshrl.u32 %v1850, 16
        %v1929 = vrot.slane %v1927, 4
        %v1930 = vshll.u32 %v1850, 16
        %v1932 = vrot.slane %v1930, 5
        %v1933 = vor.u32 %v1929, %v1932
        %v1934 = vrot.slane %v1933, 4
        %v1936 = vshll.u32 %v1851, 16
        %v1938 = vrot.slane %v1936, 5
        %v1939 = vsel %vm351, %v1934, %v1938
        %v1941 = vshrl.u32 %v1852, 16
        %v1943 = vrot.slane %v1941, 4
        %v1944 = vshll.u32 %v1852, 16
        %v1946 = vrot.slane %v1944, 5
        %v1947 = vor.u32 %v1943, %v1946
        %v1948 = vrot.slane %v1947, 4
        %v1950 = vshll.u32 %v1853, 16
        %v1952 = vrot.slane %v1950, 5
        %v1953 = vsel %vm351, %v1948, %v1952
        %v1955 = vshrl.u32 %v1854, 16
        %v1957 = vrot.slane %v1955, 4
        %v1958 = vshll.u32 %v1854, 16
        %v1960 = vrot.slane %v1958, 5
        %v1961 = vor.u32 %v1957, %v1960
        %v1962 = vrot.slane %v1961, 4
        %v1964 = vshll.u32 %v1855, 16
        %v1966 = vrot.slane %v1964, 5
        %v1967 = vsel %vm351, %v1962, %v1966
        %1976 = vst [vmem:[#allocation4 + $0x10] sm:$0xf] %v1869
        %1977 = vst [vmem:[#allocation4 + $0x38] sm:$0xf] %v1883
        %1978 = vst [vmem:[#allocation4 + $0x60] sm:$0xf] %v1897
        %1979 = vst [vmem:[#allocation4 + $0x88] sm:$0xf] %v1911
        %1980 = vst [vmem:[#allocation4 + $0xb0] sm:$0xf] %v1925
        %1981 = vst [vmem:[#allocation4 + $0xd8] sm:$0xf] %v1939
        %1982 = vst [vmem:[#allocation4 + $0x100] sm:$0xf] %v1953
        %1983 = vst [vmem:[#allocation4 + $0x128] sm:$0xf] %v1967
        %v1984 = vld [vmem:[%s1823] sm:$0xe]
        %v1985 = vld [vmem:[%s1823 + $0x4] sm:$0x1]
        %v1986 = vld [vmem:[%s1823 + $0x8] sm:$0xe]
        %v1987 = vld [vmem:[%s1823 + $0xc] sm:$0x1]
        %v1988 = vld [vmem:[%s1823 + $0x10] sm:$0xe]
        %v1989 = vld [vmem:[%s1823 + $0x14] sm:$0x1]
        %v1990 = vld [vmem:[%s1823 + $0x18] sm:$0xe]
        %v1991 = vld [vmem:[%s1823 + $0x1c] sm:$0x1]
        %v1992 = vld [vmem:[%s1823 + $0x20] sm:$0xe]
        %v1993 = vld [vmem:[%s1823 + $0x24] sm:$0x1]
        %v1994 = vld [vmem:[%s1823 + $0x28] sm:$0xe]
        %v1995 = vld [vmem:[%s1823 + $0x2c] sm:$0x1]
        %v1996 = vld [vmem:[%s1823 + $0x30] sm:$0xe]
        %v1997 = vld [vmem:[%s1823 + $0x34] sm:$0x1]
        %v1998 = vld [vmem:[%s1823 + $0x38] sm:$0xe]
        %v1999 = vld [vmem:[%s1823 + $0x3c] sm:$0x1]
        %v2016 = vrot.slane %v1984, 5
        %v2017 = vrot.slane %v2016, 4
        %v2018 = vrot.slane %v1985, 5
        %v2019 = vsel %vm1774, %v2017, %v2018
        %v2020 = vrot.slane %v1986, 5
        %v2021 = vrot.slane %v2020, 4
        %v2022 = vrot.slane %v1987, 5
        %v2023 = vsel %vm1774, %v2021, %v2022
        %v2024 = vrot.slane %v1988, 5
        %v2025 = vrot.slane %v2024, 4
        %v2026 = vrot.slane %v1989, 5
        %v2027 = vsel %vm1774, %v2025, %v2026
        %v2028 = vrot.slane %v1990, 5
        %v2029 = vrot.slane %v2028, 4
        %v2030 = vrot.slane %v1991, 5
        %v2031 = vsel %vm1774, %v2029, %v2030
        %v2032 = vrot.slane %v1992, 5
        %v2033 = vrot.slane %v2032, 4
        %v2034 = vrot.slane %v1993, 5
        %v2035 = vsel %vm1774, %v2033, %v2034
        %v2036 = vrot.slane %v1994, 5
        %v2037 = vrot.slane %v2036, 4
        %v2038 = vrot.slane %v1995, 5
        %v2039 = vsel %vm1774, %v2037, %v2038
        %v2040 = vrot.slane %v1996, 5
        %v2041 = vrot.slane %v2040, 4
        %v2042 = vrot.slane %v1997, 5
        %v2043 = vsel %vm1774, %v2041, %v2042
        %v2044 = vrot.slane %v1998, 5
        %v2045 = vrot.slane %v2044, 4
        %v2046 = vrot.slane %v1999, 5
        %v2047 = vsel %vm1774, %v2045, %v2046
        %2056 = vst [vmem:[#allocation4 + $0x14] sm:$0xf] %v2019
        %2057 = vst [vmem:[#allocation4 + $0x3c] sm:$0xf] %v2023
        %2058 = vst [vmem:[#allocation4 + $0x64] sm:$0xf] %v2027
        %2059 = vst [vmem:[#allocation4 + $0x8c] sm:$0xf] %v2031
        %2060 = vst [vmem:[#allocation4 + $0xb4] sm:$0xf] %v2035
        %2061 = vst [vmem:[#allocation4 + $0xdc] sm:$0xf] %v2039
        %2062 = vst [vmem:[#allocation4 + $0x104] sm:$0xf] %v2043
        %2063 = vst [vmem:[#allocation4 + $0x12c] sm:$0xf] %v2047
        %s2064 = scalar_lea.vmem [#allocation2], 16
        %v2065 = vld [vmem:[%s2064] sm:$0xf]
        %v2066 = vld [vmem:[%s2064 + $0x8] sm:$0xf]
        %v2067 = vld [vmem:[%s2064 + $0x10] sm:$0xf]
        %v2068 = vld [vmem:[%s2064 + $0x18] sm:$0xf]
        %v2069 = vld [vmem:[%s2064 + $0x20] sm:$0xf]
        %v2070 = vld [vmem:[%s2064 + $0x28] sm:$0xf]
        %v2071 = vld [vmem:[%s2064 + $0x30] sm:$0xf]
        %v2072 = vld [vmem:[%s2064 + $0x38] sm:$0xf]
        %2073 = vst [vmem:[#allocation4 + $0x18] sm:$0xf] %v2065
        %2074 = vst [vmem:[#allocation4 + $0x40] sm:$0xf] %v2066
        %2075 = vst [vmem:[#allocation4 + $0x68] sm:$0xf] %v2067
        %2076 = vst [vmem:[#allocation4 + $0x90] sm:$0xf] %v2068
        %2077 = vst [vmem:[#allocation4 + $0xb8] sm:$0xf] %v2069
        %2078 = vst [vmem:[#allocation4 + $0xe0] sm:$0xf] %v2070
        %2079 = vst [vmem:[#allocation4 + $0x108] sm:$0xf] %v2071
        %2080 = vst [vmem:[#allocation4 + $0x130] sm:$0xf] %v2072
        %v2081 = vld [vmem:[%s2064] sm:$0xf]
        %v2082 = vld [vmem:[%s2064 + $0x4] sm:$0x1]
        %v2083 = vld [vmem:[%s2064 + $0x8] sm:$0xf]
        %v2084 = vld [vmem:[%s2064 + $0xc] sm:$0x1]
        %v2085 = vld [vmem:[%s2064 + $0x10] sm:$0xf]
        %v2086 = vld [vmem:[%s2064 + $0x14] sm:$0x1]
        %v2087 = vld [vmem:[%s2064 + $0x18] sm:$0xf]
        %v2088 = vld [vmem:[%s2064 + $0x1c] sm:$0x1]
        %v2089 = vld [vmem:[%s2064 + $0x20] sm:$0xf]
        %v2090 = vld [vmem:[%s2064 + $0x24] sm:$0x1]
        %v2091 = vld [vmem:[%s2064 + $0x28] sm:$0xf]
        %v2092 = vld [vmem:[%s2064 + $0x2c] sm:$0x1]
        %v2093 = vld [vmem:[%s2064 + $0x30] sm:$0xf]
        %v2094 = vld [vmem:[%s2064 + $0x34] sm:$0x1]
        %v2095 = vld [vmem:[%s2064 + $0x38] sm:$0xf]
        %v2096 = vld [vmem:[%s2064 + $0x3c] sm:$0x1]
        %v2098 = vshrl.u32 %v2081, 16
        %v2100 = vrot.slane %v2098, 4
        %v2101 = vshll.u32 %v2081, 16
        %v2103 = vrot.slane %v2101, 5
        %v2104 = vor.u32 %v2100, %v2103
        %v2105 = vrot.slane %v2104, 4
        %v2107 = vshll.u32 %v2082, 16
        %v2109 = vrot.slane %v2107, 5
        %v2110 = vsel %vm351, %v2105, %v2109
        %v2112 = vshrl.u32 %v2083, 16
        %v2114 = vrot.slane %v2112, 4
        %v2115 = vshll.u32 %v2083, 16
        %v2117 = vrot.slane %v2115, 5
        %v2118 = vor.u32 %v2114, %v2117
        %v2119 = vrot.slane %v2118, 4
        %v2121 = vshll.u32 %v2084, 16
        %v2123 = vrot.slane %v2121, 5
        %v2124 = vsel %vm351, %v2119, %v2123
        %v2126 = vshrl.u32 %v2085, 16
        %v2128 = vrot.slane %v2126, 4
        %v2129 = vshll.u32 %v2085, 16
        %v2131 = vrot.slane %v2129, 5
        %v2132 = vor.u32 %v2128, %v2131
        %v2133 = vrot.slane %v2132, 4
        %v2135 = vshll.u32 %v2086, 16
        %v2137 = vrot.slane %v2135, 5
        %v2138 = vsel %vm351, %v2133, %v2137
        %v2140 = vshrl.u32 %v2087, 16
        %v2142 = vrot.slane %v2140, 4
        %v2143 = vshll.u32 %v2087, 16
        %v2145 = vrot.slane %v2143, 5
        %v2146 = vor.u32 %v2142, %v2145
        %v2147 = vrot.slane %v2146, 4
        %v2149 = vshll.u32 %v2088, 16
        %v2151 = vrot.slane %v2149, 5
        %v2152 = vsel %vm351, %v2147, %v2151
        %v2154 = vshrl.u32 %v2089, 16
        %v2156 = vrot.slane %v2154, 4
        %v2157 = vshll.u32 %v2089, 16
        %v2159 = vrot.slane %v2157, 5
        %v2160 = vor.u32 %v2156, %v2159
        %v2161 = vrot.slane %v2160, 4
        %v2163 = vshll.u32 %v2090, 16
        %v2165 = vrot.slane %v2163, 5
        %v2166 = vsel %vm351, %v2161, %v2165
        %v2168 = vshrl.u32 %v2091, 16
        %v2170 = vrot.slane %v2168, 4
        %v2171 = vshll.u32 %v2091, 16
        %v2173 = vrot.slane %v2171, 5
        %v2174 = vor.u32 %v2170, %v2173
        %v2175 = vrot.slane %v2174, 4
        %v2177 = vshll.u32 %v2092, 16
        %v2179 = vrot.slane %v2177, 5
        %v2180 = vsel %vm351, %v2175, %v2179
        %v2182 = vshrl.u32 %v2093, 16
        %v2184 = vrot.slane %v2182, 4
        %v2185 = vshll.u32 %v2093, 16
        %v2187 = vrot.slane %v2185, 5
        %v2188 = vor.u32 %v2184, %v2187
        %v2189 = vrot.slane %v2188, 4
        %v2191 = vshll.u32 %v2094, 16
        %v2193 = vrot.slane %v2191, 5
        %v2194 = vsel %vm351, %v2189, %v2193
        %v2196 = vshrl.u32 %v2095, 16
        %v2198 = vrot.slane %v2196, 4
        %v2199 = vshll.u32 %v2095, 16
        %v2201 = vrot.slane %v2199, 5
        %v2202 = vor.u32 %v2198, %v2201
        %v2203 = vrot.slane %v2202, 4
        %v2205 = vshll.u32 %v2096, 16
        %v2207 = vrot.slane %v2205, 5
        %v2208 = vsel %vm351, %v2203, %v2207
        %2217 = vst [vmem:[#allocation4 + $0x1c] sm:$0xf] %v2110
        %2218 = vst [vmem:[#allocation4 + $0x44] sm:$0xf] %v2124
        %2219 = vst [vmem:[#allocation4 + $0x6c] sm:$0xf] %v2138
        %2220 = vst [vmem:[#allocation4 + $0x94] sm:$0xf] %v2152
        %2221 = vst [vmem:[#allocation4 + $0xbc] sm:$0xf] %v2166
        %2222 = vst [vmem:[#allocation4 + $0xe4] sm:$0xf] %v2180
        %2223 = vst [vmem:[#allocation4 + $0x10c] sm:$0xf] %v2194
        %2224 = vst [vmem:[#allocation4 + $0x134] sm:$0xf] %v2208
        %v2225 = vld [vmem:[%s2064] sm:$0xe]
        %v2226 = vld [vmem:[%s2064 + $0x4] sm:$0x1]
        %v2227 = vld [vmem:[%s2064 + $0x8] sm:$0xe]
        %v2228 = vld [vmem:[%s2064 + $0xc] sm:$0x1]
        %v2229 = vld [vmem:[%s2064 + $0x10] sm:$0xe]
        %v2230 = vld [vmem:[%s2064 + $0x14] sm:$0x1]
        %v2231 = vld [vmem:[%s2064 + $0x18] sm:$0xe]
        %v2232 = vld [vmem:[%s2064 + $0x1c] sm:$0x1]
        %v2233 = vld [vmem:[%s2064 + $0x20] sm:$0xe]
        %v2234 = vld [vmem:[%s2064 + $0x24] sm:$0x1]
        %v2235 = vld [vmem:[%s2064 + $0x28] sm:$0xe]
        %v2236 = vld [vmem:[%s2064 + $0x2c] sm:$0x1]
        %v2237 = vld [vmem:[%s2064 + $0x30] sm:$0xe]
        %v2238 = vld [vmem:[%s2064 + $0x34] sm:$0x1]
        %v2239 = vld [vmem:[%s2064 + $0x38] sm:$0xe]
        %v2240 = vld [vmem:[%s2064 + $0x3c] sm:$0x1]
        %v2257 = vrot.slane %v2225, 5
        %v2258 = vrot.slane %v2257, 4
        %v2259 = vrot.slane %v2226, 5
        %v2260 = vsel %vm1774, %v2258, %v2259
        %v2261 = vrot.slane %v2227, 5
        %v2262 = vrot.slane %v2261, 4
        %v2263 = vrot.slane %v2228, 5
        %v2264 = vsel %vm1774, %v2262, %v2263
        %v2265 = vrot.slane %v2229, 5
        %v2266 = vrot.slane %v2265, 4
        %v2267 = vrot.slane %v2230, 5
        %v2268 = vsel %vm1774, %v2266, %v2267
        %v2269 = vrot.slane %v2231, 5
        %v2270 = vrot.slane %v2269, 4
        %v2271 = vrot.slane %v2232, 5
        %v2272 = vsel %vm1774, %v2270, %v2271
        %v2273 = vrot.slane %v2233, 5
        %v2274 = vrot.slane %v2273, 4
        %v2275 = vrot.slane %v2234, 5
        %v2276 = vsel %vm1774, %v2274, %v2275
        %v2277 = vrot.slane %v2235, 5
        %v2278 = vrot.slane %v2277, 4
        %v2279 = vrot.slane %v2236, 5
        %v2280 = vsel %vm1774, %v2278, %v2279
        %v2281 = vrot.slane %v2237, 5
        %v2282 = vrot.slane %v2281, 4
        %v2283 = vrot.slane %v2238, 5
        %v2284 = vsel %vm1774, %v2282, %v2283
        %v2285 = vrot.slane %v2239, 5
        %v2286 = vrot.slane %v2285, 4
        %v2287 = vrot.slane %v2240, 5
        %v2288 = vsel %vm1774, %v2286, %v2287
        %2297 = vst [vmem:[#allocation4 + $0x20] sm:$0xf] %v2260
        %2298 = vst [vmem:[#allocation4 + $0x48] sm:$0xf] %v2264
        %2299 = vst [vmem:[#allocation4 + $0x70] sm:$0xf] %v2268
        %2300 = vst [vmem:[#allocation4 + $0x98] sm:$0xf] %v2272
        %2301 = vst [vmem:[#allocation4 + $0xc0] sm:$0xf] %v2276
        %2302 = vst [vmem:[#allocation4 + $0xe8] sm:$0xf] %v2280
        %2303 = vst [vmem:[#allocation4 + $0x110] sm:$0xf] %v2284
        %2304 = vst [vmem:[#allocation4 + $0x138] sm:$0xf] %v2288
        %v2305 = vld [vmem:[#allocation3 + $0x4] sm:$0xf]
        %v2306 = vld [vmem:[#allocation3 + $0x8] sm:$0xf]
        %v2307 = vld [vmem:[#allocation3 + $0xc] sm:$0xf]
        %v2308 = vld [vmem:[#allocation3 + $0x10] sm:$0xf]
        %v2309 = vld [vmem:[#allocation3 + $0x14] sm:$0xf]
        %v2310 = vld [vmem:[#allocation3 + $0x18] sm:$0xf]
        %v2311 = vld [vmem:[#allocation3 + $0x1c] sm:$0xf]
        %v2312 = vld [vmem:[#allocation3 + $0x20] sm:$0xf]
        %2321 = vrot.lane.b32.xlu0 %v2305, 96
        %v2322 = vpop.permute.xlu0 %2321
        %2323 = vrot.lane.b32.xlu0 %v2306, 96
        %v2324 = vpop.permute.xlu0 %2323
        %2325 = vrot.lane.b32.xlu0 %v2307, 96
        %v2326 = vpop.permute.xlu0 %2325
        %2327 = vrot.lane.b32.xlu0 %v2308, 96
        %v2328 = vpop.permute.xlu0 %2327
        %2329 = vrot.lane.b32.xlu0 %v2309, 96
        %v2330 = vpop.permute.xlu0 %2329
        %2331 = vrot.lane.b32.xlu0 %v2310, 96
        %v2332 = vpop.permute.xlu0 %2331
        %2333 = vrot.lane.b32.xlu0 %v2311, 96
        %v2334 = vpop.permute.xlu0 %2333
        %2335 = vrot.lane.b32.xlu0 %v2312, 96
        %v2336 = vpop.permute.xlu0 %2335
        %2345 = vst.msk [vmem:[#allocation4 + $0x24] sm:$0xf] %vm253, %v2322
        %2346 = vst.msk [vmem:[#allocation4 + $0x4c] sm:$0xf] %vm253, %v2324
        %2347 = vst.msk [vmem:[#allocation4 + $0x74] sm:$0xf] %vm253, %v2326
        %2348 = vst.msk [vmem:[#allocation4 + $0x9c] sm:$0xf] %vm253, %v2328
        %2349 = vst.msk [vmem:[#allocation4 + $0xc4] sm:$0xf] %vm253, %v2330
        %2350 = vst.msk [vmem:[#allocation4 + $0xec] sm:$0xf] %vm253, %v2332
        %2351 = vst.msk [vmem:[#allocation4 + $0x114] sm:$0xf] %vm253, %v2334
        %2352 = vst.msk [vmem:[#allocation4 + $0x13c] sm:$0xf] %vm253, %v2336
        %v2353 = vld [vmem:[#allocation4] sm:$0xff]
        %v2354 = vld [vmem:[#allocation4 + $0x8] sm:$0xff]
        %v2355 = vld [vmem:[#allocation4 + $0x10] sm:$0xff]
        %v2356 = vld [vmem:[#allocation4 + $0x18] sm:$0xff]
        %v2357 = vld [vmem:[#allocation4 + $0x20] sm:$0xff]
        %v2358 = vld [vmem:[#allocation4 + $0x28] sm:$0xff]
        %v2359 = vld [vmem:[#allocation4 + $0x30] sm:$0xff]
        %v2360 = vld [vmem:[#allocation4 + $0x38] sm:$0xff]
        %v2361 = vld [vmem:[#allocation4 + $0x40] sm:$0xff]
        %v2362 = vld [vmem:[#allocation4 + $0x48] sm:$0xff]
        %v2363 = vld [vmem:[#allocation4 + $0x50] sm:$0xff]
        %v2364 = vld [vmem:[#allocation4 + $0x58] sm:$0xff]
        %v2365 = vld [vmem:[#allocation4 + $0x60] sm:$0xff]
        %v2366 = vld [vmem:[#allocation4 + $0x68] sm:$0xff]
        %v2367 = vld [vmem:[#allocation4 + $0x70] sm:$0xff]
        %v2368 = vld [vmem:[#allocation4 + $0x78] sm:$0xff]
        %v2369 = vld [vmem:[#allocation4 + $0x80] sm:$0xff]
        %v2370 = vld [vmem:[#allocation4 + $0x88] sm:$0xff]
        %v2371 = vld [vmem:[#allocation4 + $0x90] sm:$0xff]
        %v2372 = vld [vmem:[#allocation4 + $0x98] sm:$0xff]
        %v2373 = vld [vmem:[#allocation4 + $0xa0] sm:$0xff]
        %v2374 = vld [vmem:[#allocation4 + $0xa8] sm:$0xff]
        %v2375 = vld [vmem:[#allocation4 + $0xb0] sm:$0xff]
        %v2376 = vld [vmem:[#allocation4 + $0xb8] sm:$0xff]
        %v2377 = vld [vmem:[#allocation4 + $0xc0] sm:$0xff]
        %v2378 = vld [vmem:[#allocation4 + $0xc8] sm:$0xff]
        %v2379 = vld [vmem:[#allocation4 + $0xd0] sm:$0xff]
        %v2380 = vld [vmem:[#allocation4 + $0xd8] sm:$0xff]
        %v2381 = vld [vmem:[#allocation4 + $0xe0] sm:$0xff]
        %v2382 = vld [vmem:[#allocation4 + $0xe8] sm:$0xff]
        %v2383 = vld [vmem:[#allocation4 + $0xf0] sm:$0xff]
        %v2384 = vld [vmem:[#allocation4 + $0xf8] sm:$0xff]
        %v2385 = vld [vmem:[#allocation4 + $0x100] sm:$0xff]
        %v2386 = vld [vmem:[#allocation4 + $0x108] sm:$0xff]
        %v2387 = vld [vmem:[#allocation4 + $0x110] sm:$0xff]
        %v2388 = vld [vmem:[#allocation4 + $0x118] sm:$0xff]
        %v2389 = vld [vmem:[#allocation4 + $0x120] sm:$0xff]
        %v2390 = vld [vmem:[#allocation4 + $0x128] sm:$0xff]
        %v2391 = vld [vmem:[#allocation4 + $0x130] sm:$0xff]
        %v2392 = vld [vmem:[#allocation4 + $0x138] sm:$0xff]
        %v2393 = vld [vmem:[%s3] sm:$0xf]
        %v2394 = vld [vmem:[%s3 + $0x4] sm:$0xf]
        %v2395 = vld [vmem:[%s3 + $0x8] sm:$0xf]
        %v2396 = vld [vmem:[%s3 + $0xc] sm:$0xf]
        %v2397 = vld [vmem:[%s3 + $0x10] sm:$0xf]
        %v2398 = vld [vmem:[%s3 + $0x14] sm:$0xf]
        %v2399 = vld [vmem:[%s3 + $0x18] sm:$0xf]
        %v2400 = vld [vmem:[%s3 + $0x1c] sm:$0xf]
        %v2401 = vld [vmem:[%s3 + $0x20] sm:$0xf]
        %v2402 = vld [vmem:[%s3 + $0x24] sm:$0xf]
        %v2403 = vld [vmem:[%s3 + $0x28] sm:$0xf]
        %v2404 = vld [vmem:[%s3 + $0x2c] sm:$0xf]
        %v2405 = vld [vmem:[%s3 + $0x30] sm:$0xf]
        %v2406 = vld [vmem:[%s3 + $0x34] sm:$0xf]
        %v2407 = vld [vmem:[%s3 + $0x38] sm:$0xf]
        %v2408 = vld [vmem:[%s3 + $0x3c] sm:$0xf]
        %v2409 = vld [vmem:[%s3 + $0x40] sm:$0xf]
        %v2410 = vld [vmem:[%s3 + $0x44] sm:$0xf]
        %v2411 = vld [vmem:[%s3 + $0x48] sm:$0xf]
        %v2412 = vld [vmem:[%s3 + $0x4c] sm:$0xf]
        %v2413 = vld [vmem:[%s3 + $0x50] sm:$0xf]
        %v2414 = vld [vmem:[%s3 + $0x54] sm:$0xf]
        %v2415 = vld [vmem:[%s3 + $0x58] sm:$0xf]
        %v2416 = vld [vmem:[%s3 + $0x5c] sm:$0xf]
        %v2417 = vld [vmem:[%s3 + $0x60] sm:$0xf]
        %v2418 = vld [vmem:[%s3 + $0x64] sm:$0xf]
        %v2419 = vld [vmem:[%s3 + $0x68] sm:$0xf]
        %v2420 = vld [vmem:[%s3 + $0x6c] sm:$0xf]
        %v2421 = vld [vmem:[%s3 + $0x70] sm:$0xf]
        %v2422 = vld [vmem:[%s3 + $0x74] sm:$0xf]
        %v2423 = vld [vmem:[%s3 + $0x78] sm:$0xf]
        %v2424 = vld [vmem:[%s3 + $0x7c] sm:$0xf]
        %v2425 = vld [vmem:[%s3 + $0x80] sm:$0xf]
        %v2426 = vld [vmem:[%s3 + $0x84] sm:$0xf]
        %v2427 = vld [vmem:[%s3 + $0x88] sm:$0xf]
        %v2428 = vld [vmem:[%s3 + $0x8c] sm:$0xf]
        %v2429 = vld [vmem:[%s3 + $0x90] sm:$0xf]
        %v2430 = vld [vmem:[%s3 + $0x94] sm:$0xf]
        %v2431 = vld [vmem:[%s3 + $0x98] sm:$0xf]
        %v2432 = vld [vmem:[%s3 + $0x9c] sm:$0xf]
        %v2433 = vld [vmem:[%s3 + $0xa0] sm:$0xf]
        %v2434 = vld [vmem:[%s3 + $0xa4] sm:$0xf]
        %v2435 = vld [vmem:[%s3 + $0xa8] sm:$0xf]
        %v2436 = vld [vmem:[%s3 + $0xac] sm:$0xf]
        %v2437 = vld [vmem:[%s3 + $0xb0] sm:$0xf]
        %v2438 = vld [vmem:[%s3 + $0xb4] sm:$0xf]
        %v2439 = vld [vmem:[%s3 + $0xb8] sm:$0xf]
        %v2440 = vld [vmem:[%s3 + $0xbc] sm:$0xf]
        %v2441 = vld [vmem:[%s3 + $0xc0] sm:$0xf]
        %v2442 = vld [vmem:[%s3 + $0xc4] sm:$0xf]
        %v2443 = vld [vmem:[%s3 + $0xc8] sm:$0xf]
        %v2444 = vld [vmem:[%s3 + $0xcc] sm:$0xf]
        %v2445 = vld [vmem:[%s3 + $0xd0] sm:$0xf]
        %v2446 = vld [vmem:[%s3 + $0xd4] sm:$0xf]
        %v2447 = vld [vmem:[%s3 + $0xd8] sm:$0xf]
        %v2448 = vld [vmem:[%s3 + $0xdc] sm:$0xf]
        %v2449 = vld [vmem:[%s3 + $0xe0] sm:$0xf]
        %v2450 = vld [vmem:[%s3 + $0xe4] sm:$0xf]
        %v2451 = vld [vmem:[%s3 + $0xe8] sm:$0xf]
        %v2452 = vld [vmem:[%s3 + $0xec] sm:$0xf]
        %v2453 = vld [vmem:[%s3 + $0xf0] sm:$0xf]
        %v2454 = vld [vmem:[%s3 + $0xf4] sm:$0xf]
        %v2455 = vld [vmem:[%s3 + $0xf8] sm:$0xf]
        %v2456 = vld [vmem:[%s3 + $0xfc] sm:$0xf]
        %v2457 = vld [vmem:[%s3 + $0x100] sm:$0xf]
        %v2458 = vld [vmem:[%s3 + $0x104] sm:$0xf]
        %v2459 = vld [vmem:[%s3 + $0x108] sm:$0xf]
        %v2460 = vld [vmem:[%s3 + $0x10c] sm:$0xf]
        %v2461 = vld [vmem:[%s3 + $0x110] sm:$0xf]
        %v2462 = vld [vmem:[%s3 + $0x114] sm:$0xf]
        %v2463 = vld [vmem:[%s3 + $0x118] sm:$0xf]
        %v2464 = vld [vmem:[%s3 + $0x11c] sm:$0xf]
        %v2465 = vld [vmem:[%s3 + $0x120] sm:$0xf]
        %v2466 = vld [vmem:[%s3 + $0x124] sm:$0xf]
        %v2467 = vld [vmem:[%s3 + $0x128] sm:$0xf]
        %v2468 = vld [vmem:[%s3 + $0x12c] sm:$0xf]
        %v2469 = vld [vmem:[%s3 + $0x130] sm:$0xf]
        %v2470 = vld [vmem:[%s3 + $0x134] sm:$0xf]
        %v2471 = vld [vmem:[%s3 + $0x138] sm:$0xf]
        %v2472 = vld [vmem:[%s3 + $0x13c] sm:$0xf]
        %v2473 = vld [vmem:[%s3 + $0x140] sm:$0xf]
        %v2474 = vld [vmem:[%s3 + $0x144] sm:$0xf]
        %v2475 = vld [vmem:[%s3 + $0x148] sm:$0xf]
        %v2476 = vld [vmem:[%s3 + $0x14c] sm:$0xf]
        %v2477 = vld [vmem:[%s3 + $0x150] sm:$0xf]
        %v2478 = vld [vmem:[%s3 + $0x154] sm:$0xf]
        %v2479 = vld [vmem:[%s3 + $0x158] sm:$0xf]
        %v2480 = vld [vmem:[%s3 + $0x15c] sm:$0xf]
        %v2481 = vld [vmem:[%s3 + $0x160] sm:$0xf]
        %v2482 = vld [vmem:[%s3 + $0x164] sm:$0xf]
        %v2483 = vld [vmem:[%s3 + $0x168] sm:$0xf]
        %v2484 = vld [vmem:[%s3 + $0x16c] sm:$0xf]
        %v2485 = vld [vmem:[%s3 + $0x170] sm:$0xf]
        %v2486 = vld [vmem:[%s3 + $0x174] sm:$0xf]
        %v2487 = vld [vmem:[%s3 + $0x178] sm:$0xf]
        %v2488 = vld [vmem:[%s3 + $0x17c] sm:$0xf]
        %v2489 = vld [vmem:[%s3 + $0x180] sm:$0xf]
        %v2490 = vld [vmem:[%s3 + $0x184] sm:$0xf]
        %v2491 = vld [vmem:[%s3 + $0x188] sm:$0xf]
        %v2492 = vld [vmem:[%s3 + $0x18c] sm:$0xf]
        %v2493 = vld [vmem:[%s3 + $0x190] sm:$0xf]
        %v2494 = vld [vmem:[%s3 + $0x194] sm:$0xf]
        %v2495 = vld [vmem:[%s3 + $0x198] sm:$0xf]
        %v2496 = vld [vmem:[%s3 + $0x19c] sm:$0xf]
        %v2497 = vld [vmem:[%s3 + $0x1a0] sm:$0xf]
        %v2498 = vld [vmem:[%s3 + $0x1a4] sm:$0xf]
        %v2499 = vld [vmem:[%s3 + $0x1a8] sm:$0xf]
        %v2500 = vld [vmem:[%s3 + $0x1ac] sm:$0xf]
        %v2501 = vld [vmem:[%s3 + $0x1b0] sm:$0xf]
        %v2502 = vld [vmem:[%s3 + $0x1b4] sm:$0xf]
        %v2503 = vld [vmem:[%s3 + $0x1b8] sm:$0xf]
        %v2504 = vld [vmem:[%s3 + $0x1bc] sm:$0xf]
        %v2505 = vld [vmem:[%s3 + $0x1c0] sm:$0xf]
        %v2506 = vld [vmem:[%s3 + $0x1c4] sm:$0xf]
        %v2507 = vld [vmem:[%s3 + $0x1c8] sm:$0xf]
        %v2508 = vld [vmem:[%s3 + $0x1cc] sm:$0xf]
        %v2509 = vld [vmem:[%s3 + $0x1d0] sm:$0xf]
        %v2510 = vld [vmem:[%s3 + $0x1d4] sm:$0xf]
        %v2511 = vld [vmem:[%s3 + $0x1d8] sm:$0xf]
        %v2512 = vld [vmem:[%s3 + $0x1dc] sm:$0xf]
        %v2513 = vld [vmem:[%s3 + $0x1e0] sm:$0xf]
        %v2514 = vld [vmem:[%s3 + $0x1e4] sm:$0xf]
        %v2515 = vld [vmem:[%s3 + $0x1e8] sm:$0xf]
        %v2516 = vld [vmem:[%s3 + $0x1ec] sm:$0xf]
        %v2517 = vld [vmem:[%s3 + $0x1f0] sm:$0xf]
        %v2518 = vld [vmem:[%s3 + $0x1f4] sm:$0xf]
        %v2519 = vld [vmem:[%s3 + $0x1f8] sm:$0xf]
        %v2520 = vld [vmem:[%s3 + $0x1fc] sm:$0xf]
        %v2521 = vld [vmem:[%s3 + $0x200] sm:$0xf]
        %v2522 = vld [vmem:[%s3 + $0x204] sm:$0xf]
        %v2523 = vld [vmem:[%s3 + $0x208] sm:$0xf]
        %v2524 = vld [vmem:[%s3 + $0x20c] sm:$0xf]
        %v2525 = vld [vmem:[%s3 + $0x210] sm:$0xf]
        %v2526 = vld [vmem:[%s3 + $0x214] sm:$0xf]
        %v2527 = vld [vmem:[%s3 + $0x218] sm:$0xf]
        %v2528 = vld [vmem:[%s3 + $0x21c] sm:$0xf]
        %v2529 = vld [vmem:[%s3 + $0x220] sm:$0xf]
        %v2530 = vld [vmem:[%s3 + $0x224] sm:$0xf]
        %v2531 = vld [vmem:[%s3 + $0x228] sm:$0xf]
        %v2532 = vld [vmem:[%s3 + $0x22c] sm:$0xf]
        %v2533 = vld [vmem:[%s3 + $0x230] sm:$0xf]
        %v2534 = vld [vmem:[%s3 + $0x234] sm:$0xf]
        %v2535 = vld [vmem:[%s3 + $0x238] sm:$0xf]
        %v2536 = vld [vmem:[%s3 + $0x23c] sm:$0xf]
        %v2537 = vld [vmem:[%s3 + $0x240] sm:$0xf]
        %v2538 = vld [vmem:[%s4] sm:$0x1]
        %v2540 = vperm.slane %v2538, 0
        %v2582 = vunpack.c.l.b16 %v2353
        %v2583 = vunpack.c.h.b16 %v2353
        %v2584 = vunpack.c.l.b16 %v2354
        %v2585 = vunpack.c.h.b16 %v2354
        %v2586 = vunpack.c.l.b16 %v2355
        %v2587 = vunpack.c.h.b16 %v2355
        %v2588 = vunpack.c.l.b16 %v2356
        %v2589 = vunpack.c.h.b16 %v2356
        %v2590 = vunpack.c.l.b16 %v2357
        %v2591 = vunpack.c.h.b16 %v2357
        %v2592 = vunpack.c.l.b16 %v2358
        %v2593 = vunpack.c.h.b16 %v2358
        %v2594 = vunpack.c.l.b16 %v2359
        %v2595 = vunpack.c.h.b16 %v2359
        %v2596 = vunpack.c.l.b16 %v2360
        %v2597 = vunpack.c.h.b16 %v2360
        %v2598 = vunpack.c.l.b16 %v2361
        %v2599 = vunpack.c.h.b16 %v2361
        %v2600 = vunpack.c.l.b16 %v2362
        %v2601 = vunpack.c.h.b16 %v2362
        %v2602 = vunpack.c.l.b16 %v2363
        %v2603 = vunpack.c.h.b16 %v2363
        %v2604 = vunpack.c.l.b16 %v2364
        %v2605 = vunpack.c.h.b16 %v2364
        %v2606 = vunpack.c.l.b16 %v2365
        %v2607 = vunpack.c.h.b16 %v2365
        %v2608 = vunpack.c.l.b16 %v2366
        %v2609 = vunpack.c.h.b16 %v2366
        %v2610 = vunpack.c.l.b16 %v2367
        %v2611 = vunpack.c.h.b16 %v2367
        %v2612 = vunpack.c.l.b16 %v2368
        %v2613 = vunpack.c.h.b16 %v2368
        %v2614 = vunpack.c.l.b16 %v2369
        %v2615 = vunpack.c.h.b16 %v2369
        %v2616 = vunpack.c.l.b16 %v2370
        %v2617 = vunpack.c.h.b16 %v2370
        %v2618 = vunpack.c.l.b16 %v2371
        %v2619 = vunpack.c.h.b16 %v2371
        %v2620 = vunpack.c.l.b16 %v2372
        %v2621 = vunpack.c.h.b16 %v2372
        %v2622 = vunpack.c.l.b16 %v2373
        %v2623 = vunpack.c.h.b16 %v2373
        %v2624 = vunpack.c.l.b16 %v2374
        %v2625 = vunpack.c.h.b16 %v2374
        %v2626 = vunpack.c.l.b16 %v2375
        %v2627 = vunpack.c.h.b16 %v2375
        %v2628 = vunpack.c.l.b16 %v2376
        %v2629 = vunpack.c.h.b16 %v2376
        %v2630 = vunpack.c.l.b16 %v2377
        %v2631 = vunpack.c.h.b16 %v2377
        %v2632 = vunpack.c.l.b16 %v2378
        %v2633 = vunpack.c.h.b16 %v2378
        %v2634 = vunpack.c.l.b16 %v2379
        %v2635 = vunpack.c.h.b16 %v2379
        %v2636 = vunpack.c.l.b16 %v2380
        %v2637 = vunpack.c.h.b16 %v2380
        %v2638 = vunpack.c.l.b16 %v2381
        %v2639 = vunpack.c.h.b16 %v2381
        %v2640 = vunpack.c.l.b16 %v2382
        %v2641 = vunpack.c.h.b16 %v2382
        %v2642 = vunpack.c.l.b16 %v2383
        %v2643 = vunpack.c.h.b16 %v2383
        %v2644 = vunpack.c.l.b16 %v2384
        %v2645 = vunpack.c.h.b16 %v2384
        %v2646 = vunpack.c.l.b16 %v2385
        %v2647 = vunpack.c.h.b16 %v2385
        %v2648 = vunpack.c.l.b16 %v2386
        %v2649 = vunpack.c.h.b16 %v2386
        %v2650 = vunpack.c.l.b16 %v2387
        %v2651 = vunpack.c.h.b16 %v2387
        %v2652 = vunpack.c.l.b16 %v2388
        %v2653 = vunpack.c.h.b16 %v2388
        %v2654 = vunpack.c.l.b16 %v2389
        %v2655 = vunpack.c.h.b16 %v2389
        %v2656 = vunpack.c.l.b16 %v2390
        %v2657 = vunpack.c.h.b16 %v2390
        %v2658 = vunpack.c.l.b16 %v2391
        %v2659 = vunpack.c.h.b16 %v2391
        %v2660 = vunpack.c.l.b16 %v2392
        %v2661 = vunpack.c.h.b16 %v2392
        %v2662 = vpack.c.b16 %v2592, %v2582
        %v2663 = vpack.c.b16 %v2593, %v2583
        %v2664 = vpack.c.b16 %v2594, %v2584
        %v2665 = vpack.c.b16 %v2595, %v2585
        %v2666 = vpack.c.b16 %v2596, %v2586
        %v2667 = vpack.c.b16 %v2597, %v2587
        %v2668 = vpack.c.b16 %v2598, %v2588
        %v2669 = vpack.c.b16 %v2599, %v2589
        %v2670 = vpack.c.b16 %v2600, %v2590
        %v2671 = vpack.c.b16 %v2601, %v2591
        %v2672 = vpack.c.b16 %v2612, %v2602
        %v2673 = vpack.c.b16 %v2613, %v2603
        %v2674 = vpack.c.b16 %v2614, %v2604
        %v2675 = vpack.c.b16 %v2615, %v2605
        %v2676 = vpack.c.b16 %v2616, %v2606
        %v2677 = vpack.c.b16 %v2617, %v2607
        %v2678 = vpack.c.b16 %v2618, %v2608
        %v2679 = vpack.c.b16 %v2619, %v2609
        %v2680 = vpack.c.b16 %v2620, %v2610
        %v2681 = vpack.c.b16 %v2621, %v2611
        %v2682 = vpack.c.b16 %v2632, %v2622
        %v2683 = vpack.c.b16 %v2633, %v2623
        %v2684 = vpack.c.b16 %v2634, %v2624
        %v2685 = vpack.c.b16 %v2635, %v2625
        %v2686 = vpack.c.b16 %v2636, %v2626
        %v2687 = vpack.c.b16 %v2637, %v2627
        %v2688 = vpack.c.b16 %v2638, %v2628
        %v2689 = vpack.c.b16 %v2639, %v2629
        %v2690 = vpack.c.b16 %v2640, %v2630
        %v2691 = vpack.c.b16 %v2641, %v2631
        %v2692 = vpack.c.b16 %v2652, %v2642
        %v2693 = vpack.c.b16 %v2653, %v2643
        %v2694 = vpack.c.b16 %v2654, %v2644
        %v2695 = vpack.c.b16 %v2655, %v2645
        %v2696 = vpack.c.b16 %v2656, %v2646
        %v2697 = vpack.c.b16 %v2657, %v2647
        %v2698 = vpack.c.b16 %v2658, %v2648
        %v2699 = vpack.c.b16 %v2659, %v2649
        %v2700 = vpack.c.b16 %v2660, %v2650
        %v2701 = vpack.c.b16 %v2661, %v2651
        %v2883 = vunpack.c.l.b16 %v2393
        %v2884 = vunpack.c.l.b16 %v2394
        %v2885 = vunpack.c.l.b16 %v2395
        %v2886 = vunpack.c.l.b16 %v2396
        %v2887 = vunpack.c.l.b16 %v2397
        %v2888 = vunpack.c.l.b16 %v2398
        %v2889 = vunpack.c.l.b16 %v2399
        %v2890 = vunpack.c.l.b16 %v2400
        %v2891 = vunpack.c.l.b16 %v2401
        %v2892 = vunpack.c.l.b16 %v2402
        %v2893 = vunpack.c.l.b16 %v2403
        %v2894 = vunpack.c.l.b16 %v2404
        %v2895 = vunpack.c.l.b16 %v2405
        %v2896 = vunpack.c.l.b16 %v2406
        %v2897 = vunpack.c.l.b16 %v2407
        %v2898 = vunpack.c.l.b16 %v2408
        %v2899 = vunpack.c.l.b16 %v2409
        %v2900 = vunpack.c.l.b16 %v2410
        %v2901 = vunpack.c.l.b16 %v2411
        %v2902 = vunpack.c.l.b16 %v2412
        %v2903 = vunpack.c.l.b16 %v2413
        %v2904 = vunpack.c.l.b16 %v2414
        %v2905 = vunpack.c.l.b16 %v2415
        %v2906 = vunpack.c.l.b16 %v2416
        %v2907 = vunpack.c.l.b16 %v2417
        %v2908 = vunpack.c.l.b16 %v2418
        %v2909 = vunpack.c.l.b16 %v2419
        %v2910 = vunpack.c.l.b16 %v2420
        %v2911 = vunpack.c.l.b16 %v2421
        %v2912 = vunpack.c.l.b16 %v2422
        %v2913 = vunpack.c.l.b16 %v2423
        %v2914 = vunpack.c.l.b16 %v2424
        %v2915 = vunpack.c.l.b16 %v2425
        %v2916 = vunpack.c.l.b16 %v2426
        %v2917 = vunpack.c.l.b16 %v2427
        %v2918 = vunpack.c.l.b16 %v2428
        %v2919 = vunpack.c.l.b16 %v2429
        %v2920 = vunpack.c.l.b16 %v2430
        %v2921 = vunpack.c.l.b16 %v2431
        %v2922 = vunpack.c.l.b16 %v2432
        %v2923 = vunpack.c.l.b16 %v2433
        %v2924 = vunpack.c.l.b16 %v2434
        %v2925 = vunpack.c.l.b16 %v2435
        %v2926 = vunpack.c.l.b16 %v2436
        %v2927 = vunpack.c.l.b16 %v2437
        %v2928 = vunpack.c.l.b16 %v2438
        %v2929 = vunpack.c.l.b16 %v2439
        %v2930 = vunpack.c.l.b16 %v2440
        %v2931 = vunpack.c.l.b16 %v2441
        %v2932 = vunpack.c.l.b16 %v2442
        %v2933 = vunpack.c.l.b16 %v2443
        %v2934 = vunpack.c.l.b16 %v2444
        %v2935 = vunpack.c.l.b16 %v2445
        %v2936 = vunpack.c.l.b16 %v2446
        %v2937 = vunpack.c.l.b16 %v2447
        %v2938 = vunpack.c.l.b16 %v2448
        %v2939 = vunpack.c.l.b16 %v2449
        %v2940 = vunpack.c.l.b16 %v2450
        %v2941 = vunpack.c.l.b16 %v2451
        %v2942 = vunpack.c.l.b16 %v2452
        %v2943 = vunpack.c.l.b16 %v2453
        %v2944 = vunpack.c.l.b16 %v2454
        %v2945 = vunpack.c.l.b16 %v2455
        %v2946 = vunpack.c.l.b16 %v2456
        %v2947 = vunpack.c.l.b16 %v2457
        %v2948 = vunpack.c.l.b16 %v2458
        %v2949 = vunpack.c.l.b16 %v2459
        %v2950 = vunpack.c.l.b16 %v2460
        %v2951 = vunpack.c.l.b16 %v2461
        %v2952 = vunpack.c.l.b16 %v2462
        %v2953 = vunpack.c.l.b16 %v2463
        %v2954 = vunpack.c.l.b16 %v2464
        %v2955 = vunpack.c.l.b16 %v2465
        %v2956 = vunpack.c.l.b16 %v2466
        %v2957 = vunpack.c.l.b16 %v2467
        %v2958 = vunpack.c.l.b16 %v2468
        %v2959 = vunpack.c.l.b16 %v2469
        %v2960 = vunpack.c.l.b16 %v2470
        %v2961 = vunpack.c.l.b16 %v2471
        %v2962 = vunpack.c.l.b16 %v2472
        %v2963 = vunpack.c.l.b16 %v2473
        %v2964 = vunpack.c.l.b16 %v2474
        %v2965 = vunpack.c.l.b16 %v2475
        %v2966 = vunpack.c.l.b16 %v2476
        %v2967 = vunpack.c.l.b16 %v2477
        %v2968 = vunpack.c.l.b16 %v2478
        %v2969 = vunpack.c.l.b16 %v2479
        %v2970 = vunpack.c.l.b16 %v2480
        %v2971 = vunpack.c.l.b16 %v2481
        %v2972 = vunpack.c.l.b16 %v2482
        %v2973 = vunpack.c.l.b16 %v2483
        %v2974 = vunpack.c.l.b16 %v2484
        %v2975 = vunpack.c.l.b16 %v2485
        %v2976 = vunpack.c.l.b16 %v2486
        %v2977 = vunpack.c.l.b16 %v2487
        %v2978 = vunpack.c.l.b16 %v2488
        %v2979 = vunpack.c.l.b16 %v2489
        %v2980 = vunpack.c.l.b16 %v2490
        %v2981 = vunpack.c.l.b16 %v2491
        %v2982 = vunpack.c.l.b16 %v2492
        %v2983 = vunpack.c.l.b16 %v2493
        %v2984 = vunpack.c.l.b16 %v2494
        %v2985 = vunpack.c.l.b16 %v2495
        %v2986 = vunpack.c.l.b16 %v2496
        %v2987 = vunpack.c.l.b16 %v2497
        %v2988 = vunpack.c.l.b16 %v2498
        %v2989 = vunpack.c.l.b16 %v2499
        %v2990 = vunpack.c.l.b16 %v2500
        %v2991 = vunpack.c.l.b16 %v2501
        %v2992 = vunpack.c.l.b16 %v2502
        %v2993 = vunpack.c.l.b16 %v2503
        %v2994 = vunpack.c.l.b16 %v2504
        %v2995 = vunpack.c.l.b16 %v2505
        %v2996 = vunpack.c.l.b16 %v2506
        %v2997 = vunpack.c.l.b16 %v2507
        %v2998 = vunpack.c.l.b16 %v2508
        %v2999 = vunpack.c.l.b16 %v2509
        %v3000 = vunpack.c.l.b16 %v2510
        %v3001 = vunpack.c.l.b16 %v2511
        %v3002 = vunpack.c.l.b16 %v2512
        %v3003 = vunpack.c.l.b16 %v2513
        %v3004 = vunpack.c.l.b16 %v2514
        %v3005 = vunpack.c.l.b16 %v2515
        %v3006 = vunpack.c.l.b16 %v2516
        %v3007 = vunpack.c.l.b16 %v2517
        %v3008 = vunpack.c.l.b16 %v2518
        %v3009 = vunpack.c.l.b16 %v2519
        %v3010 = vunpack.c.l.b16 %v2520
        %v3011 = vunpack.c.l.b16 %v2521
        %v3012 = vunpack.c.l.b16 %v2522
        %v3013 = vunpack.c.l.b16 %v2523
        %v3014 = vunpack.c.l.b16 %v2524
        %v3015 = vunpack.c.l.b16 %v2525
        %v3016 = vunpack.c.l.b16 %v2526
        %v3017 = vunpack.c.l.b16 %v2527
        %v3018 = vunpack.c.l.b16 %v2528
        %v3019 = vunpack.c.l.b16 %v2529
        %v3020 = vunpack.c.l.b16 %v2530
        %v3021 = vunpack.c.l.b16 %v2531
        %v3022 = vunpack.c.l.b16 %v2532
        %v3023 = vunpack.c.l.b16 %v2533
        %v3024 = vunpack.c.l.b16 %v2534
        %v3025 = vunpack.c.l.b16 %v2535
        %v3026 = vunpack.c.l.b16 %v2536
        %v3027 = vunpack.c.l.b16 %v2537
        %v3028 = vpack.c.b16 %v2884, %v2883
        %v3029 = vpack.c.b16 %v2886, %v2885
        %v3030 = vpack.c.b16 %v2888, %v2887
        %v3031 = vpack.c.b16 %v2890, %v2889
        %v3032 = vpack.c.b16 %v2892, %v2891
        %v3033 = vpack.c.b16 %v2894, %v2893
        %v3034 = vpack.c.b16 %v2896, %v2895
        %v3035 = vpack.c.b16 %v2898, %v2897
        %v3036 = vpack.c.b16 %v2900, %v2899
        %v3037 = vpack.c.b16 %v2902, %v2901
        %v3038 = vpack.c.b16 %v2904, %v2903
        %v3039 = vpack.c.b16 %v2906, %v2905
        %v3040 = vpack.c.b16 %v2908, %v2907
        %v3041 = vpack.c.b16 %v2910, %v2909
        %v3042 = vpack.c.b16 %v2912, %v2911
        %v3043 = vpack.c.b16 %v2914, %v2913
        %v3044 = vpack.c.b16 %v2916, %v2915
        %v3045 = vpack.c.b16 %v2918, %v2917
        %v3046 = vpack.c.b16 %v2920, %v2919
        %v3047 = vpack.c.b16 %v2922, %v2921
        %v3048 = vpack.c.b16 %v2924, %v2923
        %v3049 = vpack.c.b16 %v2926, %v2925
        %v3050 = vpack.c.b16 %v2928, %v2927
        %v3051 = vpack.c.b16 %v2930, %v2929
        %v3052 = vpack.c.b16 %v2932, %v2931
        %v3053 = vpack.c.b16 %v2934, %v2933
        %v3054 = vpack.c.b16 %v2936, %v2935
        %v3055 = vpack.c.b16 %v2938, %v2937
        %v3056 = vpack.c.b16 %v2940, %v2939
        %v3057 = vpack.c.b16 %v2942, %v2941
        %v3058 = vpack.c.b16 %v2944, %v2943
        %v3059 = vpack.c.b16 %v2946, %v2945
        %v3060 = vpack.c.b16 %v2948, %v2947
        %v3061 = vpack.c.b16 %v2950, %v2949
        %v3062 = vpack.c.b16 %v2952, %v2951
        %v3063 = vpack.c.b16 %v2954, %v2953
        %v3064 = vpack.c.b16 %v2956, %v2955
        %v3065 = vpack.c.b16 %v2958, %v2957
        %v3066 = vpack.c.b16 %v2960, %v2959
        %v3067 = vpack.c.b16 %v2962, %v2961
        %v3068 = vpack.c.b16 %v2964, %v2963
        %v3069 = vpack.c.b16 %v2966, %v2965
        %v3070 = vpack.c.b16 %v2968, %v2967
        %v3071 = vpack.c.b16 %v2970, %v2969
        %v3072 = vpack.c.b16 %v2972, %v2971
        %v3073 = vpack.c.b16 %v2974, %v2973
        %v3074 = vpack.c.b16 %v2976, %v2975
        %v3075 = vpack.c.b16 %v2978, %v2977
        %v3076 = vpack.c.b16 %v2980, %v2979
        %v3077 = vpack.c.b16 %v2982, %v2981
        %v3078 = vpack.c.b16 %v2984, %v2983
        %v3079 = vpack.c.b16 %v2986, %v2985
        %v3080 = vpack.c.b16 %v2988, %v2987
        %v3081 = vpack.c.b16 %v2990, %v2989
        %v3082 = vpack.c.b16 %v2992, %v2991
        %v3083 = vpack.c.b16 %v2994, %v2993
        %v3084 = vpack.c.b16 %v2996, %v2995
        %v3085 = vpack.c.b16 %v2998, %v2997
        %v3086 = vpack.c.b16 %v3000, %v2999
        %v3087 = vpack.c.b16 %v3002, %v3001
        %v3088 = vpack.c.b16 %v3004, %v3003
        %v3089 = vpack.c.b16 %v3006, %v3005
        %v3090 = vpack.c.b16 %v3008, %v3007
        %v3091 = vpack.c.b16 %v3010, %v3009
        %v3092 = vpack.c.b16 %v3012, %v3011
        %v3093 = vpack.c.b16 %v3014, %v3013
        %v3094 = vpack.c.b16 %v3016, %v3015
        %v3095 = vpack.c.b16 %v3018, %v3017
        %v3096 = vpack.c.b16 %v3020, %v3019
        %v3097 = vpack.c.b16 %v3022, %v3021
        %v3098 = vpack.c.b16 %v3024, %v3023
        %v3099 = vpack.c.b16 %v3026, %v3025
        %v3100 = vpack.c.b16 %v3027, %v3027
        %vm3173 = vcmask 64512
        %v3175 = vsel %vm3173, %v2671, 0
        %v3178 = vsel %vm3173, %v2681, 0
        %v3181 = vsel %vm3173, %v2691, 0
        %v3184 = vsel %vm3173, %v2701, 0
        %v3187 = vsel %vm1286, %v3100, 0
        %3189 = vmatpush.bf16.msra.mxu0 %v3035
        %3190 = vmatpush.bf16.msra.mxu0 %v3034
        %3191 = vmatpush.bf16.msra.mxu0 %v3033
        %3192 = vmatpush.bf16.msra.mxu0 %v3032
        %3193 = vmatpush.bf16.msra.mxu0 %v3031
        %3194 = vmatpush.bf16.msra.mxu0 %v3030
        %3195 = vmatpush.bf16.msra.mxu0 %v3029
        %3196 = vmatpush.bf16.msra.mxu0 %v3028
        %3197 = vmatmul.bf16.gmra.mxu0 %v2662
        %v3198 = vpop.f32.mrf.mxu0
        %v3199 = vadd.f32 %v2540, %v3198
        %v3200 = vpop.f32.mrf.mxu0
        %v3201 = vadd.f32 %v2540, %v3200
        %3202 = vmatmul.bf16.gmra.mxu0 %v2672
        %v3203 = vpop.f32.mrf.mxu0
        %v3204 = vadd.f32 %v2540, %v3203
        %v3205 = vpop.f32.mrf.mxu0
        %v3206 = vadd.f32 %v2540, %v3205
        %3207 = vmatmul.bf16.gmra.mxu0 %v2682
        %v3208 = vpop.f32.mrf.mxu0
        %v3209 = vadd.f32 %v2540, %v3208
        %v3210 = vpop.f32.mrf.mxu0
        %v3211 = vadd.f32 %v2540, %v3210
        %3212 = vmatmul.bf16.gmra.mxu0 %v2692
        %v3213 = vpop.f32.mrf.mxu0
        %v3214 = vadd.f32 %v2540, %v3213
        %v3215 = vpop.f32.mrf.mxu0
        %v3216 = vadd.f32 %v2540, %v3215
        %3217 = vdwg.mxu0
        %3218 = vmatpush.bf16.msra.mxu0 %v3043
        %3219 = vmatpush.bf16.msra.mxu0 %v3042
        %3220 = vmatpush.bf16.msra.mxu0 %v3041
        %3221 = vmatpush.bf16.msra.mxu0 %v3040
        %3222 = vmatpush.bf16.msra.mxu0 %v3039
        %3223 = vmatpush.bf16.msra.mxu0 %v3038
        %3224 = vmatpush.bf16.msra.mxu0 %v3037
        %3225 = vmatpush.bf16.msra.mxu0 %v3036
        %3226 = vmatmul.bf16.gmra.mxu0 %v2663
        %v3227 = vpop.f32.mrf.mxu0
        %v3228 = vadd.f32 %v3199, %v3227
        %v3229 = vpop.f32.mrf.mxu0
        %v3230 = vadd.f32 %v3201, %v3229
        %3231 = vmatmul.bf16.gmra.mxu0 %v2673
        %v3232 = vpop.f32.mrf.mxu0
        %v3233 = vadd.f32 %v3204, %v3232
        %v3234 = vpop.f32.mrf.mxu0
        %v3235 = vadd.f32 %v3206, %v3234
        %3236 = vmatmul.bf16.gmra.mxu0 %v2683
        %v3237 = vpop.f32.mrf.mxu0
        %v3238 = vadd.f32 %v3209, %v3237
        %v3239 = vpop.f32.mrf.mxu0
        %v3240 = vadd.f32 %v3211, %v3239
        %3241 = vmatmul.bf16.gmra.mxu0 %v2693
        %v3242 = vpop.f32.mrf.mxu0
        %v3243 = vadd.f32 %v3214, %v3242
        %v3244 = vpop.f32.mrf.mxu0
        %v3245 = vadd.f32 %v3216, %v3244
        %3246 = vdwg.mxu0
        %3247 = vmatpush.bf16.msra.mxu0 %v3051
        %3248 = vmatpush.bf16.msra.mxu0 %v3050
        %3249 = vmatpush.bf16.msra.mxu0 %v3049
        %3250 = vmatpush.bf16.msra.mxu0 %v3048
        %3251 = vmatpush.bf16.msra.mxu0 %v3047
        %3252 = vmatpush.bf16.msra.mxu0 %v3046
        %3253 = vmatpush.bf16.msra.mxu0 %v3045
        %3254 = vmatpush.bf16.msra.mxu0 %v3044
        %3255 = vmatmul.bf16.gmra.mxu0 %v2664
        %v3256 = vpop.f32.mrf.mxu0
        %v3257 = vadd.f32 %v3228, %v3256
        %v3258 = vpop.f32.mrf.mxu0
        %v3259 = vadd.f32 %v3230, %v3258
        %3260 = vmatmul.bf16.gmra.mxu0 %v2674
        %v3261 = vpop.f32.mrf.mxu0
        %v3262 = vadd.f32 %v3233, %v3261
        %v3263 = vpop.f32.mrf.mxu0
        %v3264 = vadd.f32 %v3235, %v3263
        %3265 = vmatmul.bf16.gmra.mxu0 %v2684
        %v3266 = vpop.f32.mrf.mxu0
        %v3267 = vadd.f32 %v3238, %v3266
        %v3268 = vpop.f32.mrf.mxu0
        %v3269 = vadd.f32 %v3240, %v3268
        %3270 = vmatmul.bf16.gmra.mxu0 %v2694
        %v3271 = vpop.f32.mrf.mxu0
        %v3272 = vadd.f32 %v3243, %v3271
        %v3273 = vpop.f32.mrf.mxu0
        %v3274 = vadd.f32 %v3245, %v3273
        %3275 = vdwg.mxu0
        %3276 = vmatpush.bf16.msra.mxu0 %v3059
        %3277 = vmatpush.bf16.msra.mxu0 %v3058
        %3278 = vmatpush.bf16.msra.mxu0 %v3057
        %3279 = vmatpush.bf16.msra.mxu0 %v3056
        %3280 = vmatpush.bf16.msra.mxu0 %v3055
        %3281 = vmatpush.bf16.msra.mxu0 %v3054
        %3282 = vmatpush.bf16.msra.mxu0 %v3053
        %3283 = vmatpush.bf16.msra.mxu0 %v3052
        %3284 = vmatmul.bf16.gmra.mxu0 %v2665
        %v3285 = vpop.f32.mrf.mxu0
        %v3286 = vadd.f32 %v3257, %v3285
        %v3287 = vpop.f32.mrf.mxu0
        %v3288 = vadd.f32 %v3259, %v3287
        %3289 = vmatmul.bf16.gmra.mxu0 %v2675
        %v3290 = vpop.f32.mrf.mxu0
        %v3291 = vadd.f32 %v3262, %v3290
        %v3292 = vpop.f32.mrf.mxu0
        %v3293 = vadd.f32 %v3264, %v3292
        %3294 = vmatmul.bf16.gmra.mxu0 %v2685
        %v3295 = vpop.f32.mrf.mxu0
        %v3296 = vadd.f32 %v3267, %v3295
        %v3297 = vpop.f32.mrf.mxu0
        %v3298 = vadd.f32 %v3269, %v3297
        %3299 = vmatmul.bf16.gmra.mxu0 %v2695
        %v3300 = vpop.f32.mrf.mxu0
        %v3301 = vadd.f32 %v3272, %v3300
        %v3302 = vpop.f32.mrf.mxu0
        %v3303 = vadd.f32 %v3274, %v3302
        %3304 = vdwg.mxu0
        %3305 = vmatpush.bf16.msra.mxu0 %v3067
        %3306 = vmatpush.bf16.msra.mxu0 %v3066
        %3307 = vmatpush.bf16.msra.mxu0 %v3065
        %3308 = vmatpush.bf16.msra.mxu0 %v3064
        %3309 = vmatpush.bf16.msra.mxu0 %v3063
        %3310 = vmatpush.bf16.msra.mxu0 %v3062
        %3311 = vmatpush.bf16.msra.mxu0 %v3061
        %3312 = vmatpush.bf16.msra.mxu0 %v3060
        %3313 = vmatmul.bf16.gmra.mxu0 %v2666
        %v3314 = vpop.f32.mrf.mxu0
        %v3315 = vadd.f32 %v3286, %v3314
        %v3316 = vpop.f32.mrf.mxu0
        %v3317 = vadd.f32 %v3288, %v3316
        %3318 = vmatmul.bf16.gmra.mxu0 %v2676
        %v3319 = vpop.f32.mrf.mxu0
        %v3320 = vadd.f32 %v3291, %v3319
        %v3321 = vpop.f32.mrf.mxu0
        %v3322 = vadd.f32 %v3293, %v3321
        %3323 = vmatmul.bf16.gmra.mxu0 %v2686
        %v3324 = vpop.f32.mrf.mxu0
        %v3325 = vadd.f32 %v3296, %v3324
        %v3326 = vpop.f32.mrf.mxu0
        %v3327 = vadd.f32 %v3298, %v3326
        %3328 = vmatmul.bf16.gmra.mxu0 %v2696
        %v3329 = vpop.f32.mrf.mxu0
        %v3330 = vadd.f32 %v3301, %v3329
        %v3331 = vpop.f32.mrf.mxu0
        %v3332 = vadd.f32 %v3303, %v3331
        %3333 = vdwg.mxu0
        %3334 = vmatpush.bf16.msra.mxu0 %v3075
        %3335 = vmatpush.bf16.msra.mxu0 %v3074
        %3336 = vmatpush.bf16.msra.mxu0 %v3073
        %3337 = vmatpush.bf16.msra.mxu0 %v3072
        %3338 = vmatpush.bf16.msra.mxu0 %v3071
        %3339 = vmatpush.bf16.msra.mxu0 %v3070
        %3340 = vmatpush.bf16.msra.mxu0 %v3069
        %3341 = vmatpush.bf16.msra.mxu0 %v3068
        %3342 = vmatmul.bf16.gmra.mxu0 %v2667
        %v3343 = vpop.f32.mrf.mxu0
        %v3344 = vadd.f32 %v3315, %v3343
        %v3345 = vpop.f32.mrf.mxu0
        %v3346 = vadd.f32 %v3317, %v3345
        %3347 = vmatmul.bf16.gmra.mxu0 %v2677
        %v3348 = vpop.f32.mrf.mxu0
        %v3349 = vadd.f32 %v3320, %v3348
        %v3350 = vpop.f32.mrf.mxu0
        %v3351 = vadd.f32 %v3322, %v3350
        %3352 = vmatmul.bf16.gmra.mxu0 %v2687
        %v3353 = vpop.f32.mrf.mxu0
        %v3354 = vadd.f32 %v3325, %v3353
        %v3355 = vpop.f32.mrf.mxu0
        %v3356 = vadd.f32 %v3327, %v3355
        %3357 = vmatmul.bf16.gmra.mxu0 %v2697
        %v3358 = vpop.f32.mrf.mxu0
        %v3359 = vadd.f32 %v3330, %v3358
        %v3360 = vpop.f32.mrf.mxu0
        %v3361 = vadd.f32 %v3332, %v3360
        %3362 = vdwg.mxu0
        %3363 = vmatpush.bf16.msra.mxu0 %v3083
        %3364 = vmatpush.bf16.msra.mxu0 %v3082
        %3365 = vmatpush.bf16.msra.mxu0 %v3081
        %3366 = vmatpush.bf16.msra.mxu0 %v3080
        %3367 = vmatpush.bf16.msra.mxu0 %v3079
        %3368 = vmatpush.bf16.msra.mxu0 %v3078
        %3369 = vmatpush.bf16.msra.mxu0 %v3077
        %3370 = vmatpush.bf16.msra.mxu0 %v3076
        %3371 = vmatmul.bf16.gmra.mxu0 %v2668
        %v3372 = vpop.f32.mrf.mxu0
        %v3373 = vadd.f32 %v3344, %v3372
        %v3374 = vpop.f32.mrf.mxu0
        %v3375 = vadd.f32 %v3346, %v3374
        %3376 = vmatmul.bf16.gmra.mxu0 %v2678
        %v3377 = vpop.f32.mrf.mxu0
        %v3378 = vadd.f32 %v3349, %v3377
        %v3379 = vpop.f32.mrf.mxu0
        %v3380 = vadd.f32 %v3351, %v3379
        %3381 = vmatmul.bf16.gmra.mxu0 %v2688
        %v3382 = vpop.f32.mrf.mxu0
        %v3383 = vadd.f32 %v3354, %v3382
        %v3384 = vpop.f32.mrf.mxu0
        %v3385 = vadd.f32 %v3356, %v3384
        %3386 = vmatmul.bf16.gmra.mxu0 %v2698
        %v3387 = vpop.f32.mrf.mxu0
        %v3388 = vadd.f32 %v3359, %v3387
        %v3389 = vpop.f32.mrf.mxu0
        %v3390 = vadd.f32 %v3361, %v3389
        %3391 = vdwg.mxu0
        %3392 = vmatpush.bf16.msra.mxu0 %v3091
        %3393 = vmatpush.bf16.msra.mxu0 %v3090
        %3394 = vmatpush.bf16.msra.mxu0 %v3089
        %3395 = vmatpush.bf16.msra.mxu0 %v3088
        %3396 = vmatpush.bf16.msra.mxu0 %v3087
        %3397 = vmatpush.bf16.msra.mxu0 %v3086
        %3398 = vmatpush.bf16.msra.mxu0 %v3085
        %3399 = vmatpush.bf16.msra.mxu0 %v3084
        %3400 = vmatmul.bf16.gmra.mxu0 %v2669
        %v3401 = vpop.f32.mrf.mxu0
        %v3402 = vadd.f32 %v3373, %v3401
        %v3403 = vpop.f32.mrf.mxu0
        %v3404 = vadd.f32 %v3375, %v3403
        %3405 = vmatmul.bf16.gmra.mxu0 %v2679
        %v3406 = vpop.f32.mrf.mxu0
        %v3407 = vadd.f32 %v3378, %v3406
        %v3408 = vpop.f32.mrf.mxu0
        %v3409 = vadd.f32 %v3380, %v3408
        %3410 = vmatmul.bf16.gmra.mxu0 %v2689
        %v3411 = vpop.f32.mrf.mxu0
        %v3412 = vadd.f32 %v3383, %v3411
        %v3413 = vpop.f32.mrf.mxu0
        %v3414 = vadd.f32 %v3385, %v3413
        %3415 = vmatmul.bf16.gmra.mxu0 %v2699
        %v3416 = vpop.f32.mrf.mxu0
        %v3417 = vadd.f32 %v3388, %v3416
        %v3418 = vpop.f32.mrf.mxu0
        %v3419 = vadd.f32 %v3390, %v3418
        %3420 = vdwg.mxu0
        %3421 = vmatpush.bf16.msra.mxu0 %v3099
        %3422 = vmatpush.bf16.msra.mxu0 %v3098
        %3423 = vmatpush.bf16.msra.mxu0 %v3097
        %3424 = vmatpush.bf16.msra.mxu0 %v3096
        %3425 = vmatpush.bf16.msra.mxu0 %v3095
        %3426 = vmatpush.bf16.msra.mxu0 %v3094
        %3427 = vmatpush.bf16.msra.mxu0 %v3093
        %3428 = vmatpush.bf16.msra.mxu0 %v3092
        %3429 = vmatmul.bf16.gmra.mxu0 %v2670
        %v3430 = vpop.f32.mrf.mxu0
        %v3431 = vadd.f32 %v3402, %v3430
        %v3432 = vpop.f32.mrf.mxu0
        %v3433 = vadd.f32 %v3404, %v3432
        %3434 = vmatmul.bf16.gmra.mxu0 %v2680
        %v3435 = vpop.f32.mrf.mxu0
        %v3436 = vadd.f32 %v3407, %v3435
        %v3437 = vpop.f32.mrf.mxu0
        %v3438 = vadd.f32 %v3409, %v3437
        %3439 = vmatmul.bf16.gmra.mxu0 %v2690
        %v3440 = vpop.f32.mrf.mxu0
        %v3441 = vadd.f32 %v3412, %v3440
        %v3442 = vpop.f32.mrf.mxu0
        %v3443 = vadd.f32 %v3414, %v3442
        %3444 = vmatmul.bf16.gmra.mxu0 %v2700
        %v3445 = vpop.f32.mrf.mxu0
        %v3446 = vadd.f32 %v3417, %v3445
        %v3447 = vpop.f32.mrf.mxu0
        %v3448 = vadd.f32 %v3419, %v3447
        %3449 = vdwg.mxu0
        %3450 = vmatpush.bf16.msra.mxu0 0
        %3451 = vmatpush.bf16.msra.mxu0 0
        %3452 = vmatpush.bf16.msra.mxu0 0
        %3453 = vmatpush.bf16.msra.mxu0 0
        %3454 = vmatpush.bf16.msra.mxu0 0
        %3455 = vmatpush.bf16.msra.mxu0 0
        %3456 = vmatpush.bf16.msra.mxu0 0
        %3457 = vmatpush.bf16.msra.mxu0 %v3187
        %3458 = vmatmul.bf16.gmra.mxu0 %v3175
        %v3459 = vpop.f32.mrf.mxu0
        %v3460 = vadd.f32 %v3431, %v3459
        %v3461 = vpop.f32.mrf.mxu0
        %v3462 = vadd.f32 %v3433, %v3461
        %3463 = vmatmul.bf16.gmra.mxu0 %v3178
        %v3464 = vpop.f32.mrf.mxu0
        %v3465 = vadd.f32 %v3436, %v3464
        %v3466 = vpop.f32.mrf.mxu0
        %v3467 = vadd.f32 %v3438, %v3466
        %3468 = vmatmul.bf16.gmra.mxu0 %v3181
        %v3469 = vpop.f32.mrf.mxu0
        %v3470 = vadd.f32 %v3441, %v3469
        %v3471 = vpop.f32.mrf.mxu0
        %v3472 = vadd.f32 %v3443, %v3471
        %3473 = vmatmul.bf16.gmra.mxu0 %v3184
        %v3474 = vpop.f32.mrf.mxu0
        %v3475 = vadd.f32 %v3446, %v3474
        %v3476 = vpop.f32.mrf.mxu0
        %v3477 = vadd.f32 %v3448, %v3476
        %3478 = vdwg.mxu0
        %v3479 = vmax.f32 %v3460, 0.0
        %v3480 = vmax.f32 %v3462, 0.0
        %v3481 = vmax.f32 %v3465, 0.0
        %v3482 = vmax.f32 %v3467, 0.0
        %v3483 = vmax.f32 %v3470, 0.0
        %v3484 = vmax.f32 %v3472, 0.0
        %v3485 = vmax.f32 %v3475, 0.0
        %v3486 = vmax.f32 %v3477, 0.0
        %3487 = vst [vmem:[%s231] sm:$0xff] %v3479
        %3488 = vst [vmem:[%s231 + $0x8] sm:$0xff] %v3480
        %3489 = vst [vmem:[%s231 + $0x10] sm:$0xff] %v3481
        %3490 = vst [vmem:[%s231 + $0x18] sm:$0xff] %v3482
        %3491 = vst [vmem:[%s231 + $0x20] sm:$0xff] %v3483
        %3492 = vst [vmem:[%s231 + $0x28] sm:$0xff] %v3484
        %3493 = vst [vmem:[%s231 + $0x30] sm:$0xff] %v3485
        %3494 = vst [vmem:[%s231 + $0x38] sm:$0xff] %v3486
        %s3495 = sand.u32 %s151, 1
        %s3496 = scalar_lea.sflag [#allocation6], %s3495
        %s3497 = sand.u32 %s151, 1
        %s3498 = smul.addr %s3497, 64
        %s3499 = scalar_lea.vmem [#allocation5], %s3498
        // Predicated region
        $region45: #{tpu_custom_call.1} parent=39 // pred_check
          %p3500 = pneg %p161
        $region46: #{tpu_custom_call.1} parent=39 // pred_check_branch
          %3502 = sbr.rel (%p3500) target = $region48
        $region47: #{tpu_custom_call.1} parent=39 // pred_region
          %s3503 = smul.u32 8, %s24
          %3505 = vsyncadd %s3496, 0
          %s3506 = smul.addr %s23, 8
          %s3507 = sadd.s32 %s3503, %s3506
          %s3508 = smul.addr %s3507, 8
          %s3509 = scalar_lea.hbm %s5, %s3508
          %s3510 = sshll.u32 %s3499, 4
          %s3511 = int_to_ptr.vmem [resolvable:$true] %s3510
          %s3512 = sshll.u32 %s3509, 4
          %s3513 = int_to_ptr.hbm [resolvable:$true] %s3512
          %3518 = dma.vmem_to_hbm [thread:$0]  %s3511, 1024, %s3513, %s3496, 128, 128, 8
        $region48: #{tpu_custom_call.1} parent=39 // pred_fallthru
          _
      $region40: #{tpu_custom_call.1} parent=5 // pred_fallthru
        _
      %p3519 = scmp.le.s32.totalorder 2, %s14
      // Predicated region
      $region49: #{tpu_custom_call.1} parent=5 // pred_check
        %p3520 = pneg %p3519
      $region50: #{tpu_custom_call.1} parent=5 // pred_check_branch
        %3522 = sbr.rel (%p3520) target = $region52
      $region51: #{tpu_custom_call.1} parent=5 // pred_region
        %s3523 = ssub.s32 %s14, 2
        // Predicated region
        $region53: #{tpu_custom_call.1} parent=51 // pred_check
          %p3524 = pneg %p167
        $region54: #{tpu_custom_call.1} parent=51 // pred_check_branch
          %3526 = sbr.rel (%p3524) target = $region56
        $region55: #{tpu_custom_call.1} parent=51 // pred_region
          %s3527 = sand.u32 %s152, 1
          %s3528 = scalar_lea.sflag [#allocation6], %s3527
          %s3529 = sand.u32 %s152, 1
          %s3530 = smul.addr %s3529, 64
          %s3531 = scalar_lea.vmem [#allocation5], %s3530
          %3533 = dma.done %s3528, 1024
        $region56: #{tpu_custom_call.1} parent=51 // pred_fallthru
          _
      $region52: #{tpu_custom_call.1} parent=5 // pred_fallthru
        _
    $region6: #{tpu_custom_call.1} parent=1 // loop_footer
      %s18 = sadd.s32 1, %s14
    $region7: #{tpu_custom_call.1} parent=1 // loop_footer_branch
      %13 = sbr.rel target = $region3
    $region8: #{tpu_custom_call.1} parent=1 // loop_exit
      _
    %3534 = vsyncpa [#allocation6], 1
    %s3535 = scalar_lea.sflag [#allocation6], 1
    %3536 = vsyncpa %s3535, 1

</llo_original>
